<compile_context>
chip_gen: v5e
topology: v5e:2x2
jax: 0.10.0
libtpu: 0.0.40
codegen_flags: <defaults>
</compile_context>

<pallas_src>
import functools

import jax
import jax.numpy as jnp
from jax.experimental import pallas as pl
from jax.experimental.pallas import tpu as pltpu

# ---- LAW hyper-parameters (deterministic cfg stand-ins) ----
STEPS = 1                 # cfg.OPTIM.STEPS
TAU = 1.0                 # cfg.ADAPTER.LAW.TAU
BASE_LR = 1e-3
BETAS = (0.9, 0.999)      # fresh Adam every step -> only the first-step update matters
WEIGHT_DECAY = 0.0
EPS_LAW = 1e-8            # LAW's eps in the min-max lr scaling
EPS_ADAM = 1e-8           # torch.optim.Adam default eps

NEG_PAD = -1e30           # "minus infinity" bias for padded classes (finite in f32)
LANE = 128                # class axis padded to the lane width

_VMEM_SPEC = pl.BlockSpec(memory_space=pltpu.MemorySpace.VMEM)


# ------------------------------ fused kernel --------------------------------

def _law_fused_kernel(x2_ref, wt_ref, b_ref, acc_ref,
                      logits_ref, wt_new_ref, b_new_ref, scal_ref,
                      *, true_k, true_d):
    """One full forward_and_adapt() step, entirely in VMEM.

    Inputs:
      x2  : (2B, D)  f32  clean batch stacked on the augmented batch
      wt  : (Kp, D)  f32  transposed weight, padded class rows are 0
      b   : (1, Kp)  f32  bias, padded entries are NEG_PAD (acts like -inf)
      acc : (1, 128) f32  running scalars; [0]=sum gW_fim^2, [1]=sum gb_fim^2

    Outputs (lane-dense):
      logits : (B, Kp)  clean logits at the *pre-update* parameters
      wt_new : (Kp, D)  Adam-updated transposed weight   (aliases wt)
      b_new  : (1, Kp)  Adam-updated bias                 (aliases b)
      scal   : (1, 128) [0]=acc_w, [1]=acc_b, [2]=lr_w, [3]=lr_b, rest 0
    """
    f32, bf16 = jnp.float32, jnp.bfloat16

    x2 = x2_ref[...]                       # (2B, D) f32
    wt = wt_ref[...]                       # (Kp, D) f32
    bias = b_ref[...]                      # (1, Kp) f32
    acc_in = acc_ref[...]                  # (1, 128) f32

    two_b = x2.shape[0]
    b_sz = two_b // 2
    kp = wt.shape[0]

    # ---- forward: clean + augmented share one MXU pass (bf16 operands) ----
    wt_bf = wt.astype(bf16)
    z2 = jax.lax.dot_general(
        x2.astype(bf16), wt_bf, (((1,), (1,)), ((), ())),
        preferred_element_type=f32) + bias                     # (2B, Kp) f32

    # softmax / log_softmax over the class axis for both halves at once.
    # Padded classes have logits ~ -1e30 so exp underflows to exactly 0.
    z2_max = jnp.max(z2, axis=1, keepdims=True)
    z2s = z2 - z2_max
    logp2 = z2s - jnp.log(jnp.sum(jnp.exp(z2s), axis=1, keepdims=True))
    p2 = jnp.exp(logp2)

    z = z2[:b_sz]                          # clean logits
    z_max = z2_max[:b_sz]
    p, logp = p2[:b_sz], logp2[:b_sz]
    q, logq = p2[b_sz:], logp2[b_sz:]

    # first-index argmax label (torch.max tie-breaking) without a gather
    col = jax.lax.broadcasted_iota(jnp.int32, z.shape, 1)
    sentinel = jnp.where(z == z_max, col, kp)
    amax = jnp.min(sentinel, axis=1, keepdims=True)
    onehot = (col == amax).astype(f32)

    inv_b = 1.0 / b_sz
    coef = 0.01 * true_k                   # 0.01 * logits.shape[1] (true class count)

    # --- d/dlogits of nll_loss(log_softmax(z), argmax(z)) : (p - onehot)/B ---
    g_nll = (p - onehot) * inv_b

    # --- d/dlogits of softmax_entropy(z) + coef * consistency(z, z_aug) ---
    #   dH/dz = -p*(logp + H),  dC/dz = p*(s - logq) with s = sum_k p*logq,
    #   dC/dz_aug = q - p
    ent = -jnp.sum(p * logp, axis=1, keepdims=True)
    s = jnp.sum(p * logq, axis=1, keepdims=True)
    g_ad = (-p * (logp + ent) + coef * (p * (s - logq))) * inv_b
    g_ad_aug = (coef * inv_b) * (q - p)

    # slice-then-cast (keeps the sublane slicing in f32, the MXU operand in bf16)
    x_cln = x2[:b_sz].astype(bf16)         # (B, D) bf16
    x_aug = x2[b_sz:].astype(bf16)         # (B, D) bf16

    # ---- FIM backward: only the squared sums are ever consumed ----
    gwf = jax.lax.dot_general(
        g_nll.astype(bf16), x_cln, (((0,), (0,)), ((), ())),
        preferred_element_type=f32)                            # (Kp, D), VMEM only
    gbf = jnp.sum(g_nll, axis=0, keepdims=True)                # (1, Kp)
    sumsq_w = jnp.sum(jnp.sum(gwf * gwf, axis=1, keepdims=True),
                      axis=0, keepdims=True)                   # (1, 1)
    sumsq_b = jnp.sum(gbf * gbf, axis=1, keepdims=True)        # (1, 1)

    # ---- adapt backward: two depth-B contractions summed (no concat) ----
    gwa = (jax.lax.dot_general(g_ad.astype(bf16), x_cln, (((0,), (0,)), ((), ())),
                               preferred_element_type=f32)
           + jax.lax.dot_general(g_ad_aug.astype(bf16), x_aug, (((0,), (0,)), ((), ())),
                                 preferred_element_type=f32))  # (Kp, D), VMEM only
    gba = (jnp.sum(g_ad, axis=0, keepdims=True)
           + jnp.sum(g_ad_aug, axis=0, keepdims=True))         # (1, Kp)

    # ---- FIM min-max lr scaling (all scalars kept as (1,1) vregs) ----
    # NOTE: with STEPS=1 param.grad holds only the nll gradients, matching the
    # original; for STEPS>1 torch would also fold leftover adapt grads in.
    acc_w = acc_in[:, 0:1] + sumsq_w
    acc_b = acc_in[:, 1:2] + sumsq_b
    val_w = jnp.sqrt(acc_w / float(true_k * true_d))
    val_b = jnp.sqrt(acc_b / float(true_k))
    mn = jnp.minimum(val_w, val_b)
    mx = jnp.maximum(val_w, val_b)
    r_w = (val_w - mn) / (mx - mn + EPS_LAW)
    r_b = (val_b - mn) / (mx - mn + EPS_LAW)
    if TAU != 1.0:                         # static; avoids a pow lowering for tau=1
        r_w = r_w ** TAU
        r_b = r_b ** TAU
    lr_w = BASE_LR * r_w                   # (1, 1)
    lr_b = BASE_LR * r_b                   # (1, 1)

    # ---- freshly constructed Adam, first step: update = lr * g / (|g| + eps) ----
    # Padded gradients are exactly 0 -> padded wt rows stay 0, padded bias stays
    # NEG_PAD, so the padded structure is preserved across steps.
    wt_new_ref[...] = wt - lr_w * (gwa / (jnp.abs(gwa) + EPS_ADAM))
    b_new_ref[...] = bias - lr_b * (gba / (jnp.abs(gba) + EPS_ADAM))
    logits_ref[...] = z

    col_s = jax.lax.broadcasted_iota(jnp.int32, (1, scal_ref.shape[1]), 1)
    scal_ref[...] = jnp.where(
        col_s == 0, acc_w,
        jnp.where(col_s == 1, acc_b,
                  jnp.where(col_s == 2, lr_w,
                            jnp.where(col_s == 3, lr_b, 0.0))))


def law_fused(x2, wt_pad, b_pad, acc, *, k_true, d_true):
    two_b, d = x2.shape
    b_sz = two_b // 2
    kp = wt_pad.shape[0]
    f32 = jnp.float32

    cost = pl.CostEstimate(
        # fwd (depth D over 2B rows) + FIM backward (depth B) + adapt backward (2x depth B)
        flops=10 * b_sz * d * kp,
        transcendentals=2 * two_b * kp + 2 * two_b + 8,
        bytes_accessed=4 * (two_b * d + kp * d + kp + LANE          # inputs
                            + b_sz * kp + kp * d + kp + LANE),      # outputs
    )

    return pl.pallas_call(
        functools.partial(_law_fused_kernel, true_k=k_true, true_d=d_true),
        out_shape=(jax.ShapeDtypeStruct((b_sz, kp), f32),   # logits (clean, padded)
                   jax.ShapeDtypeStruct((kp, d), f32),      # updated W^T
                   jax.ShapeDtypeStruct((1, kp), f32),      # updated bias
                   jax.ShapeDtypeStruct((1, LANE), f32)),   # scalars [accW, accB, lrW, lrB]
        in_specs=[_VMEM_SPEC, _VMEM_SPEC, _VMEM_SPEC, _VMEM_SPEC],
        out_specs=(_VMEM_SPEC,) * 4,
        input_output_aliases={1: 1, 2: 2},                  # wt, b updated in place
        compiler_params=pltpu.CompilerParams(
            vmem_limit_bytes=32 * 1024 * 1024),              # explicit for v5e's 16 MiB default
        cost_estimate=cost,
    )(x2, wt_pad, b_pad, acc)


# ------------------------------- LAW wrapper --------------------------------

def _pad_params(w, b):
    """Pad the class axis to a lane multiple and transpose to the lane-dense layout."""
    d, k = w.shape
    kp = max(LANE, ((k + LANE - 1) // LANE) * LANE)
    wt_pad = jnp.zeros((kp, d), jnp.float32).at[:k, :].set(
        jnp.asarray(w, jnp.float32).T)
    b_pad = jnp.full((1, kp), NEG_PAD, jnp.float32).at[0, :k].set(
        jnp.asarray(b, jnp.float32))
    return wt_pad, b_pad, kp


def _make_x2(x):
    """Stack clean + augmented flattened batches; built once, hoisted out of STEPS."""
    b_sz = x.shape[0]
    xf = x.reshape(b_sz, -1).astype(jnp.float32)
    # TODO(synk): get_tta_transforms(dataset) is a stochastic torchvision pipeline;
    # deterministic stand-in = horizontal flip (step-invariant, so x2 is reused).
    xa = x[:, :, :, ::-1].reshape(b_sz, -1).astype(jnp.float32)
    return jnp.concatenate((xf, xa), axis=0)


def _law_forward_impl(x, w, b):
    """LAW.forward: run forward_and_adapt STEPS times, return last logits (+ params)."""
    d, k = w.shape
    wt_pad, b_pad, kp = _pad_params(w, b)
    acc = jnp.zeros((1, LANE), jnp.float32)     # [sum gW_fim^2, sum gb_fim^2, ...]
    x2 = _make_x2(x)
    logits_pad = None
    for _ in range(STEPS):
        # scal feeds straight back in as acc: the kernel only reads slots 0 and 1.
        logits_pad, wt_pad, b_pad, acc = law_fused(
            x2, wt_pad, b_pad, acc, k_true=k, d_true=d)
    logits = logits_pad[:, :k]
    w_new = wt_pad[:k, :].T
    b_new = b_pad[0, :k]
    return logits, w_new, b_new


# Jitting the whole forward keeps wt/b as XLA intermediates, so the in-place
# custom-call aliasing is honored with no extra parameter copies.
law_forward = jax.jit(_law_forward_impl)


# ------------------------------ reference check -----------------------------

def _mirror_step(x2, w, b, acc_w0, acc_b0):
    """Pure-JAX mirror of one fused step (same bf16 MXU operand casts, unpadded)."""
    bf16, f32 = jnp.bfloat16, jnp.float32
    two_b, d = x2.shape
    b_sz = two_b // 2
    k = w.shape[1]
    xf = x2[:b_sz].astype(bf16)
    xa = x2[b_sz:].astype(bf16)
    w_bf = w.astype(bf16)

    z = jnp.dot(xf, w_bf, preferred_element_type=f32) + b
    za = jnp.dot(xa, w_bf, preferred_element_type=f32) + b
    logp = jax.nn.log_softmax(z, axis=1); p = jnp.exp(logp)
    logq = jax.nn.log_softmax(za, axis=1); q = jnp.exp(logq)
    onehot = jax.nn.one_hot(jnp.argmax(z, axis=1), k, dtype=f32)
    inv_b = 1.0 / b_sz
    coef = 0.01 * k

    g_nll = (p - onehot) * inv_b
    ent = -jnp.sum(p * logp, axis=1, keepdims=True)
    s = jnp.sum(p * logq, axis=1, keepdims=True)
    g_ad = (-p * (logp + ent) + coef * (p * (s - logq))) * inv_b
    g_ad_aug = (coef * inv_b) * (q - p)

    gwf = jnp.dot(xf.T, g_nll.astype(bf16), preferred_element_type=f32)   # (D, K)
    gbf = jnp.sum(g_nll, axis=0)
    gwa = (jnp.dot(xf.T, g_ad.astype(bf16), preferred_element_type=f32)
           + jnp.dot(xa.T, g_ad_aug.astype(bf16), preferred_element_type=f32))
    gba = jnp.sum(g_ad, axis=0) + jnp.sum(g_ad_aug, axis=0)

    sumsq_w = jnp.sum(gwf * gwf)
    sumsq_b = jnp.sum(gbf * gbf)
    acc_w = acc_w0 + sumsq_w
    acc_b = acc_b0 + sumsq_b
    val_w = jnp.sqrt(acc_w / (k * d))
    val_b = jnp.sqrt(acc_b / k)
    mn = jnp.minimum(val_w, val_b)
    mx = jnp.maximum(val_w, val_b)
    r_w = (val_w - mn) / (mx - mn + EPS_LAW)
    r_b = (val_b - mn) / (mx - mn + EPS_LAW)
    if TAU != 1.0:
        r_w = r_w ** TAU
        r_b = r_b ** TAU
    lr_w = BASE_LR * r_w
    lr_b = BASE_LR * r_b

    w_new = w - lr_w * gwa / (jnp.abs(gwa) + EPS_ADAM)
    b_new = b - lr_b * gba / (jnp.abs(gba) + EPS_ADAM)
    return dict(logits=z, w_new=w_new, b_new=b_new, acc_w=acc_w, acc_b=acc_b,
                lr_w=lr_w, lr_b=lr_b, gwa=gwa, gba=gba,
                sumsq_w=sumsq_w, sumsq_b=sumsq_b)


def _autodiff_grads(x2, w, b):
    """jax.grad references for both losses, with the same bf16 forward casts."""
    bf16, f32 = jnp.bfloat16, jnp.float32
    b_sz = x2.shape[0] // 2
    k = w.shape[1]
    xf = x2[:b_sz].astype(bf16)
    xa = x2[b_sz:].astype(bf16)

    def fwd(w_, b_, xin):
        return jnp.dot(xin, w_.astype(bf16), preferred_element_type=f32) + b_

    def nll_loss(w_, b_):
        z = fwd(w_, b_, xf)
        lbl = jax.lax.stop_gradient(jnp.argmax(z, axis=1))
        logp = jax.nn.log_softmax(z, axis=1)
        return -jnp.mean(jnp.take_along_axis(logp, lbl[:, None], axis=1))

    def adapt_loss(w_, b_):
        z = fwd(w_, b_, xf)
        za = fwd(w_, b_, xa)
        e = -jnp.mean(jnp.sum(jax.nn.softmax(z, 1) * jax.nn.log_softmax(z, 1), 1))
        c = -jnp.mean(jnp.sum(jax.nn.softmax(z, 1) * jax.nn.log_softmax(za, 1), 1))
        return e + 0.01 * k * c

    gw_f, gb_f = jax.grad(nll_loss, (0, 1))(w, b)
    gw_a, gb_a = jax.grad(adapt_loss, (0, 1))(w, b)
    return gw_f, gb_f, gw_a, gb_a


def _reference_check(x, w, b):
    d, k = w.shape
    x2 = _make_x2(x)
    wt_pad, b_pad, kp = _pad_params(w, b)
    acc0 = jnp.zeros((1, LANE), jnp.float32)

    logits_pad, wt_new, b_new, scal = law_fused(x2, wt_pad, b_pad, acc0,
                                                k_true=k, d_true=d)
    logits_k = logits_pad[:, :k]
    w_new_k = wt_new[:k, :].T
    b_new_k = b_new[0, :k]

    ref = _mirror_step(x2, jnp.asarray(w, jnp.float32), jnp.asarray(b, jnp.float32),
                       0.0, 0.0)

    def close(a, r, rtol, atol):
        return bool(jnp.allclose(jnp.asarray(a), jnp.asarray(r), rtol=rtol, atol=atol))

    # (1) kernel vs pure-JAX mirror (identical math & MXU operand precision)
    assert close(logits_k, ref["logits"], 1e-3, 1e-4), "logits mismatch (kernel vs mirror)"
    assert close(scal[0, 0], ref["acc_w"], 5e-3, 1e-9), "FIM weight accumulator mismatch"
    assert close(scal[0, 1], ref["acc_b"], 5e-3, 1e-9), "FIM bias accumulator mismatch"
    assert close(scal[0, 2], ref["lr_w"], 5e-2, 1e-8), "lr_w mismatch"
    assert close(scal[0, 3], ref["lr_b"], 5e-2, 1e-8), "lr_b mismatch"

    # Adam's sign-like step is bitwise-sensitive near g == 0, so bound the step
    # size and the mean deviation instead of elementwise allclose on parameters.
    lr_w_r = float(ref["lr_w"])
    lr_b_r = float(ref["lr_b"])
    assert float(jnp.max(jnp.abs(w_new_k - w))) <= lr_w_r * 1.05 + 1e-8, "w step too large"
    assert float(jnp.max(jnp.abs(b_new_k - b))) <= lr_b_r * 1.05 + 1e-8, "b step too large"
    assert float(jnp.mean(jnp.abs(w_new_k - ref["w_new"]))) <= 0.05 * lr_w_r + 1e-8, \
        "w update deviates from reference"
    assert float(jnp.mean(jnp.abs(b_new_k - ref["b_new"]))) <= 0.05 * lr_b_r + 1e-8, \
        "b update deviates from reference"

    # padded classes must stay inert across the in-place update
    assert float(jnp.max(jnp.abs(wt_new[k:, :]))) < 1e-12, "padded weight rows moved"
    assert float(jnp.max(b_new[0, k:])) < -1e29, "padded bias entries moved"

    # (2) mirror analytic gradients vs jax.grad (validates the fused gradient math)
    gw_f, gb_f, gw_a, gb_a = _autodiff_grads(
        x2, jnp.asarray(w, jnp.float32), jnp.asarray(b, jnp.float32))
    assert close(ref["gwa"], gw_a, 2e-2, 1e-3), "adapt dW mismatch vs autodiff"
    assert close(ref["gba"], gb_a, 1e-2, 1e-5), "adapt db mismatch vs autodiff"
    assert close(ref["sumsq_w"], jnp.sum(gw_f * gw_f), 2e-2, 1e-9), "FIM dW sumsq mismatch"
    assert close(ref["sumsq_b"], jnp.sum(gb_f * gb_f), 2e-2, 1e-9), "FIM db sumsq mismatch"

    # (3) bf16-operand forward stays close to a full-f32 forward
    logits_f32 = jnp.dot(x2[:x.shape[0]], w, precision=jax.lax.Precision.HIGHEST) + b
    assert close(logits_k, logits_f32, 2e-2, 1e-2), "bf16 forward drifted from f32 reference"


# ----------------------------------- main ------------------------------------

if __name__ == "__main__":
    key = jax.random.PRNGKey(0)
    kx, kw, kb = jax.random.split(key, 3)

    B, C, H, W_sp, K = 8, 4, 16, 16, 16
    D = C * H * W_sp

    x = jax.random.normal(kx, (B, C, H, W_sp), jnp.float32)
    w = 0.02 * jax.random.normal(kw, (D, K), jnp.float32)     # stand-in model weight
    b = 0.01 * jax.random.normal(kb, (K,), jnp.float32)       # stand-in model bias

    logits, w_new, b_new = law_forward(x, w, b)
    jax.block_until_ready((logits, w_new, b_new))

    _reference_check(x, w, b)

    print("KERNEL_OK")
</pallas_src>

<mosaic_0001>
module attributes {stable_mosaic.version = 11 : i64} {
  func.func @_law_fused_kernel(%arg0: memref<16x1024xf32, #tpu.memory_space<vmem>>, %arg1: memref<128x1024xf32, #tpu.memory_space<vmem>>, %arg2: memref<1x128xf32, #tpu.memory_space<vmem>>, %arg3: memref<1x128xf32, #tpu.memory_space<vmem>>, %arg4: memref<8x128xf32, #tpu.memory_space<vmem>>, %arg5: memref<128x1024xf32, #tpu.memory_space<vmem>>, %arg6: memref<1x128xf32, #tpu.memory_space<vmem>>, %arg7: memref<1x128xf32, #tpu.memory_space<vmem>>) attributes {dimension_semantics = [], scalar_prefetch = 0 : i64, scratch_operands = 0 : i64, tpu.core_type = #tpu.core_type<tc>} {
    %c0 = arith.constant 0 : index
    %c0_0 = arith.constant 0 : index
    %0 = vector.load %arg0[%c0, %c0_0] : memref<16x1024xf32, #tpu.memory_space<vmem>>, vector<16x1024xf32>
    %c0_1 = arith.constant 0 : index
    %c0_2 = arith.constant 0 : index
    %1 = vector.load %arg1[%c0_1, %c0_2] : memref<128x1024xf32, #tpu.memory_space<vmem>>, vector<128x1024xf32>
    %c0_3 = arith.constant 0 : index
    %c0_4 = arith.constant 0 : index
    %2 = vector.load %arg2[%c0_3, %c0_4] : memref<1x128xf32, #tpu.memory_space<vmem>>, vector<1x128xf32>
    %c0_5 = arith.constant 0 : index
    %c0_6 = arith.constant 0 : index
    %3 = vector.load %arg3[%c0_5, %c0_6] : memref<1x128xf32, #tpu.memory_space<vmem>>, vector<1x128xf32>
    %4 = arith.truncf %1 : vector<128x1024xf32> to vector<128x1024xbf16>
    %5 = arith.truncf %0 : vector<16x1024xf32> to vector<16x1024xbf16>
    %cst = arith.constant dense<0.000000e+00> : vector<16x128xf32>
    %6 = tpu.matmul %5, %4, %cst {dimension_numbers = #tpu.dot_dimension_numbers<[1], [1], [0], [0], [0, 0, 1, 0], [], []>} : vector<16x1024xbf16>, vector<128x1024xbf16>, vector<16x128xf32> -> vector<16x128xf32>
    %7 = vector.broadcast %2 : vector<1x128xf32> to vector<16x128xf32>
    %8 = arith.addf %6, %7 : vector<16x128xf32>
    %cst_7 = arith.constant dense<0xFF800000> : vector<16xf32>
    %9 = vector.multi_reduction <maximumf>, %8, %cst_7 [1] : vector<16x128xf32> to vector<16xf32>
    %10 = vector.shape_cast %9 : vector<16xf32> to vector<16x1xf32>
    %11 = vector.broadcast %10 : vector<16x1xf32> to vector<16x128xf32>
    %12 = arith.subf %8, %11 : vector<16x128xf32>
    %13 = math.exp %12 : vector<16x128xf32>
    %cst_8 = arith.constant dense<0.000000e+00> : vector<16xf32>
    %14 = vector.multi_reduction <add>, %13, %cst_8 [1] : vector<16x128xf32> to vector<16xf32>
    %15 = vector.shape_cast %14 : vector<16xf32> to vector<16x1xf32>
    %16 = math.log %15 : vector<16x1xf32>
    %17 = vector.broadcast %16 : vector<16x1xf32> to vector<16x128xf32>
    %18 = arith.subf %12, %17 : vector<16x128xf32>
    %19 = math.exp %18 : vector<16x128xf32>
    %20 = vector.extract_strided_slice %8 {offsets = [0, 0], sizes = [8, 128], strides = [1, 1]} : vector<16x128xf32> to vector<8x128xf32>
    %21 = vector.extract_strided_slice %10 {offsets = [0, 0], sizes = [8, 1], strides = [1, 1]} : vector<16x1xf32> to vector<8x1xf32>
    %22 = vector.extract_strided_slice %19 {offsets = [0, 0], sizes = [8, 128], strides = [1, 1]} : vector<16x128xf32> to vector<8x128xf32>
    %23 = vector.extract_strided_slice %18 {offsets = [0, 0], sizes = [8, 128], strides = [1, 1]} : vector<16x128xf32> to vector<8x128xf32>
    %24 = vector.extract_strided_slice %19 {offsets = [8, 0], sizes = [8, 128], strides = [1, 1]} : vector<16x128xf32> to vector<8x128xf32>
    %25 = vector.extract_strided_slice %18 {offsets = [8, 0], sizes = [8, 128], strides = [1, 1]} : vector<16x128xf32> to vector<8x128xf32>
    %26 = tpu.iota {dimensions = array<i32: 1>} : vector<8x128xi32>
    %27 = vector.broadcast %21 : vector<8x1xf32> to vector<8x128xf32>
    %28 = arith.cmpf oeq, %20, %27 : vector<8x128xf32>
    %c128_i32 = arith.constant 128 : i32
    %29 = vector.broadcast %c128_i32 : i32 to vector<8x128xi32>
    %30 = arith.select %28, %26, %29 : vector<8x128xi1>, vector<8x128xi32>
    %cst_9 = arith.constant dense<2147483647> : vector<8xi32>
    %31 = vector.multi_reduction <minsi>, %30, %cst_9 [1] : vector<8x128xi32> to vector<8xi32>
    %32 = vector.shape_cast %31 : vector<8xi32> to vector<8x1xi32>
    %33 = vector.broadcast %32 : vector<8x1xi32> to vector<8x128xi32>
    %34 = arith.cmpi eq, %26, %33 : vector<8x128xi32>
    %35 = arith.extui %34 : vector<8x128xi1> to vector<8x128xi32>
    %36 = arith.sitofp %35 : vector<8x128xi32> to vector<8x128xf32>
    %37 = arith.subf %22, %36 : vector<8x128xf32>
    %cst_10 = arith.constant 1.250000e-01 : f32
    %38 = vector.broadcast %cst_10 : f32 to vector<8x128xf32>
    %39 = arith.mulf %37, %38 : vector<8x128xf32>
    %40 = arith.mulf %22, %23 : vector<8x128xf32>
    %cst_11 = arith.constant dense<0.000000e+00> : vector<8xf32>
    %41 = vector.multi_reduction <add>, %40, %cst_11 [1] : vector<8x128xf32> to vector<8xf32>
    %42 = vector.shape_cast %41 : vector<8xf32> to vector<8x1xf32>
    %cst_12 = arith.constant 0.000000e+00 : f32
    %43 = vector.broadcast %cst_12 : f32 to vector<8x1xf32>
    %44 = arith.subf %43, %42 : vector<8x1xf32>
    %45 = arith.mulf %22, %25 : vector<8x128xf32>
    %cst_13 = arith.constant dense<0.000000e+00> : vector<8xf32>
    %46 = vector.multi_reduction <add>, %45, %cst_13 [1] : vector<8x128xf32> to vector<8xf32>
    %47 = vector.shape_cast %46 : vector<8xf32> to vector<8x1xf32>
    %cst_14 = arith.constant 0.000000e+00 : f32
    %48 = vector.broadcast %cst_14 : f32 to vector<8x128xf32>
    %49 = arith.subf %48, %22 : vector<8x128xf32>
    %50 = vector.broadcast %44 : vector<8x1xf32> to vector<8x128xf32>
    %51 = arith.addf %23, %50 : vector<8x128xf32>
    %52 = arith.mulf %49, %51 : vector<8x128xf32>
    %53 = vector.broadcast %47 : vector<8x1xf32> to vector<8x128xf32>
    %54 = arith.subf %53, %25 : vector<8x128xf32>
    %55 = arith.mulf %22, %54 : vector<8x128xf32>
    %cst_15 = arith.constant 1.600000e-01 : f32
    %56 = vector.broadcast %cst_15 : f32 to vector<8x128xf32>
    %57 = arith.mulf %56, %55 : vector<8x128xf32>
    %58 = arith.addf %52, %57 : vector<8x128xf32>
    %cst_16 = arith.constant 1.250000e-01 : f32
    %59 = vector.broadcast %cst_16 : f32 to vector<8x128xf32>
    %60 = arith.mulf %58, %59 : vector<8x128xf32>
    %61 = arith.subf %24, %22 : vector<8x128xf32>
    %cst_17 = arith.constant 2.000000e-02 : f32
    %62 = vector.broadcast %cst_17 : f32 to vector<8x128xf32>
    %63 = arith.mulf %62, %61 : vector<8x128xf32>
    %64 = vector.extract_strided_slice %0 {offsets = [0, 0], sizes = [8, 1024], strides = [1, 1]} : vector<16x1024xf32> to vector<8x1024xf32>
    %65 = arith.truncf %64 : vector<8x1024xf32> to vector<8x1024xbf16>
    %66 = vector.extract_strided_slice %0 {offsets = [8, 0], sizes = [8, 1024], strides = [1, 1]} : vector<16x1024xf32> to vector<8x1024xf32>
    %67 = arith.truncf %66 : vector<8x1024xf32> to vector<8x1024xbf16>
    %68 = arith.truncf %39 : vector<8x128xf32> to vector<8x128xbf16>
    %cst_18 = arith.constant dense<0.000000e+00> : vector<128x1024xf32>
    %69 = tpu.matmul %68, %65, %cst_18 {dimension_numbers = #tpu.dot_dimension_numbers<[0], [0], [1], [1], [0, 1, 1, 1], [], []>} : vector<8x128xbf16>, vector<8x1024xbf16>, vector<128x1024xf32> -> vector<128x1024xf32>
    %cst_19 = arith.constant dense<0.000000e+00> : vector<128xf32>
    %70 = vector.multi_reduction <add>, %39, %cst_19 [0] : vector<8x128xf32> to vector<128xf32>
    %71 = vector.shape_cast %70 : vector<128xf32> to vector<1x128xf32>
    %72 = arith.mulf %69, %69 : vector<128x1024xf32>
    %cst_20 = arith.constant dense<0.000000e+00> : vector<128xf32>
    %73 = vector.multi_reduction <add>, %72, %cst_20 [1] : vector<128x1024xf32> to vector<128xf32>
    %74 = vector.shape_cast %73 : vector<128xf32> to vector<128x1xf32>
    %cst_21 = arith.constant dense<0.000000e+00> : vector<1xf32>
    %75 = vector.multi_reduction <add>, %74, %cst_21 [0] : vector<128x1xf32> to vector<1xf32>
    %76 = vector.shape_cast %75 : vector<1xf32> to vector<1x1xf32>
    %77 = arith.mulf %71, %71 : vector<1x128xf32>
    %cst_22 = arith.constant dense<0.000000e+00> : vector<1xf32>
    %78 = vector.multi_reduction <add>, %77, %cst_22 [1] : vector<1x128xf32> to vector<1xf32>
    %79 = vector.shape_cast %78 : vector<1xf32> to vector<1x1xf32>
    %80 = arith.truncf %60 : vector<8x128xf32> to vector<8x128xbf16>
    %cst_23 = arith.constant dense<0.000000e+00> : vector<128x1024xf32>
    %81 = tpu.matmul %80, %65, %cst_23 {dimension_numbers = #tpu.dot_dimension_numbers<[0], [0], [1], [1], [0, 1, 1, 1], [], []>} : vector<8x128xbf16>, vector<8x1024xbf16>, vector<128x1024xf32> -> vector<128x1024xf32>
    %82 = arith.truncf %63 : vector<8x128xf32> to vector<8x128xbf16>
    %cst_24 = arith.constant dense<0.000000e+00> : vector<128x1024xf32>
    %83 = tpu.matmul %82, %67, %cst_24 {dimension_numbers = #tpu.dot_dimension_numbers<[0], [0], [1], [1], [0, 1, 1, 1], [], []>} : vector<8x128xbf16>, vector<8x1024xbf16>, vector<128x1024xf32> -> vector<128x1024xf32>
    %84 = arith.addf %81, %83 : vector<128x1024xf32>
    %cst_25 = arith.constant dense<0.000000e+00> : vector<128xf32>
    %85 = vector.multi_reduction <add>, %60, %cst_25 [0] : vector<8x128xf32> to vector<128xf32>
    %86 = vector.shape_cast %85 : vector<128xf32> to vector<1x128xf32>
    %cst_26 = arith.constant dense<0.000000e+00> : vector<128xf32>
    %87 = vector.multi_reduction <add>, %63, %cst_26 [0] : vector<8x128xf32> to vector<128xf32>
    %88 = vector.shape_cast %87 : vector<128xf32> to vector<1x128xf32>
    %89 = arith.addf %86, %88 : vector<1x128xf32>
    %90 = vector.extract_strided_slice %3 {offsets = [0, 0], sizes = [1, 1], strides = [1, 1]} : vector<1x128xf32> to vector<1x1xf32>
    %91 = arith.addf %90, %76 : vector<1x1xf32>
    %92 = vector.extract_strided_slice %3 {offsets = [0, 1], sizes = [1, 1], strides = [1, 1]} : vector<1x128xf32> to vector<1x1xf32>
    %93 = arith.addf %92, %79 : vector<1x1xf32>
    %cst_27 = arith.constant 1.638400e+04 : f32
    %94 = vector.broadcast %cst_27 : f32 to vector<1x1xf32>
    %95 = arith.divf %91, %94 : vector<1x1xf32>
    %96 = math.sqrt %95 : vector<1x1xf32>
    %cst_28 = arith.constant 1.600000e+01 : f32
    %97 = vector.broadcast %cst_28 : f32 to vector<1x1xf32>
    %98 = arith.divf %93, %97 : vector<1x1xf32>
    %99 = math.sqrt %98 : vector<1x1xf32>
    %100 = arith.minimumf %96, %99 : vector<1x1xf32>
    %101 = arith.maximumf %96, %99 : vector<1x1xf32>
    %102 = arith.subf %96, %100 : vector<1x1xf32>
    %103 = arith.subf %101, %100 : vector<1x1xf32>
    %cst_29 = arith.constant 9.99999993E-9 : f32
    %104 = vector.broadcast %cst_29 : f32 to vector<1x1xf32>
    %105 = arith.addf %103, %104 : vector<1x1xf32>
    %106 = arith.divf %102, %105 : vector<1x1xf32>
    %107 = arith.subf %99, %100 : vector<1x1xf32>
    %108 = arith.subf %101, %100 : vector<1x1xf32>
    %cst_30 = arith.constant 9.99999993E-9 : f32
    %109 = vector.broadcast %cst_30 : f32 to vector<1x1xf32>
    %110 = arith.addf %108, %109 : vector<1x1xf32>
    %111 = arith.divf %107, %110 : vector<1x1xf32>
    %cst_31 = arith.constant 1.000000e-03 : f32
    %112 = vector.broadcast %cst_31 : f32 to vector<1x1xf32>
    %113 = arith.mulf %112, %106 : vector<1x1xf32>
    %cst_32 = arith.constant 1.000000e-03 : f32
    %114 = vector.broadcast %cst_32 : f32 to vector<1x1xf32>
    %115 = arith.mulf %114, %111 : vector<1x1xf32>
    %116 = math.absf %84 : vector<128x1024xf32>
    %cst_33 = arith.constant 9.99999993E-9 : f32
    %117 = vector.broadcast %cst_33 : f32 to vector<128x1024xf32>
    %118 = arith.addf %116, %117 : vector<128x1024xf32>
    %119 = arith.divf %84, %118 : vector<128x1024xf32>
    %120 = vector.broadcast %113 : vector<1x1xf32> to vector<128x1024xf32>
    %121 = arith.mulf %120, %119 : vector<128x1024xf32>
    %122 = arith.subf %1, %121 : vector<128x1024xf32>
    %c0_34 = arith.constant 0 : index
    %c0_35 = arith.constant 0 : index
    %123 = vector.load %arg5[%c0_34, %c0_35] : memref<128x1024xf32, #tpu.memory_space<vmem>>, vector<128x1024xf32>
    tpu.vector_store %arg5[%c0_34, %c0_35], %122 {strides = array<i32>} : memref<128x1024xf32, #tpu.memory_space<vmem>>, vector<128x1024xf32>,
    %124 = math.absf %89 : vector<1x128xf32>
    %cst_36 = arith.constant 9.99999993E-9 : f32
    %125 = vector.broadcast %cst_36 : f32 to vector<1x128xf32>
    %126 = arith.addf %124, %125 : vector<1x128xf32>
    %127 = arith.divf %89, %126 : vector<1x128xf32>
    %128 = vector.broadcast %115 : vector<1x1xf32> to vector<1x128xf32>
    %129 = arith.mulf %128, %127 : vector<1x128xf32>
    %130 = arith.subf %2, %129 : vector<1x128xf32>
    %c0_37 = arith.constant 0 : index
    %c0_38 = arith.constant 0 : index
    %131 = vector.load %arg6[%c0_37, %c0_38] : memref<1x128xf32, #tpu.memory_space<vmem>>, vector<1x128xf32>
    tpu.vector_store %arg6[%c0_37, %c0_38], %130 {strides = array<i32>} : memref<1x128xf32, #tpu.memory_space<vmem>>, vector<1x128xf32>,
    %c0_39 = arith.constant 0 : index
    %c0_40 = arith.constant 0 : index
    %132 = vector.load %arg4[%c0_39, %c0_40] : memref<8x128xf32, #tpu.memory_space<vmem>>, vector<8x128xf32>
    tpu.vector_store %arg4[%c0_39, %c0_40], %20 {strides = array<i32>} : memref<8x128xf32, #tpu.memory_space<vmem>>, vector<8x128xf32>,
    %133 = tpu.iota {dimensions = array<i32: 1>} : vector<1x128xi32>
    %c0_i32 = arith.constant 0 : i32
    %134 = vector.broadcast %c0_i32 : i32 to vector<1x128xi32>
    %135 = arith.cmpi eq, %133, %134 : vector<1x128xi32>
    %c1_i32 = arith.constant 1 : i32
    %136 = vector.broadcast %c1_i32 : i32 to vector<1x128xi32>
    %137 = arith.cmpi eq, %133, %136 : vector<1x128xi32>
    %c2_i32 = arith.constant 2 : i32
    %138 = vector.broadcast %c2_i32 : i32 to vector<1x128xi32>
    %139 = arith.cmpi eq, %133, %138 : vector<1x128xi32>
    %c3_i32 = arith.constant 3 : i32
    %140 = vector.broadcast %c3_i32 : i32 to vector<1x128xi32>
    %141 = arith.cmpi eq, %133, %140 : vector<1x128xi32>
    %cst_41 = arith.constant 0.000000e+00 : f32
    %142 = vector.shape_cast %115 : vector<1x1xf32> to vector<1x1xf32>
    %143 = vector.broadcast %142 : vector<1x1xf32> to vector<1x128xf32>
    %144 = vector.broadcast %cst_41 : f32 to vector<1x128xf32>
    %145 = arith.select %141, %143, %144 : vector<1x128xi1>, vector<1x128xf32>
    %146 = vector.shape_cast %113 : vector<1x1xf32> to vector<1x1xf32>
    %147 = vector.broadcast %146 : vector<1x1xf32> to vector<1x128xf32>
    %148 = arith.select %139, %147, %145 : vector<1x128xi1>, vector<1x128xf32>
    %149 = vector.shape_cast %93 : vector<1x1xf32> to vector<1x1xf32>
    %150 = vector.broadcast %149 : vector<1x1xf32> to vector<1x128xf32>
    %151 = arith.select %137, %150, %148 : vector<1x128xi1>, vector<1x128xf32>
    %152 = vector.shape_cast %91 : vector<1x1xf32> to vector<1x1xf32>
    %153 = vector.broadcast %152 : vector<1x1xf32> to vector<1x128xf32>
    %154 = arith.select %135, %153, %151 : vector<1x128xi1>, vector<1x128xf32>
    %c0_42 = arith.constant 0 : index
    %c0_43 = arith.constant 0 : index
    %155 = vector.load %arg7[%c0_42, %c0_43] : memref<1x128xf32, #tpu.memory_space<vmem>>, vector<1x128xf32>
    tpu.vector_store %arg7[%c0_42, %c0_43], %154 {strides = array<i32>} : memref<1x128xf32, #tpu.memory_space<vmem>>, vector<1x128xf32>,
    return
  }
}

</mosaic_0001>

<llo_original>
// kernel: _law_forward_impl.1
$region0: #{_law_forward_impl.1}
  #allocation0 [shape = 'u32[]', space=smem, size = 0x4, offset = 0x4, fixed_abs, tag = 'smem constant byte address 0x4 - core index']
  #allocation1 [shape = 'u32[72,128]{1,0:T(1,128)}', space=vmem, size = 0x9000, scoped, tag = 'internal scratch']
  %s0 = inlined_call_operand.vmem [shape: f32[16,1024], index: 0, kind: input, shape index: {}]
  %s1 = inlined_call_operand.vmem [shape: f32[128,1024], index: 1, kind: input, shape index: {}, may-alias: {1,5}]
  %s2 = inlined_call_operand.vmem [shape: f32[1,128], index: 2, kind: input, shape index: {}, may-alias: {2,6}]
  %s3 = inlined_call_operand.vmem [shape: f32[1,128], index: 3, kind: input, shape index: {}]
  %s4 = inlined_call_operand.hbm [shape: f32[8,128], index: 4, kind: output, shape index: {0}]
  %s5 = inlined_call_operand.vmem [shape: f32[128,1024], index: 5, kind: output, shape index: {1}, may-alias: {1,5}]
  %s6 = inlined_call_operand.vmem [shape: f32[1,128], index: 6, kind: output, shape index: {2}, may-alias: {2,6}]
  %s7 = inlined_call_operand.hbm [shape: f32[1,128], index: 7, kind: output, shape index: {3}]
  %8 = xla_tuple %s4, %s5, %s6, %s7
  %s9 = sld [smem:[#allocation0]]
  $region50: #{_law_forward_impl.1} parent=0
    _
  %s11 = ssub.s32 1, %s9
  %s12 = scalar_select 0, %s11, %s9
  $region1: #{_law_forward_impl.1} parent=0
    #allocation2 [shape = 'u8[4096]{0}', space=vmem, size = 0x1000, scoped, tag = 'output window, operand 0, single buffered']
    #allocation3 [shape = 's32[1]{0}', space=sflag, size = 0x4, scoped, tag = 'scoped memory for _law_forward_impl.1']
    #allocation4 [shape = 'u8[512]{0}', space=vmem, size = 0x400, scoped, tag = 'output window, operand 3, single buffered']
    #allocation5 [shape = 's32[1]{0}', space=sflag, size = 0x4, scoped, tag = 'scoped memory for _law_forward_impl.1']
    %13 = vsyncpa [#allocation3], 0
    %14 = vsyncpa [#allocation5], 0
    // Predicated region
    $region2: #{_law_forward_impl.1} parent=1 // pred_check
      _
    $region3: #{_law_forward_impl.1} parent=1 // pred_check_branch
      %16 = sbr.rel (0) target = $region5
    $region4: #{_law_forward_impl.1} parent=1 // pred_region
      _
    $region5: #{_law_forward_impl.1} parent=1 // pred_fallthru
      _
    // Predicated region
    $region6: #{_law_forward_impl.1} parent=1 // pred_check
      _
    $region7: #{_law_forward_impl.1} parent=1 // pred_check_branch
      %18 = sbr.rel (0) target = $region9
    $region8: #{_law_forward_impl.1} parent=1 // pred_region
      _
    $region9: #{_law_forward_impl.1} parent=1 // pred_fallthru
      _
    // Predicated region
    $region10: #{_law_forward_impl.1} parent=1 // pred_check
      _
    $region11: #{_law_forward_impl.1} parent=1 // pred_check_branch
      %20 = sbr.rel (0) target = $region13
    $region12: #{_law_forward_impl.1} parent=1 // pred_region
      _
    $region13: #{_law_forward_impl.1} parent=1 // pred_fallthru
      _
    // Predicated region
    $region14: #{_law_forward_impl.1} parent=1 // pred_check
      _
    $region15: #{_law_forward_impl.1} parent=1 // pred_check_branch
      %22 = sbr.rel (0) target = $region17
    $region16: #{_law_forward_impl.1} parent=1 // pred_region
      _
    $region17: #{_law_forward_impl.1} parent=1 // pred_fallthru
      _
    %v24 = vld [vmem:[%s0] sm:$0xff]
    %v25 = vld [vmem:[%s0 + $0x8] sm:$0xff]
    %v26 = vld [vmem:[%s0 + $0x10] sm:$0xff]
    %v27 = vld [vmem:[%s0 + $0x18] sm:$0xff]
    %v28 = vld [vmem:[%s0 + $0x20] sm:$0xff]
    %v29 = vld [vmem:[%s0 + $0x28] sm:$0xff]
    %v30 = vld [vmem:[%s0 + $0x30] sm:$0xff]
    %v31 = vld [vmem:[%s0 + $0x38] sm:$0xff]
    %v32 = vld [vmem:[%s0 + $0x40] sm:$0xff]
    %v33 = vld [vmem:[%s0 + $0x48] sm:$0xff]
    %v34 = vld [vmem:[%s0 + $0x50] sm:$0xff]
    %v35 = vld [vmem:[%s0 + $0x58] sm:$0xff]
    %v36 = vld [vmem:[%s0 + $0x60] sm:$0xff]
    %v37 = vld [vmem:[%s0 + $0x68] sm:$0xff]
    %v38 = vld [vmem:[%s0 + $0x70] sm:$0xff]
    %v39 = vld [vmem:[%s0 + $0x78] sm:$0xff]
    %v40 = vld [vmem:[%s1] sm:$0xff]
    %v41 = vld [vmem:[%s1 + $0x8] sm:$0xff]
    %v42 = vld [vmem:[%s1 + $0x10] sm:$0xff]
    %v43 = vld [vmem:[%s1 + $0x18] sm:$0xff]
    %v44 = vld [vmem:[%s1 + $0x20] sm:$0xff]
    %v45 = vld [vmem:[%s1 + $0x28] sm:$0xff]
    %v46 = vld [vmem:[%s1 + $0x30] sm:$0xff]
    %v47 = vld [vmem:[%s1 + $0x38] sm:$0xff]
    %v48 = vld [vmem:[%s1 + $0x40] sm:$0xff]
    %v49 = vld [vmem:[%s1 + $0x48] sm:$0xff]
    %v50 = vld [vmem:[%s1 + $0x50] sm:$0xff]
    %v51 = vld [vmem:[%s1 + $0x58] sm:$0xff]
    %v52 = vld [vmem:[%s1 + $0x60] sm:$0xff]
    %v53 = vld [vmem:[%s1 + $0x68] sm:$0xff]
    %v54 = vld [vmem:[%s1 + $0x70] sm:$0xff]
    %v55 = vld [vmem:[%s1 + $0x78] sm:$0xff]
    %v56 = vld [vmem:[%s1 + $0x80] sm:$0xff]
    %v57 = vld [vmem:[%s1 + $0x88] sm:$0xff]
    %v58 = vld [vmem:[%s1 + $0x90] sm:$0xff]
    %v59 = vld [vmem:[%s1 + $0x98] sm:$0xff]
    %v60 = vld [vmem:[%s1 + $0xa0] sm:$0xff]
    %v61 = vld [vmem:[%s1 + $0xa8] sm:$0xff]
    %v62 = vld [vmem:[%s1 + $0xb0] sm:$0xff]
    %v63 = vld [vmem:[%s1 + $0xb8] sm:$0xff]
    %v64 = vld [vmem:[%s1 + $0xc0] sm:$0xff]
    %v65 = vld [vmem:[%s1 + $0xc8] sm:$0xff]
    %v66 = vld [vmem:[%s1 + $0xd0] sm:$0xff]
    %v67 = vld [vmem:[%s1 + $0xd8] sm:$0xff]
    %v68 = vld [vmem:[%s1 + $0xe0] sm:$0xff]
    %v69 = vld [vmem:[%s1 + $0xe8] sm:$0xff]
    %v70 = vld [vmem:[%s1 + $0xf0] sm:$0xff]
    %v71 = vld [vmem:[%s1 + $0xf8] sm:$0xff]
    %v72 = vld [vmem:[%s1 + $0x100] sm:$0xff]
    %v73 = vld [vmem:[%s1 + $0x108] sm:$0xff]
    %v74 = vld [vmem:[%s1 + $0x110] sm:$0xff]
    %v75 = vld [vmem:[%s1 + $0x118] sm:$0xff]
    %v76 = vld [vmem:[%s1 + $0x120] sm:$0xff]
    %v77 = vld [vmem:[%s1 + $0x128] sm:$0xff]
    %v78 = vld [vmem:[%s1 + $0x130] sm:$0xff]
    %v79 = vld [vmem:[%s1 + $0x138] sm:$0xff]
    %v80 = vld [vmem:[%s1 + $0x140] sm:$0xff]
    %v81 = vld [vmem:[%s1 + $0x148] sm:$0xff]
    %v82 = vld [vmem:[%s1 + $0x150] sm:$0xff]
    %v83 = vld [vmem:[%s1 + $0x158] sm:$0xff]
    %v84 = vld [vmem:[%s1 + $0x160] sm:$0xff]
    %v85 = vld [vmem:[%s1 + $0x168] sm:$0xff]
    %v86 = vld [vmem:[%s1 + $0x170] sm:$0xff]
    %v87 = vld [vmem:[%s1 + $0x178] sm:$0xff]
    %v88 = vld [vmem:[%s1 + $0x180] sm:$0xff]
    %v89 = vld [vmem:[%s1 + $0x188] sm:$0xff]
    %v90 = vld [vmem:[%s1 + $0x190] sm:$0xff]
    %v91 = vld [vmem:[%s1 + $0x198] sm:$0xff]
    %v92 = vld [vmem:[%s1 + $0x1a0] sm:$0xff]
    %v93 = vld [vmem:[%s1 + $0x1a8] sm:$0xff]
    %v94 = vld [vmem:[%s1 + $0x1b0] sm:$0xff]
    %v95 = vld [vmem:[%s1 + $0x1b8] sm:$0xff]
    %v96 = vld [vmem:[%s1 + $0x1c0] sm:$0xff]
    %v97 = vld [vmem:[%s1 + $0x1c8] sm:$0xff]
    %v98 = vld [vmem:[%s1 + $0x1d0] sm:$0xff]
    %v99 = vld [vmem:[%s1 + $0x1d8] sm:$0xff]
    %v100 = vld [vmem:[%s1 + $0x1e0] sm:$0xff]
    %v101 = vld [vmem:[%s1 + $0x1e8] sm:$0xff]
    %v102 = vld [vmem:[%s1 + $0x1f0] sm:$0xff]
    %v103 = vld [vmem:[%s1 + $0x1f8] sm:$0xff]
    %v104 = vld [vmem:[%s1 + $0x200] sm:$0xff]
    %v105 = vld [vmem:[%s1 + $0x208] sm:$0xff]
    %v106 = vld [vmem:[%s1 + $0x210] sm:$0xff]
    %v107 = vld [vmem:[%s1 + $0x218] sm:$0xff]
    %v108 = vld [vmem:[%s1 + $0x220] sm:$0xff]
    %v109 = vld [vmem:[%s1 + $0x228] sm:$0xff]
    %v110 = vld [vmem:[%s1 + $0x230] sm:$0xff]
    %v111 = vld [vmem:[%s1 + $0x238] sm:$0xff]
    %v112 = vld [vmem:[%s1 + $0x240] sm:$0xff]
    %v113 = vld [vmem:[%s1 + $0x248] sm:$0xff]
    %v114 = vld [vmem:[%s1 + $0x250] sm:$0xff]
    %v115 = vld [vmem:[%s1 + $0x258] sm:$0xff]
    %v116 = vld [vmem:[%s1 + $0x260] sm:$0xff]
    %v117 = vld [vmem:[%s1 + $0x268] sm:$0xff]
    %v118 = vld [vmem:[%s1 + $0x270] sm:$0xff]
    %v119 = vld [vmem:[%s1 + $0x278] sm:$0xff]
    %v120 = vld [vmem:[%s1 + $0x280] sm:$0xff]
    %v121 = vld [vmem:[%s1 + $0x288] sm:$0xff]
    %v122 = vld [vmem:[%s1 + $0x290] sm:$0xff]
    %v123 = vld [vmem:[%s1 + $0x298] sm:$0xff]
    %v124 = vld [vmem:[%s1 + $0x2a0] sm:$0xff]
    %v125 = vld [vmem:[%s1 + $0x2a8] sm:$0xff]
    %v126 = vld [vmem:[%s1 + $0x2b0] sm:$0xff]
    %v127 = vld [vmem:[%s1 + $0x2b8] sm:$0xff]
    %v128 = vld [vmem:[%s1 + $0x2c0] sm:$0xff]
    %v129 = vld [vmem:[%s1 + $0x2c8] sm:$0xff]
    %v130 = vld [vmem:[%s1 + $0x2d0] sm:$0xff]
    %v131 = vld [vmem:[%s1 + $0x2d8] sm:$0xff]
    %v132 = vld [vmem:[%s1 + $0x2e0] sm:$0xff]
    %v133 = vld [vmem:[%s1 + $0x2e8] sm:$0xff]
    %v134 = vld [vmem:[%s1 + $0x2f0] sm:$0xff]
    %v135 = vld [vmem:[%s1 + $0x2f8] sm:$0xff]
    %v136 = vld [vmem:[%s1 + $0x300] sm:$0xff]
    %v137 = vld [vmem:[%s1 + $0x308] sm:$0xff]
    %v138 = vld [vmem:[%s1 + $0x310] sm:$0xff]
    %v139 = vld [vmem:[%s1 + $0x318] sm:$0xff]
    %v140 = vld [vmem:[%s1 + $0x320] sm:$0xff]
    %v141 = vld [vmem:[%s1 + $0x328] sm:$0xff]
    %v142 = vld [vmem:[%s1 + $0x330] sm:$0xff]
    %v143 = vld [vmem:[%s1 + $0x338] sm:$0xff]
    %v144 = vld [vmem:[%s1 + $0x340] sm:$0xff]
    %v145 = vld [vmem:[%s1 + $0x348] sm:$0xff]
    %v146 = vld [vmem:[%s1 + $0x350] sm:$0xff]
    %v147 = vld [vmem:[%s1 + $0x358] sm:$0xff]
    %v148 = vld [vmem:[%s1 + $0x360] sm:$0xff]
    %v149 = vld [vmem:[%s1 + $0x368] sm:$0xff]
    %v150 = vld [vmem:[%s1 + $0x370] sm:$0xff]
    %v151 = vld [vmem:[%s1 + $0x378] sm:$0xff]
    %v152 = vld [vmem:[%s1 + $0x380] sm:$0xff]
    %v153 = vld [vmem:[%s1 + $0x388] sm:$0xff]
    %v154 = vld [vmem:[%s1 + $0x390] sm:$0xff]
    %v155 = vld [vmem:[%s1 + $0x398] sm:$0xff]
    %v156 = vld [vmem:[%s1 + $0x3a0] sm:$0xff]
    %v157 = vld [vmem:[%s1 + $0x3a8] sm:$0xff]
    %v158 = vld [vmem:[%s1 + $0x3b0] sm:$0xff]
    %v159 = vld [vmem:[%s1 + $0x3b8] sm:$0xff]
    %v160 = vld [vmem:[%s1 + $0x3c0] sm:$0xff]
    %v161 = vld [vmem:[%s1 + $0x3c8] sm:$0xff]
    %v162 = vld [vmem:[%s1 + $0x3d0] sm:$0xff]
    %v163 = vld [vmem:[%s1 + $0x3d8] sm:$0xff]
    %v164 = vld [vmem:[%s1 + $0x3e0] sm:$0xff]
    %v165 = vld [vmem:[%s1 + $0x3e8] sm:$0xff]
    %v166 = vld [vmem:[%s1 + $0x3f0] sm:$0xff]
    %v167 = vld [vmem:[%s1 + $0x3f8] sm:$0xff]
    %v168 = vld [vmem:[%s2] sm:$0x1]
    %v169 = vld [vmem:[%s3] sm:$0x1]
    %v170 = vpack.c.bf16 %v48, %v40
    %v171 = vpack.c.bf16 %v49, %v41
    %v172 = vpack.c.bf16 %v50, %v42
    %v173 = vpack.c.bf16 %v51, %v43
    %v174 = vpack.c.bf16 %v52, %v44
    %v175 = vpack.c.bf16 %v53, %v45
    %v176 = vpack.c.bf16 %v54, %v46
    %v177 = vpack.c.bf16 %v55, %v47
    %v178 = vpack.c.bf16 %v64, %v56
    %v179 = vpack.c.bf16 %v65, %v57
    %v180 = vpack.c.bf16 %v66, %v58
    %v181 = vpack.c.bf16 %v67, %v59
    %v182 = vpack.c.bf16 %v68, %v60
    %v183 = vpack.c.bf16 %v69, %v61
    %v184 = vpack.c.bf16 %v70, %v62
    %v185 = vpack.c.bf16 %v71, %v63
    %v186 = vpack.c.bf16 %v80, %v72
    %v187 = vpack.c.bf16 %v81, %v73
    %v188 = vpack.c.bf16 %v82, %v74
    %v189 = vpack.c.bf16 %v83, %v75
    %v190 = vpack.c.bf16 %v84, %v76
    %v191 = vpack.c.bf16 %v85, %v77
    %v192 = vpack.c.bf16 %v86, %v78
    %v193 = vpack.c.bf16 %v87, %v79
    %v194 = vpack.c.bf16 %v96, %v88
    %v195 = vpack.c.bf16 %v97, %v89
    %v196 = vpack.c.bf16 %v98, %v90
    %v197 = vpack.c.bf16 %v99, %v91
    %v198 = vpack.c.bf16 %v100, %v92
    %v199 = vpack.c.bf16 %v101, %v93
    %v200 = vpack.c.bf16 %v102, %v94
    %v201 = vpack.c.bf16 %v103, %v95
    %v202 = vpack.c.bf16 %v112, %v104
    %v203 = vpack.c.bf16 %v113, %v105
    %v204 = vpack.c.bf16 %v114, %v106
    %v205 = vpack.c.bf16 %v115, %v107
    %v206 = vpack.c.bf16 %v116, %v108
    %v207 = vpack.c.bf16 %v117, %v109
    %v208 = vpack.c.bf16 %v118, %v110
    %v209 = vpack.c.bf16 %v119, %v111
    %v210 = vpack.c.bf16 %v128, %v120
    %v211 = vpack.c.bf16 %v129, %v121
    %v212 = vpack.c.bf16 %v130, %v122
    %v213 = vpack.c.bf16 %v131, %v123
    %v214 = vpack.c.bf16 %v132, %v124
    %v215 = vpack.c.bf16 %v133, %v125
    %v216 = vpack.c.bf16 %v134, %v126
    %v217 = vpack.c.bf16 %v135, %v127
    %v218 = vpack.c.bf16 %v144, %v136
    %v219 = vpack.c.bf16 %v145, %v137
    %v220 = vpack.c.bf16 %v146, %v138
    %v221 = vpack.c.bf16 %v147, %v139
    %v222 = vpack.c.bf16 %v148, %v140
    %v223 = vpack.c.bf16 %v149, %v141
    %v224 = vpack.c.bf16 %v150, %v142
    %v225 = vpack.c.bf16 %v151, %v143
    %v226 = vpack.c.bf16 %v160, %v152
    %v227 = vpack.c.bf16 %v161, %v153
    %v228 = vpack.c.bf16 %v162, %v154
    %v229 = vpack.c.bf16 %v163, %v155
    %v230 = vpack.c.bf16 %v164, %v156
    %v231 = vpack.c.bf16 %v165, %v157
    %v232 = vpack.c.bf16 %v166, %v158
    %v233 = vpack.c.bf16 %v167, %v159
    %v234 = vpack.c.bf16 %v32, %v24
    %v235 = vpack.c.bf16 %v33, %v25
    %v236 = vpack.c.bf16 %v34, %v26
    %v237 = vpack.c.bf16 %v35, %v27
    %v238 = vpack.c.bf16 %v36, %v28
    %v239 = vpack.c.bf16 %v37, %v29
    %v240 = vpack.c.bf16 %v38, %v30
    %v241 = vpack.c.bf16 %v39, %v31
    %v243 = vperm.slane %v168, 0
    %245 = vmatpush.bf16.xpose.msra.mxu0 %v226
    %246 = vmatpush.bf16.xpose.msra.mxu0 %v218
    %247 = vmatpush.bf16.xpose.msra.mxu0 %v210
    %248 = vmatpush.bf16.xpose.msra.mxu0 %v202
    %249 = vmatpush.bf16.xpose.msra.mxu0 %v194
    %250 = vmatpush.bf16.xpose.msra.mxu0 %v186
    %251 = vmatpush.bf16.xpose.msra.mxu0 %v178
    %252 = vmatpush.bf16.xpose.msra.mxu0 %v170
    %253 = vmatmul.bf16.gmra.mxu0 %v234
    %v254 = vpop.f32.mrf.mxu0
    %v255 = vadd.f32 %v243, %v254
    %v256 = vpop.f32.mrf.mxu0
    %v257 = vadd.f32 %v243, %v256
    %258 = vdwg.mxu0
    %259 = vmatpush.bf16.xpose.msra.mxu0 %v227
    %260 = vmatpush.bf16.xpose.msra.mxu0 %v219
    %261 = vmatpush.bf16.xpose.msra.mxu0 %v211
    %262 = vmatpush.bf16.xpose.msra.mxu0 %v203
    %263 = vmatpush.bf16.xpose.msra.mxu0 %v195
    %264 = vmatpush.bf16.xpose.msra.mxu0 %v187
    %265 = vmatpush.bf16.xpose.msra.mxu0 %v179
    %266 = vmatpush.bf16.xpose.msra.mxu0 %v171
    %267 = vmatmul.bf16.gmra.mxu0 %v235
    %v268 = vpop.f32.mrf.mxu0
    %v269 = vadd.f32 %v255, %v268
    %v270 = vpop.f32.mrf.mxu0
    %v271 = vadd.f32 %v257, %v270
    %272 = vdwg.mxu0
    %273 = vmatpush.bf16.xpose.msra.mxu0 %v228
    %274 = vmatpush.bf16.xpose.msra.mxu0 %v220
    %275 = vmatpush.bf16.xpose.msra.mxu0 %v212
    %276 = vmatpush.bf16.xpose.msra.mxu0 %v204
    %277 = vmatpush.bf16.xpose.msra.mxu0 %v196
    %278 = vmatpush.bf16.xpose.msra.mxu0 %v188
    %279 = vmatpush.bf16.xpose.msra.mxu0 %v180
    %280 = vmatpush.bf16.xpose.msra.mxu0 %v172
    %281 = vmatmul.bf16.gmra.mxu0 %v236
    %v282 = vpop.f32.mrf.mxu0
    %v283 = vadd.f32 %v269, %v282
    %v284 = vpop.f32.mrf.mxu0
    %v285 = vadd.f32 %v271, %v284
    %286 = vdwg.mxu0
    %287 = vmatpush.bf16.xpose.msra.mxu0 %v229
    %288 = vmatpush.bf16.xpose.msra.mxu0 %v221
    %289 = vmatpush.bf16.xpose.msra.mxu0 %v213
    %290 = vmatpush.bf16.xpose.msra.mxu0 %v205
    %291 = vmatpush.bf16.xpose.msra.mxu0 %v197
    %292 = vmatpush.bf16.xpose.msra.mxu0 %v189
    %293 = vmatpush.bf16.xpose.msra.mxu0 %v181
    %294 = vmatpush.bf16.xpose.msra.mxu0 %v173
    %295 = vmatmul.bf16.gmra.mxu0 %v237
    %v296 = vpop.f32.mrf.mxu0
    %v297 = vadd.f32 %v283, %v296
    %v298 = vpop.f32.mrf.mxu0
    %v299 = vadd.f32 %v285, %v298
    %300 = vdwg.mxu0
    %301 = vmatpush.bf16.xpose.msra.mxu0 %v230
    %302 = vmatpush.bf16.xpose.msra.mxu0 %v222
    %303 = vmatpush.bf16.xpose.msra.mxu0 %v214
    %304 = vmatpush.bf16.xpose.msra.mxu0 %v206
    %305 = vmatpush.bf16.xpose.msra.mxu0 %v198
    %306 = vmatpush.bf16.xpose.msra.mxu0 %v190
    %307 = vmatpush.bf16.xpose.msra.mxu0 %v182
    %308 = vmatpush.bf16.xpose.msra.mxu0 %v174
    %309 = vmatmul.bf16.gmra.mxu0 %v238
    %v310 = vpop.f32.mrf.mxu0
    %v311 = vadd.f32 %v297, %v310
    %v312 = vpop.f32.mrf.mxu0
    %v313 = vadd.f32 %v299, %v312
    %314 = vdwg.mxu0
    %315 = vmatpush.bf16.xpose.msra.mxu0 %v231
    %316 = vmatpush.bf16.xpose.msra.mxu0 %v223
    %317 = vmatpush.bf16.xpose.msra.mxu0 %v215
    %318 = vmatpush.bf16.xpose.msra.mxu0 %v207
    %319 = vmatpush.bf16.xpose.msra.mxu0 %v199
    %320 = vmatpush.bf16.xpose.msra.mxu0 %v191
    %321 = vmatpush.bf16.xpose.msra.mxu0 %v183
    %322 = vmatpush.bf16.xpose.msra.mxu0 %v175
    %323 = vmatmul.bf16.gmra.mxu0 %v239
    %v324 = vpop.f32.mrf.mxu0
    %v325 = vadd.f32 %v311, %v324
    %v326 = vpop.f32.mrf.mxu0
    %v327 = vadd.f32 %v313, %v326
    %328 = vdwg.mxu0
    %329 = vmatpush.bf16.xpose.msra.mxu0 %v232
    %330 = vmatpush.bf16.xpose.msra.mxu0 %v224
    %331 = vmatpush.bf16.xpose.msra.mxu0 %v216
    %332 = vmatpush.bf16.xpose.msra.mxu0 %v208
    %333 = vmatpush.bf16.xpose.msra.mxu0 %v200
    %334 = vmatpush.bf16.xpose.msra.mxu0 %v192
    %335 = vmatpush.bf16.xpose.msra.mxu0 %v184
    %336 = vmatpush.bf16.xpose.msra.mxu0 %v176
    %337 = vmatmul.bf16.gmra.mxu0 %v240
    %v338 = vpop.f32.mrf.mxu0
    %v339 = vadd.f32 %v325, %v338
    %v340 = vpop.f32.mrf.mxu0
    %v341 = vadd.f32 %v327, %v340
    %342 = vdwg.mxu0
    %343 = vmatpush.bf16.xpose.msra.mxu0 %v233
    %344 = vmatpush.bf16.xpose.msra.mxu0 %v225
    %345 = vmatpush.bf16.xpose.msra.mxu0 %v217
    %346 = vmatpush.bf16.xpose.msra.mxu0 %v209
    %347 = vmatpush.bf16.xpose.msra.mxu0 %v201
    %348 = vmatpush.bf16.xpose.msra.mxu0 %v193
    %349 = vmatpush.bf16.xpose.msra.mxu0 %v185
    %350 = vmatpush.bf16.xpose.msra.mxu0 %v177
    %351 = vmatmul.bf16.gmra.mxu0 %v241
    %v352 = vpop.f32.mrf.mxu0
    %v353 = vadd.f32 %v339, %v352
    %v354 = vpop.f32.mrf.mxu0
    %v355 = vadd.f32 %v341, %v354
    %356 = vdwg.mxu0
    %357 = vmax.xlane.f32.xlu0 %v353
    %v358 = vpop.xlane.xlu0 %357
    %359 = vmax.xlane.f32.xlu0 %v355
    %v360 = vpop.xlane.xlu0 %359
    %v361 = vsub.f32 %v353, %v358
    %v362 = vsub.f32 %v355, %v360
    %v363 = vmul.f32 %v361, 1.442695
    %v364 = vpow.pop %v363
    %v365 = vmul.f32 %v362, 1.442695
    %v366 = vpow.pop %v365
    %367 = vadd.xlane.f32.xlu0 %v364
    %v368 = vpop.xlane.xlu0 %367
    %369 = vadd.xlane.f32.xlu0 %v366
    %v370 = vpop.xlane.xlu0 %369
    %v371 = vlog2.pop %v368
    %v372 = vmul.f32 %v371, 0.6931472
    %v373 = vlog2.pop %v370
    %v374 = vmul.f32 %v373, 0.6931472
    %v375 = vsub.f32 %v361, %v372
    %v376 = vsub.f32 %v362, %v374
    %v377 = vmul.f32 %v375, 1.442695
    %v378 = vpow.pop %v377
    %v379 = vmul.f32 %v376, 1.442695
    %v380 = vpow.pop %v379
    %v381 = vlaneseq
    %v382 = vand.u32 %v381, 127
    %vm383 = vcmp.eq.f32.partialorder %v353, %v358
    %v384 = vsel %vm383, %v382, 128
    %v385 = vand.u32 %v384, 65535
    %v386 = vshra.s32 %v384, 16
    %v387 = vcvt.s32.f32 %v385
    %v388 = vcvt.s32.f32 %v386
    %389 = vmin.xlane.f32.xlu0 %v388
    %v390 = vpop.xlane.xlu0 %389
    %vm391 = vcmp.eq.f32.partialorder %v388, %v390
    %v392 = vsel %vm391, %v387, inf
    %393 = vmin.xlane.f32.xlu0 %v392
    %v394 = vpop.xlane.xlu0 %393
    %v395 = vcvt.f32.s32 %v394
    %v396 = vcvt.f32.s32 %v390
    %v397 = vshll.u32 %v396, 16
    %v398 = vadd.s32 %v397, %v395
    %vm399 = vcmp.eq.s32.totalorder %v382, %v398
    %v400 = vsel %vm399, 1, 0
    %v401 = vcvt.s32.f32 %v400
    %v402 = vsub.f32 %v378, %v401
    %v403 = vmul.f32 %v402, 0.125
    %v404 = vmul.f32 %v378, %v375
    %405 = vadd.xlane.f32.xlu0 %v404
    %v406 = vpop.xlane.xlu0 %405
    %v407 = vsub.f32 0.0, %v406
    %v408 = vmul.f32 %v378, %v376
    %409 = vadd.xlane.f32.xlu0 %v408
    %v410 = vpop.xlane.xlu0 %409
    %v411 = vsub.f32 0.0, %v378
    %v412 = vadd.f32 %v375, %v407
    %v413 = vmul.f32 %v411, %v412
    %v414 = vsub.f32 %v410, %v376
    %v415 = vmul.f32 %v378, %v414
    %v416 = vmul.f32 %v415, 0.16
    %v417 = vadd.f32 %v413, %v416
    %v418 = vmul.f32 %v417, 0.125
    %v419 = vsub.f32 %v380, %v378
    %v420 = vmul.f32 %v419, 0.02
    %v421 = vpack.c.bf16 %v24, %v24
    %v422 = vpack.c.bf16 %v25, %v25
    %v423 = vpack.c.bf16 %v26, %v26
    %v424 = vpack.c.bf16 %v27, %v27
    %v425 = vpack.c.bf16 %v28, %v28
    %v426 = vpack.c.bf16 %v29, %v29
    %v427 = vpack.c.bf16 %v30, %v30
    %v428 = vpack.c.bf16 %v31, %v31
    %v429 = vpack.c.bf16 %v32, %v32
    %v430 = vpack.c.bf16 %v33, %v33
    %v431 = vpack.c.bf16 %v34, %v34
    %v432 = vpack.c.bf16 %v35, %v35
    %v433 = vpack.c.bf16 %v36, %v36
    %v434 = vpack.c.bf16 %v37, %v37
    %v435 = vpack.c.bf16 %v38, %v38
    %v436 = vpack.c.bf16 %v39, %v39
    %v437 = vpack.c.bf16 %v403, %v403
    %438 = vxpose.xlu0.c.b16.start [1/8] %v437, 128
    %439 = vxpose.xlu0.c.b16.cont [2/8] 0, 128
    %440 = vxpose.xlu0.c.b16.cont [3/8] 0, 128
    %441 = vxpose.xlu0.c.b16.cont [4/8] 0, 128
    %442 = vxpose.xlu0.c.b16.cont [5/8] 0, 128
    %443 = vxpose.xlu0.c.b16.cont [6/8] 0, 128
    %444 = vxpose.xlu0.c.b16.cont [7/8] 0, 128
    %445 = vxpose.xlu0.c.b16.end [8/8] 0, 128
    %v446 = vpop.trf.xlu0
    %v447 = vpop.trf.xlu0
    %v448 = vpop.trf.xlu0
    %v449 = vpop.trf.xlu0
    %v450 = vpop.trf.xlu0
    %v451 = vpop.trf.xlu0
    %v452 = vpop.trf.xlu0
    %v453 = vpop.trf.xlu0
    %vm454 = vcmask 64512
    %v456 = vsel %vm454, %v446, 0
    %v459 = vsel %vm454, %v447, 0
    %v462 = vsel %vm454, %v448, 0
    %v465 = vsel %vm454, %v449, 0
    %v468 = vsel %vm454, %v450, 0
    %v471 = vsel %vm454, %v451, 0
    %v474 = vsel %vm454, %v452, 0
    %v477 = vsel %vm454, %v453, 0
    %vm479 = vcmask 1043456
    %v481 = vsel %vm479, %v421, 0
    %v484 = vsel %vm479, %v422, 0
    %v487 = vsel %vm479, %v423, 0
    %v490 = vsel %vm479, %v424, 0
    %v493 = vsel %vm479, %v425, 0
    %v496 = vsel %vm479, %v426, 0
    %v499 = vsel %vm479, %v427, 0
    %v502 = vsel %vm479, %v428, 0
    %504 = vmatpush.bf16.msra.mxu0 0
    %505 = vmatpush.bf16.msra.mxu0 0
    %506 = vmatpush.bf16.msra.mxu0 0
    %507 = vmatpush.bf16.msra.mxu0 0
    %508 = vmatpush.bf16.msra.mxu0 0
    %509 = vmatpush.bf16.msra.mxu0 0
    %510 = vmatpush.bf16.msra.mxu0 0
    %511 = vmatpush.bf16.msra.mxu0 %v481
    %512 = vmatmul.bf16.gmra.mxu0 %v456
    %v513 = vpop.f32.mrf.mxu0
    %v514 = vadd.f32 0.0, %v513
    %v515 = vpop.f32.mrf.mxu0
    %v516 = vadd.f32 0.0, %v515
    %517 = vmatmul.bf16.gmra.mxu0 %v459
    %v518 = vpop.f32.mrf.mxu0
    %v519 = vadd.f32 0.0, %v518
    %v520 = vpop.f32.mrf.mxu0
    %v521 = vadd.f32 0.0, %v520
    %522 = vmatmul.bf16.gmra.mxu0 %v462
    %v523 = vpop.f32.mrf.mxu0
    %v524 = vadd.f32 0.0, %v523
    %v525 = vpop.f32.mrf.mxu0
    %v526 = vadd.f32 0.0, %v525
    %527 = vmatmul.bf16.gmra.mxu0 %v465
    %v528 = vpop.f32.mrf.mxu0
    %v529 = vadd.f32 0.0, %v528
    %v530 = vpop.f32.mrf.mxu0
    %v531 = vadd.f32 0.0, %v530
    %532 = vmatmul.bf16.gmra.mxu0 %v468
    %v533 = vpop.f32.mrf.mxu0
    %v534 = vadd.f32 0.0, %v533
    %v535 = vpop.f32.mrf.mxu0
    %v536 = vadd.f32 0.0, %v535
    %537 = vmatmul.bf16.gmra.mxu0 %v471
    %v538 = vpop.f32.mrf.mxu0
    %v539 = vadd.f32 0.0, %v538
    %v540 = vpop.f32.mrf.mxu0
    %v541 = vadd.f32 0.0, %v540
    %542 = vmatmul.bf16.gmra.mxu0 %v474
    %v543 = vpop.f32.mrf.mxu0
    %v544 = vadd.f32 0.0, %v543
    %v545 = vpop.f32.mrf.mxu0
    %v546 = vadd.f32 0.0, %v545
    %547 = vmatmul.bf16.gmra.mxu0 %v477
    %v548 = vpop.f32.mrf.mxu0
    %v549 = vadd.f32 0.0, %v548
    %v550 = vpop.f32.mrf.mxu0
    %v551 = vadd.f32 0.0, %v550
    %552 = vdwg.mxu0
    %553 = vmatpush.bf16.msra.mxu0 0
    %554 = vmatpush.bf16.msra.mxu0 0
    %555 = vmatpush.bf16.msra.mxu0 0
    %556 = vmatpush.bf16.msra.mxu0 0
    %557 = vmatpush.bf16.msra.mxu0 0
    %558 = vmatpush.bf16.msra.mxu0 0
    %559 = vmatpush.bf16.msra.mxu0 0
    %560 = vmatpush.bf16.msra.mxu0 %v484
    %561 = vmatmul.bf16.gmra.mxu0 %v456
    %v562 = vpop.f32.mrf.mxu0
    %v563 = vadd.f32 0.0, %v562
    %v564 = vpop.f32.mrf.mxu0
    %v565 = vadd.f32 0.0, %v564
    %566 = vmatmul.bf16.gmra.mxu0 %v459
    %v567 = vpop.f32.mrf.mxu0
    %v568 = vadd.f32 0.0, %v567
    %v569 = vpop.f32.mrf.mxu0
    %v570 = vadd.f32 0.0, %v569
    %571 = vmatmul.bf16.gmra.mxu0 %v462
    %v572 = vpop.f32.mrf.mxu0
    %v573 = vadd.f32 0.0, %v572
    %v574 = vpop.f32.mrf.mxu0
    %v575 = vadd.f32 0.0, %v574
    %576 = vmatmul.bf16.gmra.mxu0 %v465
    %v577 = vpop.f32.mrf.mxu0
    %v578 = vadd.f32 0.0, %v577
    %v579 = vpop.f32.mrf.mxu0
    %v580 = vadd.f32 0.0, %v579
    %581 = vmatmul.bf16.gmra.mxu0 %v468
    %v582 = vpop.f32.mrf.mxu0
    %v583 = vadd.f32 0.0, %v582
    %v584 = vpop.f32.mrf.mxu0
    %v585 = vadd.f32 0.0, %v584
    %586 = vmatmul.bf16.gmra.mxu0 %v471
    %v587 = vpop.f32.mrf.mxu0
    %v588 = vadd.f32 0.0, %v587
    %v589 = vpop.f32.mrf.mxu0
    %v590 = vadd.f32 0.0, %v589
    %591 = vmatmul.bf16.gmra.mxu0 %v474
    %v592 = vpop.f32.mrf.mxu0
    %v593 = vadd.f32 0.0, %v592
    %v594 = vpop.f32.mrf.mxu0
    %v595 = vadd.f32 0.0, %v594
    %596 = vmatmul.bf16.gmra.mxu0 %v477
    %v597 = vpop.f32.mrf.mxu0
    %v598 = vadd.f32 0.0, %v597
    %v599 = vpop.f32.mrf.mxu0
    %v600 = vadd.f32 0.0, %v599
    %601 = vdwg.mxu0
    %602 = vmatpush.bf16.msra.mxu0 0
    %603 = vmatpush.bf16.msra.mxu0 0
    %604 = vmatpush.bf16.msra.mxu0 0
    %605 = vmatpush.bf16.msra.mxu0 0
    %606 = vmatpush.bf16.msra.mxu0 0
    %607 = vmatpush.bf16.msra.mxu0 0
    %608 = vmatpush.bf16.msra.mxu0 0
    %609 = vmatpush.bf16.msra.mxu0 %v487
    %610 = vmatmul.bf16.gmra.mxu0 %v456
    %v611 = vpop.f32.mrf.mxu0
    %v612 = vadd.f32 0.0, %v611
    %v613 = vpop.f32.mrf.mxu0
    %v614 = vadd.f32 0.0, %v613
    %615 = vmatmul.bf16.gmra.mxu0 %v459
    %v616 = vpop.f32.mrf.mxu0
    %v617 = vadd.f32 0.0, %v616
    %v618 = vpop.f32.mrf.mxu0
    %v619 = vadd.f32 0.0, %v618
    %620 = vmatmul.bf16.gmra.mxu0 %v462
    %v621 = vpop.f32.mrf.mxu0
    %v622 = vadd.f32 0.0, %v621
    %v623 = vpop.f32.mrf.mxu0
    %v624 = vadd.f32 0.0, %v623
    %625 = vmatmul.bf16.gmra.mxu0 %v465
    %v626 = vpop.f32.mrf.mxu0
    %v627 = vadd.f32 0.0, %v626
    %v628 = vpop.f32.mrf.mxu0
    %v629 = vadd.f32 0.0, %v628
    %630 = vmatmul.bf16.gmra.mxu0 %v468
    %v631 = vpop.f32.mrf.mxu0
    %v632 = vadd.f32 0.0, %v631
    %v633 = vpop.f32.mrf.mxu0
    %v634 = vadd.f32 0.0, %v633
    %635 = vmatmul.bf16.gmra.mxu0 %v471
    %v636 = vpop.f32.mrf.mxu0
    %v637 = vadd.f32 0.0, %v636
    %v638 = vpop.f32.mrf.mxu0
    %v639 = vadd.f32 0.0, %v638
    %640 = vmatmul.bf16.gmra.mxu0 %v474
    %v641 = vpop.f32.mrf.mxu0
    %v642 = vadd.f32 0.0, %v641
    %v643 = vpop.f32.mrf.mxu0
    %v644 = vadd.f32 0.0, %v643
    %645 = vmatmul.bf16.gmra.mxu0 %v477
    %v646 = vpop.f32.mrf.mxu0
    %v647 = vadd.f32 0.0, %v646
    %v648 = vpop.f32.mrf.mxu0
    %v649 = vadd.f32 0.0, %v648
    %650 = vdwg.mxu0
    %651 = vmatpush.bf16.msra.mxu0 0
    %652 = vmatpush.bf16.msra.mxu0 0
    %653 = vmatpush.bf16.msra.mxu0 0
    %654 = vmatpush.bf16.msra.mxu0 0
    %655 = vmatpush.bf16.msra.mxu0 0
    %656 = vmatpush.bf16.msra.mxu0 0
    %657 = vmatpush.bf16.msra.mxu0 0
    %658 = vmatpush.bf16.msra.mxu0 %v490
    %659 = vmatmul.bf16.gmra.mxu0 %v456
    %v660 = vpop.f32.mrf.mxu0
    %v661 = vadd.f32 0.0, %v660
    %v662 = vpop.f32.mrf.mxu0
    %v663 = vadd.f32 0.0, %v662
    %664 = vmatmul.bf16.gmra.mxu0 %v459
    %v665 = vpop.f32.mrf.mxu0
    %v666 = vadd.f32 0.0, %v665
    %v667 = vpop.f32.mrf.mxu0
    %v668 = vadd.f32 0.0, %v667
    %669 = vmatmul.bf16.gmra.mxu0 %v462
    %v670 = vpop.f32.mrf.mxu0
    %v671 = vadd.f32 0.0, %v670
    %v672 = vpop.f32.mrf.mxu0
    %v673 = vadd.f32 0.0, %v672
    %674 = vmatmul.bf16.gmra.mxu0 %v465
    %v675 = vpop.f32.mrf.mxu0
    %v676 = vadd.f32 0.0, %v675
    %v677 = vpop.f32.mrf.mxu0
    %v678 = vadd.f32 0.0, %v677
    %679 = vmatmul.bf16.gmra.mxu0 %v468
    %v680 = vpop.f32.mrf.mxu0
    %v681 = vadd.f32 0.0, %v680
    %v682 = vpop.f32.mrf.mxu0
    %v683 = vadd.f32 0.0, %v682
    %684 = vmatmul.bf16.gmra.mxu0 %v471
    %v685 = vpop.f32.mrf.mxu0
    %v686 = vadd.f32 0.0, %v685
    %v687 = vpop.f32.mrf.mxu0
    %v688 = vadd.f32 0.0, %v687
    %689 = vmatmul.bf16.gmra.mxu0 %v474
    %v690 = vpop.f32.mrf.mxu0
    %v691 = vadd.f32 0.0, %v690
    %v692 = vpop.f32.mrf.mxu0
    %v693 = vadd.f32 0.0, %v692
    %694 = vmatmul.bf16.gmra.mxu0 %v477
    %v695 = vpop.f32.mrf.mxu0
    %v696 = vadd.f32 0.0, %v695
    %v697 = vpop.f32.mrf.mxu0
    %v698 = vadd.f32 0.0, %v697
    %699 = vdwg.mxu0
    %700 = vmatpush.bf16.msra.mxu0 0
    %701 = vmatpush.bf16.msra.mxu0 0
    %702 = vmatpush.bf16.msra.mxu0 0
    %703 = vmatpush.bf16.msra.mxu0 0
    %704 = vmatpush.bf16.msra.mxu0 0
    %705 = vmatpush.bf16.msra.mxu0 0
    %706 = vmatpush.bf16.msra.mxu0 0
    %707 = vmatpush.bf16.msra.mxu0 %v493
    %708 = vmatmul.bf16.gmra.mxu0 %v456
    %v709 = vpop.f32.mrf.mxu0
    %v710 = vadd.f32 0.0, %v709
    %v711 = vpop.f32.mrf.mxu0
    %v712 = vadd.f32 0.0, %v711
    %713 = vmatmul.bf16.gmra.mxu0 %v459
    %v714 = vpop.f32.mrf.mxu0
    %v715 = vadd.f32 0.0, %v714
    %v716 = vpop.f32.mrf.mxu0
    %v717 = vadd.f32 0.0, %v716
    %718 = vmatmul.bf16.gmra.mxu0 %v462
    %v719 = vpop.f32.mrf.mxu0
    %v720 = vadd.f32 0.0, %v719
    %v721 = vpop.f32.mrf.mxu0
    %v722 = vadd.f32 0.0, %v721
    %723 = vmatmul.bf16.gmra.mxu0 %v465
    %v724 = vpop.f32.mrf.mxu0
    %v725 = vadd.f32 0.0, %v724
    %v726 = vpop.f32.mrf.mxu0
    %v727 = vadd.f32 0.0, %v726
    %728 = vmatmul.bf16.gmra.mxu0 %v468
    %v729 = vpop.f32.mrf.mxu0
    %v730 = vadd.f32 0.0, %v729
    %v731 = vpop.f32.mrf.mxu0
    %v732 = vadd.f32 0.0, %v731
    %733 = vmatmul.bf16.gmra.mxu0 %v471
    %v734 = vpop.f32.mrf.mxu0
    %v735 = vadd.f32 0.0, %v734
    %v736 = vpop.f32.mrf.mxu0
    %v737 = vadd.f32 0.0, %v736
    %738 = vmatmul.bf16.gmra.mxu0 %v474
    %v739 = vpop.f32.mrf.mxu0
    %v740 = vadd.f32 0.0, %v739
    %v741 = vpop.f32.mrf.mxu0
    %v742 = vadd.f32 0.0, %v741
    %743 = vmatmul.bf16.gmra.mxu0 %v477
    %v744 = vpop.f32.mrf.mxu0
    %v745 = vadd.f32 0.0, %v744
    %v746 = vpop.f32.mrf.mxu0
    %v747 = vadd.f32 0.0, %v746
    %748 = vdwg.mxu0
    %749 = vmatpush.bf16.msra.mxu0 0
    %750 = vmatpush.bf16.msra.mxu0 0
    %751 = vmatpush.bf16.msra.mxu0 0
    %752 = vmatpush.bf16.msra.mxu0 0
    %753 = vmatpush.bf16.msra.mxu0 0
    %754 = vmatpush.bf16.msra.mxu0 0
    %755 = vmatpush.bf16.msra.mxu0 0
    %756 = vmatpush.bf16.msra.mxu0 %v496
    %757 = vmatmul.bf16.gmra.mxu0 %v456
    %v758 = vpop.f32.mrf.mxu0
    %v759 = vadd.f32 0.0, %v758
    %v760 = vpop.f32.mrf.mxu0
    %v761 = vadd.f32 0.0, %v760
    %762 = vmatmul.bf16.gmra.mxu0 %v459
    %v763 = vpop.f32.mrf.mxu0
    %v764 = vadd.f32 0.0, %v763
    %v765 = vpop.f32.mrf.mxu0
    %v766 = vadd.f32 0.0, %v765
    %767 = vmatmul.bf16.gmra.mxu0 %v462
    %v768 = vpop.f32.mrf.mxu0
    %v769 = vadd.f32 0.0, %v768
    %v770 = vpop.f32.mrf.mxu0
    %v771 = vadd.f32 0.0, %v770
    %772 = vmatmul.bf16.gmra.mxu0 %v465
    %v773 = vpop.f32.mrf.mxu0
    %v774 = vadd.f32 0.0, %v773
    %v775 = vpop.f32.mrf.mxu0
    %v776 = vadd.f32 0.0, %v775
    %777 = vmatmul.bf16.gmra.mxu0 %v468
    %v778 = vpop.f32.mrf.mxu0
    %v779 = vadd.f32 0.0, %v778
    %v780 = vpop.f32.mrf.mxu0
    %v781 = vadd.f32 0.0, %v780
    %782 = vmatmul.bf16.gmra.mxu0 %v471
    %v783 = vpop.f32.mrf.mxu0
    %v784 = vadd.f32 0.0, %v783
    %v785 = vpop.f32.mrf.mxu0
    %v786 = vadd.f32 0.0, %v785
    %787 = vmatmul.bf16.gmra.mxu0 %v474
    %v788 = vpop.f32.mrf.mxu0
    %v789 = vadd.f32 0.0, %v788
    %v790 = vpop.f32.mrf.mxu0
    %v791 = vadd.f32 0.0, %v790
    %792 = vmatmul.bf16.gmra.mxu0 %v477
    %v793 = vpop.f32.mrf.mxu0
    %v794 = vadd.f32 0.0, %v793
    %v795 = vpop.f32.mrf.mxu0
    %v796 = vadd.f32 0.0, %v795
    %797 = vdwg.mxu0
    %798 = vmatpush.bf16.msra.mxu0 0
    %799 = vmatpush.bf16.msra.mxu0 0
    %800 = vmatpush.bf16.msra.mxu0 0
    %801 = vmatpush.bf16.msra.mxu0 0
    %802 = vmatpush.bf16.msra.mxu0 0
    %803 = vmatpush.bf16.msra.mxu0 0
    %804 = vmatpush.bf16.msra.mxu0 0
    %805 = vmatpush.bf16.msra.mxu0 %v499
    %806 = vmatmul.bf16.gmra.mxu0 %v456
    %v807 = vpop.f32.mrf.mxu0
    %v808 = vadd.f32 0.0, %v807
    %v809 = vpop.f32.mrf.mxu0
    %v810 = vadd.f32 0.0, %v809
    %811 = vmatmul.bf16.gmra.mxu0 %v459
    %v812 = vpop.f32.mrf.mxu0
    %v813 = vadd.f32 0.0, %v812
    %v814 = vpop.f32.mrf.mxu0
    %v815 = vadd.f32 0.0, %v814
    %816 = vmatmul.bf16.gmra.mxu0 %v462
    %v817 = vpop.f32.mrf.mxu0
    %v818 = vadd.f32 0.0, %v817
    %v819 = vpop.f32.mrf.mxu0
    %v820 = vadd.f32 0.0, %v819
    %821 = vmatmul.bf16.gmra.mxu0 %v465
    %v822 = vpop.f32.mrf.mxu0
    %v823 = vadd.f32 0.0, %v822
    %v824 = vpop.f32.mrf.mxu0
    %v825 = vadd.f32 0.0, %v824
    %826 = vmatmul.bf16.gmra.mxu0 %v468
    %v827 = vpop.f32.mrf.mxu0
    %v828 = vadd.f32 0.0, %v827
    %v829 = vpop.f32.mrf.mxu0
    %v830 = vadd.f32 0.0, %v829
    %831 = vmatmul.bf16.gmra.mxu0 %v471
    %v832 = vpop.f32.mrf.mxu0
    %v833 = vadd.f32 0.0, %v832
    %v834 = vpop.f32.mrf.mxu0
    %v835 = vadd.f32 0.0, %v834
    %836 = vmatmul.bf16.gmra.mxu0 %v474
    %v837 = vpop.f32.mrf.mxu0
    %v838 = vadd.f32 0.0, %v837
    %v839 = vpop.f32.mrf.mxu0
    %v840 = vadd.f32 0.0, %v839
    %841 = vmatmul.bf16.gmra.mxu0 %v477
    %v842 = vpop.f32.mrf.mxu0
    %v843 = vadd.f32 0.0, %v842
    %v844 = vpop.f32.mrf.mxu0
    %v845 = vadd.f32 0.0, %v844
    %846 = vdwg.mxu0
    %847 = vmatpush.bf16.msra.mxu0 0
    %848 = vmatpush.bf16.msra.mxu0 0
    %849 = vmatpush.bf16.msra.mxu0 0
    %850 = vmatpush.bf16.msra.mxu0 0
    %851 = vmatpush.bf16.msra.mxu0 0
    %852 = vmatpush.bf16.msra.mxu0 0
    %853 = vmatpush.bf16.msra.mxu0 0
    %854 = vmatpush.bf16.msra.mxu0 %v502
    %855 = vmatmul.bf16.gmra.mxu0 %v456
    %v856 = vpop.f32.mrf.mxu0
    %v857 = vadd.f32 0.0, %v856
    %v858 = vpop.f32.mrf.mxu0
    %v859 = vadd.f32 0.0, %v858
    %860 = vmatmul.bf16.gmra.mxu0 %v459
    %v861 = vpop.f32.mrf.mxu0
    %v862 = vadd.f32 0.0, %v861
    %v863 = vpop.f32.mrf.mxu0
    %v864 = vadd.f32 0.0, %v863
    %865 = vmatmul.bf16.gmra.mxu0 %v462
    %v866 = vpop.f32.mrf.mxu0
    %v867 = vadd.f32 0.0, %v866
    %v868 = vpop.f32.mrf.mxu0
    %v869 = vadd.f32 0.0, %v868
    %870 = vmatmul.bf16.gmra.mxu0 %v465
    %v871 = vpop.f32.mrf.mxu0
    %v872 = vadd.f32 0.0, %v871
    %v873 = vpop.f32.mrf.mxu0
    %v874 = vadd.f32 0.0, %v873
    %875 = vmatmul.bf16.gmra.mxu0 %v468
    %v876 = vpop.f32.mrf.mxu0
    %v877 = vadd.f32 0.0, %v876
    %v878 = vpop.f32.mrf.mxu0
    %v879 = vadd.f32 0.0, %v878
    %880 = vmatmul.bf16.gmra.mxu0 %v471
    %v881 = vpop.f32.mrf.mxu0
    %v882 = vadd.f32 0.0, %v881
    %v883 = vpop.f32.mrf.mxu0
    %v884 = vadd.f32 0.0, %v883
    %885 = vmatmul.bf16.gmra.mxu0 %v474
    %v886 = vpop.f32.mrf.mxu0
    %v887 = vadd.f32 0.0, %v886
    %v888 = vpop.f32.mrf.mxu0
    %v889 = vadd.f32 0.0, %v888
    %890 = vmatmul.bf16.gmra.mxu0 %v477
    %v891 = vpop.f32.mrf.mxu0
    %v892 = vadd.f32 0.0, %v891
    %v893 = vpop.f32.mrf.mxu0
    %v894 = vadd.f32 0.0, %v893
    %895 = vdwg.mxu0
    %v896 = vrot.slane %v403, 4
    %v897 = vadd.f32 %v403, %v896
    %v898 = vrot.slane %v897, 2
    %v899 = vadd.f32 %v897, %v898
    %v900 = vrot.slane %v899, 1
    %v901 = vadd.f32 %v899, %v900
    %v902 = vmul.f32 %v514, %v514
    %v903 = vmul.f32 %v563, %v563
    %v904 = vmul.f32 %v612, %v612
    %v905 = vmul.f32 %v661, %v661
    %v906 = vmul.f32 %v710, %v710
    %v907 = vmul.f32 %v759, %v759
    %v908 = vmul.f32 %v808, %v808
    %v909 = vmul.f32 %v857, %v857
    %v910 = vmul.f32 %v516, %v516
    %v911 = vmul.f32 %v565, %v565
    %v912 = vmul.f32 %v614, %v614
    %v913 = vmul.f32 %v663, %v663
    %v914 = vmul.f32 %v712, %v712
    %v915 = vmul.f32 %v761, %v761
    %v916 = vmul.f32 %v810, %v810
    %v917 = vmul.f32 %v859, %v859
    %v918 = vmul.f32 %v519, %v519
    %v919 = vmul.f32 %v568, %v568
    %v920 = vmul.f32 %v617, %v617
    %v921 = vmul.f32 %v666, %v666
    %v922 = vmul.f32 %v715, %v715
    %v923 = vmul.f32 %v764, %v764
    %v924 = vmul.f32 %v813, %v813
    %v925 = vmul.f32 %v862, %v862
    %v926 = vmul.f32 %v521, %v521
    %v927 = vmul.f32 %v570, %v570
    %v928 = vmul.f32 %v619, %v619
    %v929 = vmul.f32 %v668, %v668
    %v930 = vmul.f32 %v717, %v717
    %v931 = vmul.f32 %v766, %v766
    %v932 = vmul.f32 %v815, %v815
    %v933 = vmul.f32 %v864, %v864
    %v934 = vmul.f32 %v524, %v524
    %v935 = vmul.f32 %v573, %v573
    %v936 = vmul.f32 %v622, %v622
    %v937 = vmul.f32 %v671, %v671
    %v938 = vmul.f32 %v720, %v720
    %v939 = vmul.f32 %v769, %v769
    %v940 = vmul.f32 %v818, %v818
    %v941 = vmul.f32 %v867, %v867
    %v942 = vmul.f32 %v526, %v526
    %v943 = vmul.f32 %v575, %v575
    %v944 = vmul.f32 %v624, %v624
    %v945 = vmul.f32 %v673, %v673
    %v946 = vmul.f32 %v722, %v722
    %v947 = vmul.f32 %v771, %v771
    %v948 = vmul.f32 %v820, %v820
    %v949 = vmul.f32 %v869, %v869
    %v950 = vmul.f32 %v529, %v529
    %v951 = vmul.f32 %v578, %v578
    %v952 = vmul.f32 %v627, %v627
    %v953 = vmul.f32 %v676, %v676
    %v954 = vmul.f32 %v725, %v725
    %v955 = vmul.f32 %v774, %v774
    %v956 = vmul.f32 %v823, %v823
    %v957 = vmul.f32 %v872, %v872
    %v958 = vmul.f32 %v531, %v531
    %v959 = vmul.f32 %v580, %v580
    %v960 = vmul.f32 %v629, %v629
    %v961 = vmul.f32 %v678, %v678
    %v962 = vmul.f32 %v727, %v727
    %v963 = vmul.f32 %v776, %v776
    %v964 = vmul.f32 %v825, %v825
    %v965 = vmul.f32 %v874, %v874
    %v966 = vmul.f32 %v534, %v534
    %v967 = vmul.f32 %v583, %v583
    %v968 = vmul.f32 %v632, %v632
    %v969 = vmul.f32 %v681, %v681
    %v970 = vmul.f32 %v730, %v730
    %v971 = vmul.f32 %v779, %v779
    %v972 = vmul.f32 %v828, %v828
    %v973 = vmul.f32 %v877, %v877
    %v974 = vmul.f32 %v536, %v536
    %v975 = vmul.f32 %v585, %v585
    %v976 = vmul.f32 %v634, %v634
    %v977 = vmul.f32 %v683, %v683
    %v978 = vmul.f32 %v732, %v732
    %v979 = vmul.f32 %v781, %v781
    %v980 = vmul.f32 %v830, %v830
    %v981 = vmul.f32 %v879, %v879
    %v982 = vmul.f32 %v539, %v539
    %v983 = vmul.f32 %v588, %v588
    %v984 = vmul.f32 %v637, %v637
    %v985 = vmul.f32 %v686, %v686
    %v986 = vmul.f32 %v735, %v735
    %v987 = vmul.f32 %v784, %v784
    %v988 = vmul.f32 %v833, %v833
    %v989 = vmul.f32 %v882, %v882
    %v990 = vmul.f32 %v541, %v541
    %v991 = vmul.f32 %v590, %v590
    %v992 = vmul.f32 %v639, %v639
    %v993 = vmul.f32 %v688, %v688
    %v994 = vmul.f32 %v737, %v737
    %v995 = vmul.f32 %v786, %v786
    %v996 = vmul.f32 %v835, %v835
    %v997 = vmul.f32 %v884, %v884
    %v998 = vmul.f32 %v544, %v544
    %v999 = vmul.f32 %v593, %v593
    %v1000 = vmul.f32 %v642, %v642
    %v1001 = vmul.f32 %v691, %v691
    %v1002 = vmul.f32 %v740, %v740
    %v1003 = vmul.f32 %v789, %v789
    %v1004 = vmul.f32 %v838, %v838
    %v1005 = vmul.f32 %v887, %v887
    %v1006 = vmul.f32 %v546, %v546
    %v1007 = vmul.f32 %v595, %v595
    %v1008 = vmul.f32 %v644, %v644
    %v1009 = vmul.f32 %v693, %v693
    %v1010 = vmul.f32 %v742, %v742
    %v1011 = vmul.f32 %v791, %v791
    %v1012 = vmul.f32 %v840, %v840
    %v1013 = vmul.f32 %v889, %v889
    %v1014 = vmul.f32 %v549, %v549
    %v1015 = vmul.f32 %v598, %v598
    %v1016 = vmul.f32 %v647, %v647
    %v1017 = vmul.f32 %v696, %v696
    %v1018 = vmul.f32 %v745, %v745
    %v1019 = vmul.f32 %v794, %v794
    %v1020 = vmul.f32 %v843, %v843
    %v1021 = vmul.f32 %v892, %v892
    %v1022 = vmul.f32 %v551, %v551
    %v1023 = vmul.f32 %v600, %v600
    %v1024 = vmul.f32 %v649, %v649
    %v1025 = vmul.f32 %v698, %v698
    %v1026 = vmul.f32 %v747, %v747
    %v1027 = vmul.f32 %v796, %v796
    %v1028 = vmul.f32 %v845, %v845
    %v1029 = vmul.f32 %v894, %v894
    %v1030 = vadd.f32 %v902, %v903
    %v1031 = vadd.f32 %v1030, %v904
    %v1032 = vadd.f32 %v1031, %v905
    %v1033 = vadd.f32 %v1032, %v906
    %v1034 = vadd.f32 %v1033, %v907
    %v1035 = vadd.f32 %v1034, %v908
    %v1036 = vadd.f32 %v1035, %v909
    %1037 = vadd.xlane.f32.xlu0 %v1036
    %v1038 = vpop.xlane.xlu0 %1037
    %v1039 = vadd.f32 %v910, %v911
    %v1040 = vadd.f32 %v1039, %v912
    %v1041 = vadd.f32 %v1040, %v913
    %v1042 = vadd.f32 %v1041, %v914
    %v1043 = vadd.f32 %v1042, %v915
    %v1044 = vadd.f32 %v1043, %v916
    %v1045 = vadd.f32 %v1044, %v917
    %1046 = vadd.xlane.f32.xlu0 %v1045
    %v1047 = vpop.xlane.xlu0 %1046
    %v1048 = vadd.f32 %v918, %v919
    %v1049 = vadd.f32 %v1048, %v920
    %v1050 = vadd.f32 %v1049, %v921
    %v1051 = vadd.f32 %v1050, %v922
    %v1052 = vadd.f32 %v1051, %v923
    %v1053 = vadd.f32 %v1052, %v924
    %v1054 = vadd.f32 %v1053, %v925
    %1055 = vadd.xlane.f32.xlu0 %v1054
    %v1056 = vpop.xlane.xlu0 %1055
    %v1057 = vadd.f32 %v926, %v927
    %v1058 = vadd.f32 %v1057, %v928
    %v1059 = vadd.f32 %v1058, %v929
    %v1060 = vadd.f32 %v1059, %v930
    %v1061 = vadd.f32 %v1060, %v931
    %v1062 = vadd.f32 %v1061, %v932
    %v1063 = vadd.f32 %v1062, %v933
    %1064 = vadd.xlane.f32.xlu0 %v1063
    %v1065 = vpop.xlane.xlu0 %1064
    %v1066 = vadd.f32 %v934, %v935
    %v1067 = vadd.f32 %v1066, %v936
    %v1068 = vadd.f32 %v1067, %v937
    %v1069 = vadd.f32 %v1068, %v938
    %v1070 = vadd.f32 %v1069, %v939
    %v1071 = vadd.f32 %v1070, %v940
    %v1072 = vadd.f32 %v1071, %v941
    %1073 = vadd.xlane.f32.xlu0 %v1072
    %v1074 = vpop.xlane.xlu0 %1073
    %v1075 = vadd.f32 %v942, %v943
    %v1076 = vadd.f32 %v1075, %v944
    %v1077 = vadd.f32 %v1076, %v945
    %v1078 = vadd.f32 %v1077, %v946
    %v1079 = vadd.f32 %v1078, %v947
    %v1080 = vadd.f32 %v1079, %v948
    %v1081 = vadd.f32 %v1080, %v949
    %1082 = vadd.xlane.f32.xlu0 %v1081
    %v1083 = vpop.xlane.xlu0 %1082
    %v1084 = vadd.f32 %v950, %v951
    %v1085 = vadd.f32 %v1084, %v952
    %v1086 = vadd.f32 %v1085, %v953
    %v1087 = vadd.f32 %v1086, %v954
    %v1088 = vadd.f32 %v1087, %v955
    %v1089 = vadd.f32 %v1088, %v956
    %v1090 = vadd.f32 %v1089, %v957
    %1091 = vadd.xlane.f32.xlu0 %v1090
    %v1092 = vpop.xlane.xlu0 %1091
    %v1093 = vadd.f32 %v958, %v959
    %v1094 = vadd.f32 %v1093, %v960
    %v1095 = vadd.f32 %v1094, %v961
    %v1096 = vadd.f32 %v1095, %v962
    %v1097 = vadd.f32 %v1096, %v963
    %v1098 = vadd.f32 %v1097, %v964
    %v1099 = vadd.f32 %v1098, %v965
    %1100 = vadd.xlane.f32.xlu0 %v1099
    %v1101 = vpop.xlane.xlu0 %1100
    %v1102 = vadd.f32 %v966, %v967
    %v1103 = vadd.f32 %v1102, %v968
    %v1104 = vadd.f32 %v1103, %v969
    %v1105 = vadd.f32 %v1104, %v970
    %v1106 = vadd.f32 %v1105, %v971
    %v1107 = vadd.f32 %v1106, %v972
    %v1108 = vadd.f32 %v1107, %v973
    %1109 = vadd.xlane.f32.xlu0 %v1108
    %v1110 = vpop.xlane.xlu0 %1109
    %v1111 = vadd.f32 %v974, %v975
    %v1112 = vadd.f32 %v1111, %v976
    %v1113 = vadd.f32 %v1112, %v977
    %v1114 = vadd.f32 %v1113, %v978
    %v1115 = vadd.f32 %v1114, %v979
    %v1116 = vadd.f32 %v1115, %v980
    %v1117 = vadd.f32 %v1116, %v981
    %1118 = vadd.xlane.f32.xlu0 %v1117
    %v1119 = vpop.xlane.xlu0 %1118
    %v1120 = vadd.f32 %v982, %v983
    %v1121 = vadd.f32 %v1120, %v984
    %v1122 = vadd.f32 %v1121, %v985
    %v1123 = vadd.f32 %v1122, %v986
    %v1124 = vadd.f32 %v1123, %v987
    %v1125 = vadd.f32 %v1124, %v988
    %v1126 = vadd.f32 %v1125, %v989
    %1127 = vadd.xlane.f32.xlu0 %v1126
    %v1128 = vpop.xlane.xlu0 %1127
    %v1129 = vadd.f32 %v990, %v991
    %v1130 = vadd.f32 %v1129, %v992
    %v1131 = vadd.f32 %v1130, %v993
    %v1132 = vadd.f32 %v1131, %v994
    %v1133 = vadd.f32 %v1132, %v995
    %v1134 = vadd.f32 %v1133, %v996
    %v1135 = vadd.f32 %v1134, %v997
    %1136 = vadd.xlane.f32.xlu0 %v1135
    %v1137 = vpop.xlane.xlu0 %1136
    %v1138 = vadd.f32 %v998, %v999
    %v1139 = vadd.f32 %v1138, %v1000
    %v1140 = vadd.f32 %v1139, %v1001
    %v1141 = vadd.f32 %v1140, %v1002
    %v1142 = vadd.f32 %v1141, %v1003
    %v1143 = vadd.f32 %v1142, %v1004
    %v1144 = vadd.f32 %v1143, %v1005
    %1145 = vadd.xlane.f32.xlu0 %v1144
    %v1146 = vpop.xlane.xlu0 %1145
    %v1147 = vadd.f32 %v1006, %v1007
    %v1148 = vadd.f32 %v1147, %v1008
    %v1149 = vadd.f32 %v1148, %v1009
    %v1150 = vadd.f32 %v1149, %v1010
    %v1151 = vadd.f32 %v1150, %v1011
    %v1152 = vadd.f32 %v1151, %v1012
    %v1153 = vadd.f32 %v1152, %v1013
    %1154 = vadd.xlane.f32.xlu0 %v1153
    %v1155 = vpop.xlane.xlu0 %1154
    %v1156 = vadd.f32 %v1014, %v1015
    %v1157 = vadd.f32 %v1156, %v1016
    %v1158 = vadd.f32 %v1157, %v1017
    %v1159 = vadd.f32 %v1158, %v1018
    %v1160 = vadd.f32 %v1159, %v1019
    %v1161 = vadd.f32 %v1160, %v1020
    %v1162 = vadd.f32 %v1161, %v1021
    %1163 = vadd.xlane.f32.xlu0 %v1162
    %v1164 = vpop.xlane.xlu0 %1163
    %v1165 = vadd.f32 %v1022, %v1023
    %v1166 = vadd.f32 %v1165, %v1024
    %v1167 = vadd.f32 %v1166, %v1025
    %v1168 = vadd.f32 %v1167, %v1026
    %v1169 = vadd.f32 %v1168, %v1027
    %v1170 = vadd.f32 %v1169, %v1028
    %v1171 = vadd.f32 %v1170, %v1029
    %1172 = vadd.xlane.f32.xlu0 %v1171
    %v1173 = vpop.xlane.xlu0 %1172
    %v1174 = vadd.f32 %v1038, %v1047
    %v1175 = vadd.f32 %v1174, %v1056
    %v1176 = vadd.f32 %v1175, %v1065
    %v1177 = vadd.f32 %v1176, %v1074
    %v1178 = vadd.f32 %v1177, %v1083
    %v1179 = vadd.f32 %v1178, %v1092
    %v1180 = vadd.f32 %v1179, %v1101
    %v1181 = vadd.f32 %v1180, %v1110
    %v1182 = vadd.f32 %v1181, %v1119
    %v1183 = vadd.f32 %v1182, %v1128
    %v1184 = vadd.f32 %v1183, %v1137
    %v1185 = vadd.f32 %v1184, %v1146
    %v1186 = vadd.f32 %v1185, %v1155
    %v1187 = vadd.f32 %v1186, %v1164
    %v1188 = vadd.f32 %v1187, %v1173
    %v1189 = vrot.slane %v1188, 4
    %v1190 = vadd.f32 %v1188, %v1189
    %v1191 = vrot.slane %v1190, 2
    %v1192 = vadd.f32 %v1190, %v1191
    %v1193 = vrot.slane %v1192, 1
    %v1194 = vadd.f32 %v1192, %v1193
    %v1195 = vmul.f32 %v901, %v901
    %1196 = vadd.xlane.f32.xlu0 %v1195
    %v1197 = vpop.xlane.xlu0 %1196
    %v1198 = vpack.c.bf16 %v418, %v418
    %v1199 = vpack.c.bf16 %v420, %v420
    %1200 = vxpose.xlu0.c.b16.start [1/8] %v1199, 128
    %1201 = vxpose.xlu0.c.b16.cont [2/8] 0, 128
    %1202 = vxpose.xlu0.c.b16.cont [3/8] 0, 128
    %1203 = vxpose.xlu0.c.b16.cont [4/8] 0, 128
    %1204 = vxpose.xlu0.c.b16.cont [5/8] 0, 128
    %1205 = vxpose.xlu0.c.b16.cont [6/8] 0, 128
    %1206 = vxpose.xlu0.c.b16.cont [7/8] 0, 128
    %1207 = vxpose.xlu0.c.b16.end [8/8] 0, 128
    %v1208 = vpop.trf.xlu0
    %v1209 = vpop.trf.xlu0
    %v1210 = vpop.trf.xlu0
    %v1211 = vpop.trf.xlu0
    %v1212 = vpop.trf.xlu0
    %v1213 = vpop.trf.xlu0
    %v1214 = vpop.trf.xlu0
    %v1215 = vpop.trf.xlu0
    %v1217 = vsel %vm454, %v1208, 0
    %v1220 = vsel %vm454, %v1209, 0
    %v1223 = vsel %vm454, %v1210, 0
    %v1226 = vsel %vm454, %v1211, 0
    %v1229 = vsel %vm454, %v1212, 0
    %v1232 = vsel %vm454, %v1213, 0
    %v1235 = vsel %vm454, %v1214, 0
    %v1238 = vsel %vm454, %v1215, 0
    %v1241 = vsel %vm479, %v429, 0
    %v1244 = vsel %vm479, %v430, 0
    %v1247 = vsel %vm479, %v431, 0
    %v1250 = vsel %vm479, %v432, 0
    %v1253 = vsel %vm479, %v433, 0
    %v1256 = vsel %vm479, %v434, 0
    %v1259 = vsel %vm479, %v435, 0
    %v1262 = vsel %vm479, %v436, 0
    %1264 = vmatpush.bf16.msra.mxu0 0
    %1265 = vmatpush.bf16.msra.mxu0 0
    %1266 = vmatpush.bf16.msra.mxu0 0
    %1267 = vmatpush.bf16.msra.mxu0 0
    %1268 = vmatpush.bf16.msra.mxu0 0
    %1269 = vmatpush.bf16.msra.mxu0 0
    %1270 = vmatpush.bf16.msra.mxu0 0
    %1271 = vmatpush.bf16.msra.mxu0 %v1241
    %1272 = vmatmul.bf16.gmra.mxu0 %v1217
    %v1273 = vpop.f32.mrf.mxu0
    %v1274 = vadd.f32 0.0, %v1273
    %v1275 = vpop.f32.mrf.mxu0
    %v1276 = vadd.f32 0.0, %v1275
    %1277 = vmatmul.bf16.gmra.mxu0 %v1220
    %v1278 = vpop.f32.mrf.mxu0
    %v1279 = vadd.f32 0.0, %v1278
    %v1280 = vpop.f32.mrf.mxu0
    %v1281 = vadd.f32 0.0, %v1280
    %1282 = vmatmul.bf16.gmra.mxu0 %v1223
    %v1283 = vpop.f32.mrf.mxu0
    %v1284 = vadd.f32 0.0, %v1283
    %v1285 = vpop.f32.mrf.mxu0
    %v1286 = vadd.f32 0.0, %v1285
    %1287 = vmatmul.bf16.gmra.mxu0 %v1226
    %v1288 = vpop.f32.mrf.mxu0
    %v1289 = vadd.f32 0.0, %v1288
    %v1290 = vpop.f32.mrf.mxu0
    %v1291 = vadd.f32 0.0, %v1290
    %1292 = vmatmul.bf16.gmra.mxu0 %v1229
    %v1293 = vpop.f32.mrf.mxu0
    %v1294 = vadd.f32 0.0, %v1293
    %v1295 = vpop.f32.mrf.mxu0
    %v1296 = vadd.f32 0.0, %v1295
    %1297 = vmatmul.bf16.gmra.mxu0 %v1232
    %v1298 = vpop.f32.mrf.mxu0
    %v1299 = vadd.f32 0.0, %v1298
    %v1300 = vpop.f32.mrf.mxu0
    %v1301 = vadd.f32 0.0, %v1300
    %1302 = vmatmul.bf16.gmra.mxu0 %v1235
    %v1303 = vpop.f32.mrf.mxu0
    %v1304 = vadd.f32 0.0, %v1303
    %v1305 = vpop.f32.mrf.mxu0
    %v1306 = vadd.f32 0.0, %v1305
    %1307 = vmatmul.bf16.gmra.mxu0 %v1238
    %v1308 = vpop.f32.mrf.mxu0
    %v1309 = vadd.f32 0.0, %v1308
    %v1310 = vpop.f32.mrf.mxu0
    %v1311 = vadd.f32 0.0, %v1310
    %1312 = vdwg.mxu0
    %1313 = vmatpush.bf16.msra.mxu0 0
    %1314 = vmatpush.bf16.msra.mxu0 0
    %1315 = vmatpush.bf16.msra.mxu0 0
    %1316 = vmatpush.bf16.msra.mxu0 0
    %1317 = vmatpush.bf16.msra.mxu0 0
    %1318 = vmatpush.bf16.msra.mxu0 0
    %1319 = vmatpush.bf16.msra.mxu0 0
    %1320 = vmatpush.bf16.msra.mxu0 %v1244
    %1321 = vmatmul.bf16.gmra.mxu0 %v1217
    %v1322 = vpop.f32.mrf.mxu0
    %v1323 = vadd.f32 0.0, %v1322
    %v1324 = vpop.f32.mrf.mxu0
    %v1325 = vadd.f32 0.0, %v1324
    %1326 = vmatmul.bf16.gmra.mxu0 %v1220
    %v1327 = vpop.f32.mrf.mxu0
    %v1328 = vadd.f32 0.0, %v1327
    %v1329 = vpop.f32.mrf.mxu0
    %v1330 = vadd.f32 0.0, %v1329
    %1331 = vmatmul.bf16.gmra.mxu0 %v1223
    %v1332 = vpop.f32.mrf.mxu0
    %v1333 = vadd.f32 0.0, %v1332
    %v1334 = vpop.f32.mrf.mxu0
    %v1335 = vadd.f32 0.0, %v1334
    %1336 = vmatmul.bf16.gmra.mxu0 %v1226
    %v1337 = vpop.f32.mrf.mxu0
    %v1338 = vadd.f32 0.0, %v1337
    %v1339 = vpop.f32.mrf.mxu0
    %v1340 = vadd.f32 0.0, %v1339
    %1341 = vmatmul.bf16.gmra.mxu0 %v1229
    %v1342 = vpop.f32.mrf.mxu0
    %v1343 = vadd.f32 0.0, %v1342
    %v1344 = vpop.f32.mrf.mxu0
    %v1345 = vadd.f32 0.0, %v1344
    %1346 = vmatmul.bf16.gmra.mxu0 %v1232
    %v1347 = vpop.f32.mrf.mxu0
    %v1348 = vadd.f32 0.0, %v1347
    %v1349 = vpop.f32.mrf.mxu0
    %v1350 = vadd.f32 0.0, %v1349
    %1351 = vmatmul.bf16.gmra.mxu0 %v1235
    %v1352 = vpop.f32.mrf.mxu0
    %v1353 = vadd.f32 0.0, %v1352
    %v1354 = vpop.f32.mrf.mxu0
    %v1355 = vadd.f32 0.0, %v1354
    %1356 = vmatmul.bf16.gmra.mxu0 %v1238
    %v1357 = vpop.f32.mrf.mxu0
    %v1358 = vadd.f32 0.0, %v1357
    %v1359 = vpop.f32.mrf.mxu0
    %v1360 = vadd.f32 0.0, %v1359
    %1361 = vdwg.mxu0
    %1362 = vmatpush.bf16.msra.mxu0 0
    %1363 = vmatpush.bf16.msra.mxu0 0
    %1364 = vmatpush.bf16.msra.mxu0 0
    %1365 = vmatpush.bf16.msra.mxu0 0
    %1366 = vmatpush.bf16.msra.mxu0 0
    %1367 = vmatpush.bf16.msra.mxu0 0
    %1368 = vmatpush.bf16.msra.mxu0 0
    %1369 = vmatpush.bf16.msra.mxu0 %v1247
    %1370 = vmatmul.bf16.gmra.mxu0 %v1217
    %v1371 = vpop.f32.mrf.mxu0
    %v1372 = vadd.f32 0.0, %v1371
    %v1373 = vpop.f32.mrf.mxu0
    %v1374 = vadd.f32 0.0, %v1373
    %1375 = vmatmul.bf16.gmra.mxu0 %v1220
    %v1376 = vpop.f32.mrf.mxu0
    %v1377 = vadd.f32 0.0, %v1376
    %v1378 = vpop.f32.mrf.mxu0
    %v1379 = vadd.f32 0.0, %v1378
    %1380 = vmatmul.bf16.gmra.mxu0 %v1223
    %v1381 = vpop.f32.mrf.mxu0
    %v1382 = vadd.f32 0.0, %v1381
    %v1383 = vpop.f32.mrf.mxu0
    %v1384 = vadd.f32 0.0, %v1383
    %1385 = vmatmul.bf16.gmra.mxu0 %v1226
    %v1386 = vpop.f32.mrf.mxu0
    %v1387 = vadd.f32 0.0, %v1386
    %v1388 = vpop.f32.mrf.mxu0
    %v1389 = vadd.f32 0.0, %v1388
    %1390 = vmatmul.bf16.gmra.mxu0 %v1229
    %v1391 = vpop.f32.mrf.mxu0
    %v1392 = vadd.f32 0.0, %v1391
    %v1393 = vpop.f32.mrf.mxu0
    %v1394 = vadd.f32 0.0, %v1393
    %1395 = vmatmul.bf16.gmra.mxu0 %v1232
    %v1396 = vpop.f32.mrf.mxu0
    %v1397 = vadd.f32 0.0, %v1396
    %v1398 = vpop.f32.mrf.mxu0
    %v1399 = vadd.f32 0.0, %v1398
    %1400 = vmatmul.bf16.gmra.mxu0 %v1235
    %v1401 = vpop.f32.mrf.mxu0
    %v1402 = vadd.f32 0.0, %v1401
    %v1403 = vpop.f32.mrf.mxu0
    %v1404 = vadd.f32 0.0, %v1403
    %1405 = vmatmul.bf16.gmra.mxu0 %v1238
    %v1406 = vpop.f32.mrf.mxu0
    %v1407 = vadd.f32 0.0, %v1406
    %v1408 = vpop.f32.mrf.mxu0
    %v1409 = vadd.f32 0.0, %v1408
    %1410 = vdwg.mxu0
    %1411 = vmatpush.bf16.msra.mxu0 0
    %1412 = vmatpush.bf16.msra.mxu0 0
    %1413 = vmatpush.bf16.msra.mxu0 0
    %1414 = vmatpush.bf16.msra.mxu0 0
    %1415 = vmatpush.bf16.msra.mxu0 0
    %1416 = vmatpush.bf16.msra.mxu0 0
    %1417 = vmatpush.bf16.msra.mxu0 0
    %1418 = vmatpush.bf16.msra.mxu0 %v1250
    %1419 = vmatmul.bf16.gmra.mxu0 %v1217
    %v1420 = vpop.f32.mrf.mxu0
    %v1421 = vadd.f32 0.0, %v1420
    %v1422 = vpop.f32.mrf.mxu0
    %v1423 = vadd.f32 0.0, %v1422
    %1424 = vmatmul.bf16.gmra.mxu0 %v1220
    %v1425 = vpop.f32.mrf.mxu0
    %v1426 = vadd.f32 0.0, %v1425
    %v1427 = vpop.f32.mrf.mxu0
    %v1428 = vadd.f32 0.0, %v1427
    %1429 = vmatmul.bf16.gmra.mxu0 %v1223
    %v1430 = vpop.f32.mrf.mxu0
    %v1431 = vadd.f32 0.0, %v1430
    %v1432 = vpop.f32.mrf.mxu0
    %v1433 = vadd.f32 0.0, %v1432
    %1434 = vmatmul.bf16.gmra.mxu0 %v1226
    %v1435 = vpop.f32.mrf.mxu0
    %v1436 = vadd.f32 0.0, %v1435
    %v1437 = vpop.f32.mrf.mxu0
    %v1438 = vadd.f32 0.0, %v1437
    %1439 = vmatmul.bf16.gmra.mxu0 %v1229
    %v1440 = vpop.f32.mrf.mxu0
    %v1441 = vadd.f32 0.0, %v1440
    %v1442 = vpop.f32.mrf.mxu0
    %v1443 = vadd.f32 0.0, %v1442
    %1444 = vmatmul.bf16.gmra.mxu0 %v1232
    %v1445 = vpop.f32.mrf.mxu0
    %v1446 = vadd.f32 0.0, %v1445
    %v1447 = vpop.f32.mrf.mxu0
    %v1448 = vadd.f32 0.0, %v1447
    %1449 = vmatmul.bf16.gmra.mxu0 %v1235
    %v1450 = vpop.f32.mrf.mxu0
    %v1451 = vadd.f32 0.0, %v1450
    %v1452 = vpop.f32.mrf.mxu0
    %v1453 = vadd.f32 0.0, %v1452
    %1454 = vmatmul.bf16.gmra.mxu0 %v1238
    %v1455 = vpop.f32.mrf.mxu0
    %v1456 = vadd.f32 0.0, %v1455
    %v1457 = vpop.f32.mrf.mxu0
    %v1458 = vadd.f32 0.0, %v1457
    %1459 = vdwg.mxu0
    %1460 = vmatpush.bf16.msra.mxu0 0
    %1461 = vmatpush.bf16.msra.mxu0 0
    %1462 = vmatpush.bf16.msra.mxu0 0
    %1463 = vmatpush.bf16.msra.mxu0 0
    %1464 = vmatpush.bf16.msra.mxu0 0
    %1465 = vmatpush.bf16.msra.mxu0 0
    %1466 = vmatpush.bf16.msra.mxu0 0
    %1467 = vmatpush.bf16.msra.mxu0 %v1253
    %1468 = vmatmul.bf16.gmra.mxu0 %v1217
    %v1469 = vpop.f32.mrf.mxu0
    %v1470 = vadd.f32 0.0, %v1469
    %v1471 = vpop.f32.mrf.mxu0
    %v1472 = vadd.f32 0.0, %v1471
    %1473 = vmatmul.bf16.gmra.mxu0 %v1220
    %v1474 = vpop.f32.mrf.mxu0
    %v1475 = vadd.f32 0.0, %v1474
    %v1476 = vpop.f32.mrf.mxu0
    %v1477 = vadd.f32 0.0, %v1476
    %1478 = vmatmul.bf16.gmra.mxu0 %v1223
    %v1479 = vpop.f32.mrf.mxu0
    %v1480 = vadd.f32 0.0, %v1479
    %v1481 = vpop.f32.mrf.mxu0
    %v1482 = vadd.f32 0.0, %v1481
    %1483 = vmatmul.bf16.gmra.mxu0 %v1226
    %v1484 = vpop.f32.mrf.mxu0
    %v1485 = vadd.f32 0.0, %v1484
    %v1486 = vpop.f32.mrf.mxu0
    %v1487 = vadd.f32 0.0, %v1486
    %1488 = vmatmul.bf16.gmra.mxu0 %v1229
    %v1489 = vpop.f32.mrf.mxu0
    %v1490 = vadd.f32 0.0, %v1489
    %v1491 = vpop.f32.mrf.mxu0
    %v1492 = vadd.f32 0.0, %v1491
    %1493 = vmatmul.bf16.gmra.mxu0 %v1232
    %v1494 = vpop.f32.mrf.mxu0
    %v1495 = vadd.f32 0.0, %v1494
    %v1496 = vpop.f32.mrf.mxu0
    %v1497 = vadd.f32 0.0, %v1496
    %1498 = vmatmul.bf16.gmra.mxu0 %v1235
    %v1499 = vpop.f32.mrf.mxu0
    %v1500 = vadd.f32 0.0, %v1499
    %v1501 = vpop.f32.mrf.mxu0
    %v1502 = vadd.f32 0.0, %v1501
    %1503 = vmatmul.bf16.gmra.mxu0 %v1238
    %v1504 = vpop.f32.mrf.mxu0
    %v1505 = vadd.f32 0.0, %v1504
    %v1506 = vpop.f32.mrf.mxu0
    %v1507 = vadd.f32 0.0, %v1506
    %1508 = vdwg.mxu0
    %1509 = vmatpush.bf16.msra.mxu0 0
    %1510 = vmatpush.bf16.msra.mxu0 0
    %1511 = vmatpush.bf16.msra.mxu0 0
    %1512 = vmatpush.bf16.msra.mxu0 0
    %1513 = vmatpush.bf16.msra.mxu0 0
    %1514 = vmatpush.bf16.msra.mxu0 0
    %1515 = vmatpush.bf16.msra.mxu0 0
    %1516 = vmatpush.bf16.msra.mxu0 %v1256
    %1517 = vmatmul.bf16.gmra.mxu0 %v1217
    %v1518 = vpop.f32.mrf.mxu0
    %v1519 = vadd.f32 0.0, %v1518
    %v1520 = vpop.f32.mrf.mxu0
    %v1521 = vadd.f32 0.0, %v1520
    %1522 = vmatmul.bf16.gmra.mxu0 %v1220
    %v1523 = vpop.f32.mrf.mxu0
    %v1524 = vadd.f32 0.0, %v1523
    %v1525 = vpop.f32.mrf.mxu0
    %v1526 = vadd.f32 0.0, %v1525
    %1527 = vmatmul.bf16.gmra.mxu0 %v1223
    %v1528 = vpop.f32.mrf.mxu0
    %v1529 = vadd.f32 0.0, %v1528
    %v1530 = vpop.f32.mrf.mxu0
    %v1531 = vadd.f32 0.0, %v1530
    %1532 = vmatmul.bf16.gmra.mxu0 %v1226
    %v1533 = vpop.f32.mrf.mxu0
    %v1534 = vadd.f32 0.0, %v1533
    %v1535 = vpop.f32.mrf.mxu0
    %v1536 = vadd.f32 0.0, %v1535
    %1537 = vmatmul.bf16.gmra.mxu0 %v1229
    %v1538 = vpop.f32.mrf.mxu0
    %v1539 = vadd.f32 0.0, %v1538
    %v1540 = vpop.f32.mrf.mxu0
    %v1541 = vadd.f32 0.0, %v1540
    %1542 = vmatmul.bf16.gmra.mxu0 %v1232
    %v1543 = vpop.f32.mrf.mxu0
    %v1544 = vadd.f32 0.0, %v1543
    %v1545 = vpop.f32.mrf.mxu0
    %v1546 = vadd.f32 0.0, %v1545
    %1547 = vmatmul.bf16.gmra.mxu0 %v1235
    %v1548 = vpop.f32.mrf.mxu0
    %v1549 = vadd.f32 0.0, %v1548
    %v1550 = vpop.f32.mrf.mxu0
    %v1551 = vadd.f32 0.0, %v1550
    %1552 = vmatmul.bf16.gmra.mxu0 %v1238
    %v1553 = vpop.f32.mrf.mxu0
    %v1554 = vadd.f32 0.0, %v1553
    %v1555 = vpop.f32.mrf.mxu0
    %v1556 = vadd.f32 0.0, %v1555
    %1557 = vdwg.mxu0
    %1558 = vmatpush.bf16.msra.mxu0 0
    %1559 = vmatpush.bf16.msra.mxu0 0
    %1560 = vmatpush.bf16.msra.mxu0 0
    %1561 = vmatpush.bf16.msra.mxu0 0
    %1562 = vmatpush.bf16.msra.mxu0 0
    %1563 = vmatpush.bf16.msra.mxu0 0
    %1564 = vmatpush.bf16.msra.mxu0 0
    %1565 = vmatpush.bf16.msra.mxu0 %v1259
    %1566 = vmatmul.bf16.gmra.mxu0 %v1217
    %v1567 = vpop.f32.mrf.mxu0
    %v1568 = vadd.f32 0.0, %v1567
    %v1569 = vpop.f32.mrf.mxu0
    %v1570 = vadd.f32 0.0, %v1569
    %1571 = vmatmul.bf16.gmra.mxu0 %v1220
    %v1572 = vpop.f32.mrf.mxu0
    %v1573 = vadd.f32 0.0, %v1572
    %v1574 = vpop.f32.mrf.mxu0
    %v1575 = vadd.f32 0.0, %v1574
    %1576 = vmatmul.bf16.gmra.mxu0 %v1223
    %v1577 = vpop.f32.mrf.mxu0
    %v1578 = vadd.f32 0.0, %v1577
    %v1579 = vpop.f32.mrf.mxu0
    %v1580 = vadd.f32 0.0, %v1579
    %1581 = vmatmul.bf16.gmra.mxu0 %v1226
    %v1582 = vpop.f32.mrf.mxu0
    %v1583 = vadd.f32 0.0, %v1582
    %v1584 = vpop.f32.mrf.mxu0
    %v1585 = vadd.f32 0.0, %v1584
    %1586 = vmatmul.bf16.gmra.mxu0 %v1229
    %v1587 = vpop.f32.mrf.mxu0
    %v1588 = vadd.f32 0.0, %v1587
    %v1589 = vpop.f32.mrf.mxu0
    %v1590 = vadd.f32 0.0, %v1589
    %1591 = vmatmul.bf16.gmra.mxu0 %v1232
    %v1592 = vpop.f32.mrf.mxu0
    %v1593 = vadd.f32 0.0, %v1592
    %v1594 = vpop.f32.mrf.mxu0
    %v1595 = vadd.f32 0.0, %v1594
    %1596 = vmatmul.bf16.gmra.mxu0 %v1235
    %v1597 = vpop.f32.mrf.mxu0
    %v1598 = vadd.f32 0.0, %v1597
    %v1599 = vpop.f32.mrf.mxu0
    %v1600 = vadd.f32 0.0, %v1599
    %1601 = vmatmul.bf16.gmra.mxu0 %v1238
    %v1602 = vpop.f32.mrf.mxu0
    %v1603 = vadd.f32 0.0, %v1602
    %v1604 = vpop.f32.mrf.mxu0
    %v1605 = vadd.f32 0.0, %v1604
    %1606 = vdwg.mxu0
    %1607 = vmatpush.bf16.msra.mxu0 0
    %1608 = vmatpush.bf16.msra.mxu0 0
    %1609 = vmatpush.bf16.msra.mxu0 0
    %1610 = vmatpush.bf16.msra.mxu0 0
    %1611 = vmatpush.bf16.msra.mxu0 0
    %1612 = vmatpush.bf16.msra.mxu0 0
    %1613 = vmatpush.bf16.msra.mxu0 0
    %1614 = vmatpush.bf16.msra.mxu0 %v1262
    %1615 = vmatmul.bf16.gmra.mxu0 %v1217
    %v1616 = vpop.f32.mrf.mxu0
    %v1617 = vadd.f32 0.0, %v1616
    %v1618 = vpop.f32.mrf.mxu0
    %v1619 = vadd.f32 0.0, %v1618
    %1620 = vmatmul.bf16.gmra.mxu0 %v1220
    %v1621 = vpop.f32.mrf.mxu0
    %v1622 = vadd.f32 0.0, %v1621
    %v1623 = vpop.f32.mrf.mxu0
    %v1624 = vadd.f32 0.0, %v1623
    %1625 = vmatmul.bf16.gmra.mxu0 %v1223
    %v1626 = vpop.f32.mrf.mxu0
    %v1627 = vadd.f32 0.0, %v1626
    %v1628 = vpop.f32.mrf.mxu0
    %v1629 = vadd.f32 0.0, %v1628
    %1630 = vmatmul.bf16.gmra.mxu0 %v1226
    %v1631 = vpop.f32.mrf.mxu0
    %v1632 = vadd.f32 0.0, %v1631
    %v1633 = vpop.f32.mrf.mxu0
    %v1634 = vadd.f32 0.0, %v1633
    %1635 = vmatmul.bf16.gmra.mxu0 %v1229
    %v1636 = vpop.f32.mrf.mxu0
    %v1637 = vadd.f32 0.0, %v1636
    %v1638 = vpop.f32.mrf.mxu0
    %v1639 = vadd.f32 0.0, %v1638
    %1640 = vmatmul.bf16.gmra.mxu0 %v1232
    %v1641 = vpop.f32.mrf.mxu0
    %v1642 = vadd.f32 0.0, %v1641
    %v1643 = vpop.f32.mrf.mxu0
    %v1644 = vadd.f32 0.0, %v1643
    %1645 = vmatmul.bf16.gmra.mxu0 %v1235
    %v1646 = vpop.f32.mrf.mxu0
    %v1647 = vadd.f32 0.0, %v1646
    %v1648 = vpop.f32.mrf.mxu0
    %v1649 = vadd.f32 0.0, %v1648
    %1650 = vmatmul.bf16.gmra.mxu0 %v1238
    %v1651 = vpop.f32.mrf.mxu0
    %v1652 = vadd.f32 0.0, %v1651
    %v1653 = vpop.f32.mrf.mxu0
    %v1654 = vadd.f32 0.0, %v1653
    %1655 = vdwg.mxu0
    %1656 = vxpose.xlu0.c.b16.start [1/8] %v1198, 128
    %1657 = vxpose.xlu0.c.b16.cont [2/8] 0, 128
    %1658 = vxpose.xlu0.c.b16.cont [3/8] 0, 128
    %1659 = vxpose.xlu0.c.b16.cont [4/8] 0, 128
    %1660 = vxpose.xlu0.c.b16.cont [5/8] 0, 128
    %1661 = vxpose.xlu0.c.b16.cont [6/8] 0, 128
    %1662 = vxpose.xlu0.c.b16.cont [7/8] 0, 128
    %1663 = vxpose.xlu0.c.b16.end [8/8] 0, 128
    %v1664 = vpop.trf.xlu0
    %v1665 = vpop.trf.xlu0
    %v1666 = vpop.trf.xlu0
    %v1667 = vpop.trf.xlu0
    %v1668 = vpop.trf.xlu0
    %v1669 = vpop.trf.xlu0
    %v1670 = vpop.trf.xlu0
    %v1671 = vpop.trf.xlu0
    %v1673 = vsel %vm454, %v1664, 0
    %v1676 = vsel %vm454, %v1665, 0
    %v1679 = vsel %vm454, %v1666, 0
    %v1682 = vsel %vm454, %v1667, 0
    %v1685 = vsel %vm454, %v1668, 0
    %v1688 = vsel %vm454, %v1669, 0
    %v1691 = vsel %vm454, %v1670, 0
    %v1694 = vsel %vm454, %v1671, 0
    %1696 = vmatpush.bf16.msra.mxu0 0
    %1697 = vmatpush.bf16.msra.mxu0 0
    %1698 = vmatpush.bf16.msra.mxu0 0
    %1699 = vmatpush.bf16.msra.mxu0 0
    %1700 = vmatpush.bf16.msra.mxu0 0
    %1701 = vmatpush.bf16.msra.mxu0 0
    %1702 = vmatpush.bf16.msra.mxu0 0
    %1703 = vmatpush.bf16.msra.mxu0 %v481
    %1704 = vmatmul.bf16.gmra.mxu0 %v1673
    %v1705 = vpop.f32.mrf.mxu0
    %v1706 = vadd.f32 %v1274, %v1705
    %v1707 = vpop.f32.mrf.mxu0
    %v1708 = vadd.f32 %v1276, %v1707
    %1709 = vmatmul.bf16.gmra.mxu0 %v1676
    %v1710 = vpop.f32.mrf.mxu0
    %v1711 = vadd.f32 %v1279, %v1710
    %v1712 = vpop.f32.mrf.mxu0
    %v1713 = vadd.f32 %v1281, %v1712
    %1714 = vmatmul.bf16.gmra.mxu0 %v1679
    %v1715 = vpop.f32.mrf.mxu0
    %v1716 = vadd.f32 %v1284, %v1715
    %v1717 = vpop.f32.mrf.mxu0
    %v1718 = vadd.f32 %v1286, %v1717
    %1719 = vmatmul.bf16.gmra.mxu0 %v1682
    %v1720 = vpop.f32.mrf.mxu0
    %v1721 = vadd.f32 %v1289, %v1720
    %v1722 = vpop.f32.mrf.mxu0
    %v1723 = vadd.f32 %v1291, %v1722
    %1724 = vmatmul.bf16.gmra.mxu0 %v1685
    %v1725 = vpop.f32.mrf.mxu0
    %v1726 = vadd.f32 %v1294, %v1725
    %v1727 = vpop.f32.mrf.mxu0
    %v1728 = vadd.f32 %v1296, %v1727
    %1729 = vmatmul.bf16.gmra.mxu0 %v1688
    %v1730 = vpop.f32.mrf.mxu0
    %v1731 = vadd.f32 %v1299, %v1730
    %v1732 = vpop.f32.mrf.mxu0
    %v1733 = vadd.f32 %v1301, %v1732
    %1734 = vmatmul.bf16.gmra.mxu0 %v1691
    %v1735 = vpop.f32.mrf.mxu0
    %v1736 = vadd.f32 %v1304, %v1735
    %v1737 = vpop.f32.mrf.mxu0
    %v1738 = vadd.f32 %v1306, %v1737
    %1739 = vmatmul.bf16.gmra.mxu0 %v1694
    %v1740 = vpop.f32.mrf.mxu0
    %v1741 = vadd.f32 %v1309, %v1740
    %v1742 = vpop.f32.mrf.mxu0
    %v1743 = vadd.f32 %v1311, %v1742
    %1744 = vdwg.mxu0
    %1745 = vmatpush.bf16.msra.mxu0 0
    %1746 = vmatpush.bf16.msra.mxu0 0
    %1747 = vmatpush.bf16.msra.mxu0 0
    %1748 = vmatpush.bf16.msra.mxu0 0
    %1749 = vmatpush.bf16.msra.mxu0 0
    %1750 = vmatpush.bf16.msra.mxu0 0
    %1751 = vmatpush.bf16.msra.mxu0 0
    %1752 = vmatpush.bf16.msra.mxu0 %v484
    %1753 = vmatmul.bf16.gmra.mxu0 %v1673
    %v1754 = vpop.f32.mrf.mxu0
    %v1755 = vadd.f32 %v1323, %v1754
    %v1756 = vpop.f32.mrf.mxu0
    %v1757 = vadd.f32 %v1325, %v1756
    %1758 = vmatmul.bf16.gmra.mxu0 %v1676
    %v1759 = vpop.f32.mrf.mxu0
    %v1760 = vadd.f32 %v1328, %v1759
    %v1761 = vpop.f32.mrf.mxu0
    %v1762 = vadd.f32 %v1330, %v1761
    %1763 = vmatmul.bf16.gmra.mxu0 %v1679
    %v1764 = vpop.f32.mrf.mxu0
    %v1765 = vadd.f32 %v1333, %v1764
    %v1766 = vpop.f32.mrf.mxu0
    %v1767 = vadd.f32 %v1335, %v1766
    %1768 = vmatmul.bf16.gmra.mxu0 %v1682
    %v1769 = vpop.f32.mrf.mxu0
    %v1770 = vadd.f32 %v1338, %v1769
    %v1771 = vpop.f32.mrf.mxu0
    %v1772 = vadd.f32 %v1340, %v1771
    %1773 = vmatmul.bf16.gmra.mxu0 %v1685
    %v1774 = vpop.f32.mrf.mxu0
    %v1775 = vadd.f32 %v1343, %v1774
    %v1776 = vpop.f32.mrf.mxu0
    %v1777 = vadd.f32 %v1345, %v1776
    %1778 = vmatmul.bf16.gmra.mxu0 %v1688
    %v1779 = vpop.f32.mrf.mxu0
    %v1780 = vadd.f32 %v1348, %v1779
    %v1781 = vpop.f32.mrf.mxu0
    %v1782 = vadd.f32 %v1350, %v1781
    %1783 = vmatmul.bf16.gmra.mxu0 %v1691
    %v1784 = vpop.f32.mrf.mxu0
    %v1785 = vadd.f32 %v1353, %v1784
    %v1786 = vpop.f32.mrf.mxu0
    %v1787 = vadd.f32 %v1355, %v1786
    %1788 = vmatmul.bf16.gmra.mxu0 %v1694
    %v1789 = vpop.f32.mrf.mxu0
    %v1790 = vadd.f32 %v1358, %v1789
    %v1791 = vpop.f32.mrf.mxu0
    %v1792 = vadd.f32 %v1360, %v1791
    %1793 = vdwg.mxu0
    %1794 = vmatpush.bf16.msra.mxu0 0
    %1795 = vmatpush.bf16.msra.mxu0 0
    %1796 = vmatpush.bf16.msra.mxu0 0
    %1797 = vmatpush.bf16.msra.mxu0 0
    %1798 = vmatpush.bf16.msra.mxu0 0
    %1799 = vmatpush.bf16.msra.mxu0 0
    %1800 = vmatpush.bf16.msra.mxu0 0
    %1801 = vmatpush.bf16.msra.mxu0 %v487
    %1802 = vmatmul.bf16.gmra.mxu0 %v1673
    %v1803 = vpop.f32.mrf.mxu0
    %v1804 = vadd.f32 %v1372, %v1803
    %v1805 = vpop.f32.mrf.mxu0
    %v1806 = vadd.f32 %v1374, %v1805
    %1807 = vmatmul.bf16.gmra.mxu0 %v1676
    %v1808 = vpop.f32.mrf.mxu0
    %v1809 = vadd.f32 %v1377, %v1808
    %v1810 = vpop.f32.mrf.mxu0
    %v1811 = vadd.f32 %v1379, %v1810
    %1812 = vmatmul.bf16.gmra.mxu0 %v1679
    %v1813 = vpop.f32.mrf.mxu0
    %v1814 = vadd.f32 %v1382, %v1813
    %v1815 = vpop.f32.mrf.mxu0
    %v1816 = vadd.f32 %v1384, %v1815
    %1817 = vmatmul.bf16.gmra.mxu0 %v1682
    %v1818 = vpop.f32.mrf.mxu0
    %v1819 = vadd.f32 %v1387, %v1818
    %v1820 = vpop.f32.mrf.mxu0
    %v1821 = vadd.f32 %v1389, %v1820
    %1822 = vmatmul.bf16.gmra.mxu0 %v1685
    %v1823 = vpop.f32.mrf.mxu0
    %v1824 = vadd.f32 %v1392, %v1823
    %v1825 = vpop.f32.mrf.mxu0
    %v1826 = vadd.f32 %v1394, %v1825
    %1827 = vmatmul.bf16.gmra.mxu0 %v1688
    %v1828 = vpop.f32.mrf.mxu0
    %v1829 = vadd.f32 %v1397, %v1828
    %v1830 = vpop.f32.mrf.mxu0
    %v1831 = vadd.f32 %v1399, %v1830
    %1832 = vmatmul.bf16.gmra.mxu0 %v1691
    %v1833 = vpop.f32.mrf.mxu0
    %v1834 = vadd.f32 %v1402, %v1833
    %v1835 = vpop.f32.mrf.mxu0
    %v1836 = vadd.f32 %v1404, %v1835
    %1837 = vmatmul.bf16.gmra.mxu0 %v1694
    %v1838 = vpop.f32.mrf.mxu0
    %v1839 = vadd.f32 %v1407, %v1838
    %v1840 = vpop.f32.mrf.mxu0
    %v1841 = vadd.f32 %v1409, %v1840
    %1842 = vdwg.mxu0
    %1843 = vmatpush.bf16.msra.mxu0 0
    %1844 = vmatpush.bf16.msra.mxu0 0
    %1845 = vmatpush.bf16.msra.mxu0 0
    %1846 = vmatpush.bf16.msra.mxu0 0
    %1847 = vmatpush.bf16.msra.mxu0 0
    %1848 = vmatpush.bf16.msra.mxu0 0
    %1849 = vmatpush.bf16.msra.mxu0 0
    %1850 = vmatpush.bf16.msra.mxu0 %v490
    %1851 = vmatmul.bf16.gmra.mxu0 %v1673
    %v1852 = vpop.f32.mrf.mxu0
    %v1853 = vadd.f32 %v1421, %v1852
    %v1854 = vpop.f32.mrf.mxu0
    %v1855 = vadd.f32 %v1423, %v1854
    %1856 = vmatmul.bf16.gmra.mxu0 %v1676
    %v1857 = vpop.f32.mrf.mxu0
    %v1858 = vadd.f32 %v1426, %v1857
    %v1859 = vpop.f32.mrf.mxu0
    %v1860 = vadd.f32 %v1428, %v1859
    %1861 = vmatmul.bf16.gmra.mxu0 %v1679
    %v1862 = vpop.f32.mrf.mxu0
    %v1863 = vadd.f32 %v1431, %v1862
    %v1864 = vpop.f32.mrf.mxu0
    %v1865 = vadd.f32 %v1433, %v1864
    %1866 = vmatmul.bf16.gmra.mxu0 %v1682
    %v1867 = vpop.f32.mrf.mxu0
    %v1868 = vadd.f32 %v1436, %v1867
    %v1869 = vpop.f32.mrf.mxu0
    %v1870 = vadd.f32 %v1438, %v1869
    %1871 = vmatmul.bf16.gmra.mxu0 %v1685
    %v1872 = vpop.f32.mrf.mxu0
    %v1873 = vadd.f32 %v1441, %v1872
    %v1874 = vpop.f32.mrf.mxu0
    %v1875 = vadd.f32 %v1443, %v1874
    %1876 = vmatmul.bf16.gmra.mxu0 %v1688
    %v1877 = vpop.f32.mrf.mxu0
    %v1878 = vadd.f32 %v1446, %v1877
    %v1879 = vpop.f32.mrf.mxu0
    %v1880 = vadd.f32 %v1448, %v1879
    %1881 = vmatmul.bf16.gmra.mxu0 %v1691
    %v1882 = vpop.f32.mrf.mxu0
    %v1883 = vadd.f32 %v1451, %v1882
    %v1884 = vpop.f32.mrf.mxu0
    %v1885 = vadd.f32 %v1453, %v1884
    %1886 = vmatmul.bf16.gmra.mxu0 %v1694
    %v1887 = vpop.f32.mrf.mxu0
    %v1888 = vadd.f32 %v1456, %v1887
    %v1889 = vpop.f32.mrf.mxu0
    %v1890 = vadd.f32 %v1458, %v1889
    %1891 = vdwg.mxu0
    %1892 = vmatpush.bf16.msra.mxu0 0
    %1893 = vmatpush.bf16.msra.mxu0 0
    %1894 = vmatpush.bf16.msra.mxu0 0
    %1895 = vmatpush.bf16.msra.mxu0 0
    %1896 = vmatpush.bf16.msra.mxu0 0
    %1897 = vmatpush.bf16.msra.mxu0 0
    %1898 = vmatpush.bf16.msra.mxu0 0
    %1899 = vmatpush.bf16.msra.mxu0 %v493
    %1900 = vmatmul.bf16.gmra.mxu0 %v1673
    %v1901 = vpop.f32.mrf.mxu0
    %v1902 = vadd.f32 %v1470, %v1901
    %v1903 = vpop.f32.mrf.mxu0
    %v1904 = vadd.f32 %v1472, %v1903
    %1905 = vmatmul.bf16.gmra.mxu0 %v1676
    %v1906 = vpop.f32.mrf.mxu0
    %v1907 = vadd.f32 %v1475, %v1906
    %v1908 = vpop.f32.mrf.mxu0
    %v1909 = vadd.f32 %v1477, %v1908
    %1910 = vmatmul.bf16.gmra.mxu0 %v1679
    %v1911 = vpop.f32.mrf.mxu0
    %v1912 = vadd.f32 %v1480, %v1911
    %v1913 = vpop.f32.mrf.mxu0
    %v1914 = vadd.f32 %v1482, %v1913
    %1915 = vmatmul.bf16.gmra.mxu0 %v1682
    %v1916 = vpop.f32.mrf.mxu0
    %v1917 = vadd.f32 %v1485, %v1916
    %v1918 = vpop.f32.mrf.mxu0
    %v1919 = vadd.f32 %v1487, %v1918
    %1920 = vmatmul.bf16.gmra.mxu0 %v1685
    %v1921 = vpop.f32.mrf.mxu0
    %v1922 = vadd.f32 %v1490, %v1921
    %v1923 = vpop.f32.mrf.mxu0
    %v1924 = vadd.f32 %v1492, %v1923
    %1925 = vmatmul.bf16.gmra.mxu0 %v1688
    %v1926 = vpop.f32.mrf.mxu0
    %v1927 = vadd.f32 %v1495, %v1926
    %v1928 = vpop.f32.mrf.mxu0
    %v1929 = vadd.f32 %v1497, %v1928
    %1930 = vmatmul.bf16.gmra.mxu0 %v1691
    %v1931 = vpop.f32.mrf.mxu0
    %v1932 = vadd.f32 %v1500, %v1931
    %v1933 = vpop.f32.mrf.mxu0
    %v1934 = vadd.f32 %v1502, %v1933
    %1935 = vmatmul.bf16.gmra.mxu0 %v1694
    %v1936 = vpop.f32.mrf.mxu0
    %v1937 = vadd.f32 %v1505, %v1936
    %v1938 = vpop.f32.mrf.mxu0
    %v1939 = vadd.f32 %v1507, %v1938
    %1940 = vdwg.mxu0
    %1941 = vmatpush.bf16.msra.mxu0 0
    %1942 = vmatpush.bf16.msra.mxu0 0
    %1943 = vmatpush.bf16.msra.mxu0 0
    %1944 = vmatpush.bf16.msra.mxu0 0
    %1945 = vmatpush.bf16.msra.mxu0 0
    %1946 = vmatpush.bf16.msra.mxu0 0
    %1947 = vmatpush.bf16.msra.mxu0 0
    %1948 = vmatpush.bf16.msra.mxu0 %v496
    %1949 = vmatmul.bf16.gmra.mxu0 %v1673
    %v1950 = vpop.f32.mrf.mxu0
    %v1951 = vadd.f32 %v1519, %v1950
    %v1952 = vpop.f32.mrf.mxu0
    %v1953 = vadd.f32 %v1521, %v1952
    %1954 = vmatmul.bf16.gmra.mxu0 %v1676
    %v1955 = vpop.f32.mrf.mxu0
    %v1956 = vadd.f32 %v1524, %v1955
    %v1957 = vpop.f32.mrf.mxu0
    %v1958 = vadd.f32 %v1526, %v1957
    %1959 = vmatmul.bf16.gmra.mxu0 %v1679
    %v1960 = vpop.f32.mrf.mxu0
    %v1961 = vadd.f32 %v1529, %v1960
    %v1962 = vpop.f32.mrf.mxu0
    %v1963 = vadd.f32 %v1531, %v1962
    %1964 = vmatmul.bf16.gmra.mxu0 %v1682
    %v1965 = vpop.f32.mrf.mxu0
    %v1966 = vadd.f32 %v1534, %v1965
    %v1967 = vpop.f32.mrf.mxu0
    %v1968 = vadd.f32 %v1536, %v1967
    %1969 = vmatmul.bf16.gmra.mxu0 %v1685
    %v1970 = vpop.f32.mrf.mxu0
    %v1971 = vadd.f32 %v1539, %v1970
    %v1972 = vpop.f32.mrf.mxu0
    %v1973 = vadd.f32 %v1541, %v1972
    %1974 = vmatmul.bf16.gmra.mxu0 %v1688
    %v1975 = vpop.f32.mrf.mxu0
    %v1976 = vadd.f32 %v1544, %v1975
    %v1977 = vpop.f32.mrf.mxu0
    %v1978 = vadd.f32 %v1546, %v1977
    %1979 = vmatmul.bf16.gmra.mxu0 %v1691
    %v1980 = vpop.f32.mrf.mxu0
    %v1981 = vadd.f32 %v1549, %v1980
    %v1982 = vpop.f32.mrf.mxu0
    %v1983 = vadd.f32 %v1551, %v1982
    %1984 = vmatmul.bf16.gmra.mxu0 %v1694
    %v1985 = vpop.f32.mrf.mxu0
    %v1986 = vadd.f32 %v1554, %v1985
    %v1987 = vpop.f32.mrf.mxu0
    %v1988 = vadd.f32 %v1556, %v1987
    %1989 = vdwg.mxu0
    %1990 = vmatpush.bf16.msra.mxu0 0
    %1991 = vmatpush.bf16.msra.mxu0 0
    %1992 = vmatpush.bf16.msra.mxu0 0
    %1993 = vmatpush.bf16.msra.mxu0 0
    %1994 = vmatpush.bf16.msra.mxu0 0
    %1995 = vmatpush.bf16.msra.mxu0 0
    %1996 = vmatpush.bf16.msra.mxu0 0
    %1997 = vmatpush.bf16.msra.mxu0 %v499
    %1998 = vmatmul.bf16.gmra.mxu0 %v1673
    %v1999 = vpop.f32.mrf.mxu0
    %v2000 = vadd.f32 %v1568, %v1999
    %v2001 = vpop.f32.mrf.mxu0
    %v2002 = vadd.f32 %v1570, %v2001
    %2003 = vmatmul.bf16.gmra.mxu0 %v1676
    %v2004 = vpop.f32.mrf.mxu0
    %v2005 = vadd.f32 %v1573, %v2004
    %v2006 = vpop.f32.mrf.mxu0
    %v2007 = vadd.f32 %v1575, %v2006
    %2008 = vmatmul.bf16.gmra.mxu0 %v1679
    %v2009 = vpop.f32.mrf.mxu0
    %v2010 = vadd.f32 %v1578, %v2009
    %v2011 = vpop.f32.mrf.mxu0
    %v2012 = vadd.f32 %v1580, %v2011
    %2013 = vmatmul.bf16.gmra.mxu0 %v1682
    %v2014 = vpop.f32.mrf.mxu0
    %v2015 = vadd.f32 %v1583, %v2014
    %v2016 = vpop.f32.mrf.mxu0
    %v2017 = vadd.f32 %v1585, %v2016
    %2018 = vmatmul.bf16.gmra.mxu0 %v1685
    %v2019 = vpop.f32.mrf.mxu0
    %v2020 = vadd.f32 %v1588, %v2019
    %v2021 = vpop.f32.mrf.mxu0
    %v2022 = vadd.f32 %v1590, %v2021
    %2023 = vmatmul.bf16.gmra.mxu0 %v1688
    %v2024 = vpop.f32.mrf.mxu0
    %v2025 = vadd.f32 %v1593, %v2024
    %v2026 = vpop.f32.mrf.mxu0
    %v2027 = vadd.f32 %v1595, %v2026
    %2028 = vmatmul.bf16.gmra.mxu0 %v1691
    %v2029 = vpop.f32.mrf.mxu0
    %v2030 = vadd.f32 %v1598, %v2029
    %v2031 = vpop.f32.mrf.mxu0
    %v2032 = vadd.f32 %v1600, %v2031
    %2033 = vmatmul.bf16.gmra.mxu0 %v1694
    %v2034 = vpop.f32.mrf.mxu0
    %v2035 = vadd.f32 %v1603, %v2034
    %v2036 = vpop.f32.mrf.mxu0
    %v2037 = vadd.f32 %v1605, %v2036
    %2038 = vdwg.mxu0
    %2039 = vmatpush.bf16.msra.mxu0 0
    %2040 = vmatpush.bf16.msra.mxu0 0
    %2041 = vmatpush.bf16.msra.mxu0 0
    %2042 = vmatpush.bf16.msra.mxu0 0
    %2043 = vmatpush.bf16.msra.mxu0 0
    %2044 = vmatpush.bf16.msra.mxu0 0
    %2045 = vmatpush.bf16.msra.mxu0 0
    %2046 = vmatpush.bf16.msra.mxu0 %v502
    %2047 = vmatmul.bf16.gmra.mxu0 %v1673
    %v2048 = vpop.f32.mrf.mxu0
    %v2049 = vadd.f32 %v1617, %v2048
    %v2050 = vpop.f32.mrf.mxu0
    %v2051 = vadd.f32 %v1619, %v2050
    %2052 = vmatmul.bf16.gmra.mxu0 %v1676
    %v2053 = vpop.f32.mrf.mxu0
    %v2054 = vadd.f32 %v1622, %v2053
    %v2055 = vpop.f32.mrf.mxu0
    %v2056 = vadd.f32 %v1624, %v2055
    %2057 = vmatmul.bf16.gmra.mxu0 %v1679
    %v2058 = vpop.f32.mrf.mxu0
    %v2059 = vadd.f32 %v1627, %v2058
    %v2060 = vpop.f32.mrf.mxu0
    %v2061 = vadd.f32 %v1629, %v2060
    %2062 = vmatmul.bf16.gmra.mxu0 %v1682
    %v2063 = vpop.f32.mrf.mxu0
    %v2064 = vadd.f32 %v1632, %v2063
    %v2065 = vpop.f32.mrf.mxu0
    %v2066 = vadd.f32 %v1634, %v2065
    %2067 = vmatmul.bf16.gmra.mxu0 %v1685
    %v2068 = vpop.f32.mrf.mxu0
    %v2069 = vadd.f32 %v1637, %v2068
    %v2070 = vpop.f32.mrf.mxu0
    %v2071 = vadd.f32 %v1639, %v2070
    %2072 = vmatmul.bf16.gmra.mxu0 %v1688
    %v2073 = vpop.f32.mrf.mxu0
    %v2074 = vadd.f32 %v1642, %v2073
    %v2075 = vpop.f32.mrf.mxu0
    %v2076 = vadd.f32 %v1644, %v2075
    %2077 = vmatmul.bf16.gmra.mxu0 %v1691
    %v2078 = vpop.f32.mrf.mxu0
    %v2079 = vadd.f32 %v1647, %v2078
    %v2080 = vpop.f32.mrf.mxu0
    %v2081 = vadd.f32 %v1649, %v2080
    %2082 = vmatmul.bf16.gmra.mxu0 %v1694
    %v2083 = vpop.f32.mrf.mxu0
    %v2084 = vadd.f32 %v1652, %v2083
    %v2085 = vpop.f32.mrf.mxu0
    %v2086 = vadd.f32 %v1654, %v2085
    %2087 = vdwg.mxu0
    %v2088 = vrot.slane %v418, 4
    %v2089 = vadd.f32 %v418, %v2088
    %v2090 = vrot.slane %v2089, 2
    %v2091 = vadd.f32 %v2089, %v2090
    %v2092 = vrot.slane %v2091, 1
    %v2093 = vadd.f32 %v2091, %v2092
    %v2094 = vrot.slane %v420, 4
    %v2095 = vadd.f32 %v420, %v2094
    %v2096 = vrot.slane %v2095, 2
    %v2097 = vadd.f32 %v2095, %v2096
    %v2098 = vrot.slane %v2097, 1
    %v2099 = vadd.f32 %v2097, %v2098
    %v2100 = vadd.f32 %v2093, %v2099
    %v2101 = vadd.f32 %v169, %v1194
    %v2102 = vadd.f32 %v169, %v1197
    %v2103 = vrcp.pop 16384.0
    %v2104 = vmul.f32 16384.0, %v2103
    %v2105 = vsub.f32 1.0, %v2104
    %v2106 = vmul.f32 %v2103, %v2105
    %v2107 = vadd.f32 %v2103, %v2106
    %vm2108 = vweird.f32 %v2103
    %v2109 = vsel %vm2108, %v2103, %v2107
    %v2110 = vmul.f32 %v2101, %v2109
    %v2111 = vrsqrt.pop %v2110
    %v2112 = vmul.f32 %v2111, %v2110
    %v2113 = vmul.f32 %v2112, %v2111
    %v2114 = vmul.f32 0.5, %v2113
    %v2115 = vsub.f32 1.5, %v2114
    %v2116 = vmul.f32 %v2111, %v2115
    %v2117 = vmul.f32 %v2110, %v2116
    %vm2118 = vcmp.eq.f32.partialorder %v2110, inf
    %v2119 = vsel %vm2118, %v2110, %v2117
    %vm2120 = vcmp.eq.f32.partialorder %v2110, 0.0
    %v2121 = vand.u32 %v2110, 2147483648
    %v2122 = vsel %vm2120, %v2121, %v2119
    %v2123 = vrcp.pop 16.0
    %v2124 = vmul.f32 16.0, %v2123
    %v2125 = vsub.f32 1.0, %v2124
    %v2126 = vmul.f32 %v2123, %v2125
    %v2127 = vadd.f32 %v2123, %v2126
    %vm2128 = vweird.f32 %v2123
    %v2129 = vsel %vm2128, %v2123, %v2127
    %v2130 = vmul.f32 %v2102, %v2129
    %v2131 = vrsqrt.pop %v2130
    %v2132 = vmul.f32 %v2131, %v2130
    %v2133 = vmul.f32 %v2132, %v2131
    %v2134 = vmul.f32 0.5, %v2133
    %v2135 = vsub.f32 1.5, %v2134
    %v2136 = vmul.f32 %v2131, %v2135
    %v2137 = vmul.f32 %v2130, %v2136
    %vm2138 = vcmp.eq.f32.partialorder %v2130, inf
    %v2139 = vsel %vm2138, %v2130, %v2137
    %vm2140 = vcmp.eq.f32.partialorder %v2130, 0.0
    %v2141 = vand.u32 %v2130, 2147483648
    %v2142 = vsel %vm2140, %v2141, %v2139
    %2144 = vrot.lane.b32.xlu0 %v2142, 127
    %v2145 = vpop.permute.xlu0 %2144
    %v2147 = vmin.f32 %v2122, %v2145
    %v2148 = vmax.f32 %v2122, %v2145
    %v2149 = vsub.f32 %v2122, %v2147
    %v2150 = vsub.f32 %v2148, %v2147
    %v2151 = vadd.f32 %v2150, 1e-08
    %v2152 = vrcp.pop %v2151
    %v2153 = vmul.f32 %v2151, %v2152
    %v2154 = vsub.f32 1.0, %v2153
    %v2155 = vmul.f32 %v2152, %v2154
    %v2156 = vadd.f32 %v2152, %v2155
    %vm2157 = vweird.f32 %v2151
    %vm2158 = vweird.f32 %v2152
    %vm2159 = vmor %vm2157, %vm2158
    %v2160 = vsel %vm2159, %v2152, %v2156
    %v2161 = vand.u32 2147483647, %v2151
    %vm2162 = vcmp.eq.f32.partialorder %v2161, 8.507059e+37
    %v2163 = vand.u32 %v2151, 2147483648
    %v2164 = vor.u32 1.1754944e-38, %v2163
    %v2165 = vsel %vm2162, %v2164, %v2160
    %v2166 = vmul.f32 %v2149, %v2165
    %2168 = vrot.lane.b32.xlu0 %v2147, 1
    %v2169 = vpop.permute.xlu0 %2168
    %v2171 = vsub.f32 %v2142, %v2169
    %2173 = vrot.lane.b32.xlu0 %v2151, 1
    %v2174 = vpop.permute.xlu0 %2173
    %v2176 = vrcp.pop %v2174
    %v2177 = vmul.f32 %v2174, %v2176
    %v2178 = vsub.f32 1.0, %v2177
    %v2179 = vmul.f32 %v2176, %v2178
    %v2180 = vadd.f32 %v2176, %v2179
    %vm2181 = vweird.f32 %v2174
    %vm2182 = vweird.f32 %v2176
    %vm2183 = vmor %vm2181, %vm2182
    %v2184 = vsel %vm2183, %v2176, %v2180
    %v2185 = vand.u32 2147483647, %v2174
    %vm2186 = vcmp.eq.f32.partialorder %v2185, 8.507059e+37
    %v2187 = vand.u32 %v2174, 2147483648
    %v2188 = vor.u32 1.1754944e-38, %v2187
    %v2189 = vsel %vm2186, %v2188, %v2184
    %v2190 = vmul.f32 %v2171, %v2189
    %v2191 = vmul.f32 %v2166, 0.001
    %v2192 = vmul.f32 %v2190, 0.001
    %v2193 = vand.u32 2147483647, %v1706
    %v2194 = vand.u32 2147483647, %v1755
    %v2195 = vand.u32 2147483647, %v1804
    %v2196 = vand.u32 2147483647, %v1853
    %v2197 = vand.u32 2147483647, %v1902
    %v2198 = vand.u32 2147483647, %v1951
    %v2199 = vand.u32 2147483647, %v2000
    %v2200 = vand.u32 2147483647, %v2049
    %v2201 = vand.u32 2147483647, %v1708
    %v2202 = vand.u32 2147483647, %v1757
    %v2203 = vand.u32 2147483647, %v1806
    %v2204 = vand.u32 2147483647, %v1855
    %v2205 = vand.u32 2147483647, %v1904
    %v2206 = vand.u32 2147483647, %v1953
    %v2207 = vand.u32 2147483647, %v2002
    %v2208 = vand.u32 2147483647, %v2051
    %v2209 = vand.u32 2147483647, %v1711
    %v2210 = vand.u32 2147483647, %v1760
    %v2211 = vand.u32 2147483647, %v1809
    %v2212 = vand.u32 2147483647, %v1858
    %v2213 = vand.u32 2147483647, %v1907
    %v2214 = vand.u32 2147483647, %v1956
    %v2215 = vand.u32 2147483647, %v2005
    %v2216 = vand.u32 2147483647, %v2054
    %v2217 = vand.u32 2147483647, %v1713
    %v2218 = vand.u32 2147483647, %v1762
    %v2219 = vand.u32 2147483647, %v1811
    %v2220 = vand.u32 2147483647, %v1860
    %v2221 = vand.u32 2147483647, %v1909
    %v2222 = vand.u32 2147483647, %v1958
    %v2223 = vand.u32 2147483647, %v2007
    %v2224 = vand.u32 2147483647, %v2056
    %v2225 = vand.u32 2147483647, %v1716
    %v2226 = vand.u32 2147483647, %v1765
    %v2227 = vand.u32 2147483647, %v1814
    %v2228 = vand.u32 2147483647, %v1863
    %v2229 = vand.u32 2147483647, %v1912
    %v2230 = vand.u32 2147483647, %v1961
    %v2231 = vand.u32 2147483647, %v2010
    %v2232 = vand.u32 2147483647, %v2059
    %v2233 = vand.u32 2147483647, %v1718
    %v2234 = vand.u32 2147483647, %v1767
    %v2235 = vand.u32 2147483647, %v1816
    %v2236 = vand.u32 2147483647, %v1865
    %v2237 = vand.u32 2147483647, %v1914
    %v2238 = vand.u32 2147483647, %v1963
    %v2239 = vand.u32 2147483647, %v2012
    %v2240 = vand.u32 2147483647, %v2061
    %v2241 = vand.u32 2147483647, %v1721
    %v2242 = vand.u32 2147483647, %v1770
    %v2243 = vand.u32 2147483647, %v1819
    %v2244 = vand.u32 2147483647, %v1868
    %v2245 = vand.u32 2147483647, %v1917
    %v2246 = vand.u32 2147483647, %v1966
    %v2247 = vand.u32 2147483647, %v2015
    %v2248 = vand.u32 2147483647, %v2064
    %v2249 = vand.u32 2147483647, %v1723
    %v2250 = vand.u32 2147483647, %v1772
    %v2251 = vand.u32 2147483647, %v1821
    %v2252 = vand.u32 2147483647, %v1870
    %v2253 = vand.u32 2147483647, %v1919
    %v2254 = vand.u32 2147483647, %v1968
    %v2255 = vand.u32 2147483647, %v2017
    %v2256 = vand.u32 2147483647, %v2066
    %v2257 = vand.u32 2147483647, %v1726
    %v2258 = vand.u32 2147483647, %v1775
    %v2259 = vand.u32 2147483647, %v1824
    %v2260 = vand.u32 2147483647, %v1873
    %v2261 = vand.u32 2147483647, %v1922
    %v2262 = vand.u32 2147483647, %v1971
    %v2263 = vand.u32 2147483647, %v2020
    %v2264 = vand.u32 2147483647, %v2069
    %v2265 = vand.u32 2147483647, %v1728
    %v2266 = vand.u32 2147483647, %v1777
    %v2267 = vand.u32 2147483647, %v1826
    %v2268 = vand.u32 2147483647, %v1875
    %v2269 = vand.u32 2147483647, %v1924
    %v2270 = vand.u32 2147483647, %v1973
    %v2271 = vand.u32 2147483647, %v2022
    %v2272 = vand.u32 2147483647, %v2071
    %v2273 = vand.u32 2147483647, %v1731
    %v2274 = vand.u32 2147483647, %v1780
    %v2275 = vand.u32 2147483647, %v1829
    %v2276 = vand.u32 2147483647, %v1878
    %v2277 = vand.u32 2147483647, %v1927
    %v2278 = vand.u32 2147483647, %v1976
    %v2279 = vand.u32 2147483647, %v2025
    %v2280 = vand.u32 2147483647, %v2074
    %v2281 = vand.u32 2147483647, %v1733
    %v2282 = vand.u32 2147483647, %v1782
    %v2283 = vand.u32 2147483647, %v1831
    %v2284 = vand.u32 2147483647, %v1880
    %v2285 = vand.u32 2147483647, %v1929
    %v2286 = vand.u32 2147483647, %v1978
    %v2287 = vand.u32 2147483647, %v2027
    %v2288 = vand.u32 2147483647, %v2076
    %v2289 = vand.u32 2147483647, %v1736
    %v2290 = vand.u32 2147483647, %v1785
    %v2291 = vand.u32 2147483647, %v1834
    %v2292 = vand.u32 2147483647, %v1883
    %v2293 = vand.u32 2147483647, %v1932
    %v2294 = vand.u32 2147483647, %v1981
    %v2295 = vand.u32 2147483647, %v2030
    %v2296 = vand.u32 2147483647, %v2079
    %v2297 = vand.u32 2147483647, %v1738
    %v2298 = vand.u32 2147483647, %v1787
    %v2299 = vand.u32 2147483647, %v1836
    %v2300 = vand.u32 2147483647, %v1885
    %v2301 = vand.u32 2147483647, %v1934
    %v2302 = vand.u32 2147483647, %v1983
    %v2303 = vand.u32 2147483647, %v2032
    %v2304 = vand.u32 2147483647, %v2081
    %v2305 = vand.u32 2147483647, %v1741
    %v2306 = vand.u32 2147483647, %v1790
    %v2307 = vand.u32 2147483647, %v1839
    %v2308 = vand.u32 2147483647, %v1888
    %v2309 = vand.u32 2147483647, %v1937
    %v2310 = vand.u32 2147483647, %v1986
    %v2311 = vand.u32 2147483647, %v2035
    %v2312 = vand.u32 2147483647, %v2084
    %v2313 = vand.u32 2147483647, %v1743
    %v2314 = vand.u32 2147483647, %v1792
    %v2315 = vand.u32 2147483647, %v1841
    %v2316 = vand.u32 2147483647, %v1890
    %v2317 = vand.u32 2147483647, %v1939
    %v2318 = vand.u32 2147483647, %v1988
    %v2319 = vand.u32 2147483647, %v2037
    %v2320 = vand.u32 2147483647, %v2086
    %v2321 = vadd.f32 %v2193, 1e-08
    %v2322 = vadd.f32 %v2194, 1e-08
    %v2323 = vadd.f32 %v2195, 1e-08
    %v2324 = vadd.f32 %v2196, 1e-08
    %v2325 = vadd.f32 %v2197, 1e-08
    %v2326 = vadd.f32 %v2198, 1e-08
    %v2327 = vadd.f32 %v2199, 1e-08
    %v2328 = vadd.f32 %v2200, 1e-08
    %v2329 = vadd.f32 %v2201, 1e-08
    %v2330 = vadd.f32 %v2202, 1e-08
    %v2331 = vadd.f32 %v2203, 1e-08
    %v2332 = vadd.f32 %v2204, 1e-08
    %v2333 = vadd.f32 %v2205, 1e-08
    %v2334 = vadd.f32 %v2206, 1e-08
    %v2335 = vadd.f32 %v2207, 1e-08
    %v2336 = vadd.f32 %v2208, 1e-08
    %v2337 = vadd.f32 %v2209, 1e-08
    %v2338 = vadd.f32 %v2210, 1e-08
    %v2339 = vadd.f32 %v2211, 1e-08
    %v2340 = vadd.f32 %v2212, 1e-08
    %v2341 = vadd.f32 %v2213, 1e-08
    %v2342 = vadd.f32 %v2214, 1e-08
    %v2343 = vadd.f32 %v2215, 1e-08
    %v2344 = vadd.f32 %v2216, 1e-08
    %v2345 = vadd.f32 %v2217, 1e-08
    %v2346 = vadd.f32 %v2218, 1e-08
    %v2347 = vadd.f32 %v2219, 1e-08
    %v2348 = vadd.f32 %v2220, 1e-08
    %v2349 = vadd.f32 %v2221, 1e-08
    %v2350 = vadd.f32 %v2222, 1e-08
    %v2351 = vadd.f32 %v2223, 1e-08
    %v2352 = vadd.f32 %v2224, 1e-08
    %v2353 = vadd.f32 %v2225, 1e-08
    %v2354 = vadd.f32 %v2226, 1e-08
    %v2355 = vadd.f32 %v2227, 1e-08
    %v2356 = vadd.f32 %v2228, 1e-08
    %v2357 = vadd.f32 %v2229, 1e-08
    %v2358 = vadd.f32 %v2230, 1e-08
    %v2359 = vadd.f32 %v2231, 1e-08
    %v2360 = vadd.f32 %v2232, 1e-08
    %v2361 = vadd.f32 %v2233, 1e-08
    %v2362 = vadd.f32 %v2234, 1e-08
    %v2363 = vadd.f32 %v2235, 1e-08
    %v2364 = vadd.f32 %v2236, 1e-08
    %v2365 = vadd.f32 %v2237, 1e-08
    %v2366 = vadd.f32 %v2238, 1e-08
    %v2367 = vadd.f32 %v2239, 1e-08
    %v2368 = vadd.f32 %v2240, 1e-08
    %v2369 = vadd.f32 %v2241, 1e-08
    %v2370 = vadd.f32 %v2242, 1e-08
    %v2371 = vadd.f32 %v2243, 1e-08
    %v2372 = vadd.f32 %v2244, 1e-08
    %v2373 = vadd.f32 %v2245, 1e-08
    %v2374 = vadd.f32 %v2246, 1e-08
    %v2375 = vadd.f32 %v2247, 1e-08
    %v2376 = vadd.f32 %v2248, 1e-08
    %v2377 = vadd.f32 %v2249, 1e-08
    %v2378 = vadd.f32 %v2250, 1e-08
    %v2379 = vadd.f32 %v2251, 1e-08
    %v2380 = vadd.f32 %v2252, 1e-08
    %v2381 = vadd.f32 %v2253, 1e-08
    %v2382 = vadd.f32 %v2254, 1e-08
    %v2383 = vadd.f32 %v2255, 1e-08
    %v2384 = vadd.f32 %v2256, 1e-08
    %v2385 = vadd.f32 %v2257, 1e-08
    %v2386 = vadd.f32 %v2258, 1e-08
    %v2387 = vadd.f32 %v2259, 1e-08
    %v2388 = vadd.f32 %v2260, 1e-08
    %v2389 = vadd.f32 %v2261, 1e-08
    %v2390 = vadd.f32 %v2262, 1e-08
    %v2391 = vadd.f32 %v2263, 1e-08
    %v2392 = vadd.f32 %v2264, 1e-08
    %v2393 = vadd.f32 %v2265, 1e-08
    %v2394 = vadd.f32 %v2266, 1e-08
    %v2395 = vadd.f32 %v2267, 1e-08
    %v2396 = vadd.f32 %v2268, 1e-08
    %v2397 = vadd.f32 %v2269, 1e-08
    %v2398 = vadd.f32 %v2270, 1e-08
    %v2399 = vadd.f32 %v2271, 1e-08
    %v2400 = vadd.f32 %v2272, 1e-08
    %v2401 = vadd.f32 %v2273, 1e-08
    %v2402 = vadd.f32 %v2274, 1e-08
    %v2403 = vadd.f32 %v2275, 1e-08
    %v2404 = vadd.f32 %v2276, 1e-08
    %v2405 = vadd.f32 %v2277, 1e-08
    %v2406 = vadd.f32 %v2278, 1e-08
    %v2407 = vadd.f32 %v2279, 1e-08
    %v2408 = vadd.f32 %v2280, 1e-08
    %v2409 = vadd.f32 %v2281, 1e-08
    %v2410 = vadd.f32 %v2282, 1e-08
    %v2411 = vadd.f32 %v2283, 1e-08
    %v2412 = vadd.f32 %v2284, 1e-08
    %v2413 = vadd.f32 %v2285, 1e-08
    %v2414 = vadd.f32 %v2286, 1e-08
    %v2415 = vadd.f32 %v2287, 1e-08
    %v2416 = vadd.f32 %v2288, 1e-08
    %v2417 = vadd.f32 %v2289, 1e-08
    %v2418 = vadd.f32 %v2290, 1e-08
    %v2419 = vadd.f32 %v2291, 1e-08
    %v2420 = vadd.f32 %v2292, 1e-08
    %v2421 = vadd.f32 %v2293, 1e-08
    %v2422 = vadd.f32 %v2294, 1e-08
    %v2423 = vadd.f32 %v2295, 1e-08
    %v2424 = vadd.f32 %v2296, 1e-08
    %v2425 = vadd.f32 %v2297, 1e-08
    %v2426 = vadd.f32 %v2298, 1e-08
    %v2427 = vadd.f32 %v2299, 1e-08
    %v2428 = vadd.f32 %v2300, 1e-08
    %v2429 = vadd.f32 %v2301, 1e-08
    %v2430 = vadd.f32 %v2302, 1e-08
    %v2431 = vadd.f32 %v2303, 1e-08
    %v2432 = vadd.f32 %v2304, 1e-08
    %v2433 = vadd.f32 %v2305, 1e-08
    %v2434 = vadd.f32 %v2306, 1e-08
    %v2435 = vadd.f32 %v2307, 1e-08
    %v2436 = vadd.f32 %v2308, 1e-08
    %v2437 = vadd.f32 %v2309, 1e-08
    %v2438 = vadd.f32 %v2310, 1e-08
    %v2439 = vadd.f32 %v2311, 1e-08
    %v2440 = vadd.f32 %v2312, 1e-08
    %v2441 = vadd.f32 %v2313, 1e-08
    %v2442 = vadd.f32 %v2314, 1e-08
    %v2443 = vadd.f32 %v2315, 1e-08
    %v2444 = vadd.f32 %v2316, 1e-08
    %v2445 = vadd.f32 %v2317, 1e-08
    %v2446 = vadd.f32 %v2318, 1e-08
    %v2447 = vadd.f32 %v2319, 1e-08
    %v2448 = vadd.f32 %v2320, 1e-08
    %v2449 = vrcp.pop %v2321
    %v2450 = vmul.f32 %v2321, %v2449
    %v2451 = vsub.f32 1.0, %v2450
    %v2452 = vmul.f32 %v2449, %v2451
    %v2453 = vadd.f32 %v2449, %v2452
    %vm2454 = vweird.f32 %v2321
    %vm2455 = vweird.f32 %v2449
    %vm2456 = vmor %vm2454, %vm2455
    %v2457 = vsel %vm2456, %v2449, %v2453
    %v2458 = vand.u32 2147483647, %v2321
    %vm2459 = vcmp.eq.f32.partialorder %v2458, 8.507059e+37
    %v2460 = vand.u32 %v2321, 2147483648
    %v2461 = vor.u32 1.1754944e-38, %v2460
    %v2462 = vsel %vm2459, %v2461, %v2457
    %v2463 = vmul.f32 %v1706, %v2462
    %v2464 = vrcp.pop %v2322
    %v2465 = vmul.f32 %v2322, %v2464
    %v2466 = vsub.f32 1.0, %v2465
    %v2467 = vmul.f32 %v2464, %v2466
    %v2468 = vadd.f32 %v2464, %v2467
    %vm2469 = vweird.f32 %v2322
    %vm2470 = vweird.f32 %v2464
    %vm2471 = vmor %vm2469, %vm2470
    %v2472 = vsel %vm2471, %v2464, %v2468
    %v2473 = vand.u32 2147483647, %v2322
    %vm2474 = vcmp.eq.f32.partialorder %v2473, 8.507059e+37
    %v2475 = vand.u32 %v2322, 2147483648
    %v2476 = vor.u32 1.1754944e-38, %v2475
    %v2477 = vsel %vm2474, %v2476, %v2472
    %v2478 = vmul.f32 %v1755, %v2477
    %v2479 = vrcp.pop %v2323
    %v2480 = vmul.f32 %v2323, %v2479
    %v2481 = vsub.f32 1.0, %v2480
    %v2482 = vmul.f32 %v2479, %v2481
    %v2483 = vadd.f32 %v2479, %v2482
    %vm2484 = vweird.f32 %v2323
    %vm2485 = vweird.f32 %v2479
    %vm2486 = vmor %vm2484, %vm2485
    %v2487 = vsel %vm2486, %v2479, %v2483
    %v2488 = vand.u32 2147483647, %v2323
    %vm2489 = vcmp.eq.f32.partialorder %v2488, 8.507059e+37
    %v2490 = vand.u32 %v2323, 2147483648
    %v2491 = vor.u32 1.1754944e-38, %v2490
    %v2492 = vsel %vm2489, %v2491, %v2487
    %v2493 = vmul.f32 %v1804, %v2492
    %v2494 = vrcp.pop %v2324
    %v2495 = vmul.f32 %v2324, %v2494
    %v2496 = vsub.f32 1.0, %v2495
    %v2497 = vmul.f32 %v2494, %v2496
    %v2498 = vadd.f32 %v2494, %v2497
    %vm2499 = vweird.f32 %v2324
    %vm2500 = vweird.f32 %v2494
    %vm2501 = vmor %vm2499, %vm2500
    %v2502 = vsel %vm2501, %v2494, %v2498
    %v2503 = vand.u32 2147483647, %v2324
    %vm2504 = vcmp.eq.f32.partialorder %v2503, 8.507059e+37
    %v2505 = vand.u32 %v2324, 2147483648
    %v2506 = vor.u32 1.1754944e-38, %v2505
    %v2507 = vsel %vm2504, %v2506, %v2502
    %v2508 = vmul.f32 %v1853, %v2507
    %v2509 = vrcp.pop %v2325
    %v2510 = vmul.f32 %v2325, %v2509
    %v2511 = vsub.f32 1.0, %v2510
    %v2512 = vmul.f32 %v2509, %v2511
    %v2513 = vadd.f32 %v2509, %v2512
    %vm2514 = vweird.f32 %v2325
    %vm2515 = vweird.f32 %v2509
    %vm2516 = vmor %vm2514, %vm2515
    %v2517 = vsel %vm2516, %v2509, %v2513
    %v2518 = vand.u32 2147483647, %v2325
    %vm2519 = vcmp.eq.f32.partialorder %v2518, 8.507059e+37
    %v2520 = vand.u32 %v2325, 2147483648
    %v2521 = vor.u32 1.1754944e-38, %v2520
    %v2522 = vsel %vm2519, %v2521, %v2517
    %v2523 = vmul.f32 %v1902, %v2522
    %v2524 = vrcp.pop %v2326
    %v2525 = vmul.f32 %v2326, %v2524
    %v2526 = vsub.f32 1.0, %v2525
    %v2527 = vmul.f32 %v2524, %v2526
    %v2528 = vadd.f32 %v2524, %v2527
    %vm2529 = vweird.f32 %v2326
    %vm2530 = vweird.f32 %v2524
    %vm2531 = vmor %vm2529, %vm2530
    %v2532 = vsel %vm2531, %v2524, %v2528
    %v2533 = vand.u32 2147483647, %v2326
    %vm2534 = vcmp.eq.f32.partialorder %v2533, 8.507059e+37
    %v2535 = vand.u32 %v2326, 2147483648
    %v2536 = vor.u32 1.1754944e-38, %v2535
    %v2537 = vsel %vm2534, %v2536, %v2532
    %v2538 = vmul.f32 %v1951, %v2537
    %v2539 = vrcp.pop %v2327
    %v2540 = vmul.f32 %v2327, %v2539
    %v2541 = vsub.f32 1.0, %v2540
    %v2542 = vmul.f32 %v2539, %v2541
    %v2543 = vadd.f32 %v2539, %v2542
    %vm2544 = vweird.f32 %v2327
    %vm2545 = vweird.f32 %v2539
    %vm2546 = vmor %vm2544, %vm2545
    %v2547 = vsel %vm2546, %v2539, %v2543
    %v2548 = vand.u32 2147483647, %v2327
    %vm2549 = vcmp.eq.f32.partialorder %v2548, 8.507059e+37
    %v2550 = vand.u32 %v2327, 2147483648
    %v2551 = vor.u32 1.1754944e-38, %v2550
    %v2552 = vsel %vm2549, %v2551, %v2547
    %v2553 = vmul.f32 %v2000, %v2552
    %v2554 = vrcp.pop %v2328
    %v2555 = vmul.f32 %v2328, %v2554
    %v2556 = vsub.f32 1.0, %v2555
    %v2557 = vmul.f32 %v2554, %v2556
    %v2558 = vadd.f32 %v2554, %v2557
    %vm2559 = vweird.f32 %v2328
    %vm2560 = vweird.f32 %v2554
    %vm2561 = vmor %vm2559, %vm2560
    %v2562 = vsel %vm2561, %v2554, %v2558
    %v2563 = vand.u32 2147483647, %v2328
    %vm2564 = vcmp.eq.f32.partialorder %v2563, 8.507059e+37
    %v2565 = vand.u32 %v2328, 2147483648
    %v2566 = vor.u32 1.1754944e-38, %v2565
    %v2567 = vsel %vm2564, %v2566, %v2562
    %v2568 = vmul.f32 %v2049, %v2567
    %v2569 = vrcp.pop %v2329
    %v2570 = vmul.f32 %v2329, %v2569
    %v2571 = vsub.f32 1.0, %v2570
    %v2572 = vmul.f32 %v2569, %v2571
    %v2573 = vadd.f32 %v2569, %v2572
    %vm2574 = vweird.f32 %v2329
    %vm2575 = vweird.f32 %v2569
    %vm2576 = vmor %vm2574, %vm2575
    %v2577 = vsel %vm2576, %v2569, %v2573
    %v2578 = vand.u32 2147483647, %v2329
    %vm2579 = vcmp.eq.f32.partialorder %v2578, 8.507059e+37
    %v2580 = vand.u32 %v2329, 2147483648
    %v2581 = vor.u32 1.1754944e-38, %v2580
    %v2582 = vsel %vm2579, %v2581, %v2577
    %v2583 = vmul.f32 %v1708, %v2582
    %v2584 = vrcp.pop %v2330
    %v2585 = vmul.f32 %v2330, %v2584
    %v2586 = vsub.f32 1.0, %v2585
    %v2587 = vmul.f32 %v2584, %v2586
    %v2588 = vadd.f32 %v2584, %v2587
    %vm2589 = vweird.f32 %v2330
    %vm2590 = vweird.f32 %v2584
    %vm2591 = vmor %vm2589, %vm2590
    %v2592 = vsel %vm2591, %v2584, %v2588
    %v2593 = vand.u32 2147483647, %v2330
    %vm2594 = vcmp.eq.f32.partialorder %v2593, 8.507059e+37
    %v2595 = vand.u32 %v2330, 2147483648
    %v2596 = vor.u32 1.1754944e-38, %v2595
    %v2597 = vsel %vm2594, %v2596, %v2592
    %v2598 = vmul.f32 %v1757, %v2597
    %v2599 = vrcp.pop %v2331
    %v2600 = vmul.f32 %v2331, %v2599
    %v2601 = vsub.f32 1.0, %v2600
    %v2602 = vmul.f32 %v2599, %v2601
    %v2603 = vadd.f32 %v2599, %v2602
    %vm2604 = vweird.f32 %v2331
    %vm2605 = vweird.f32 %v2599
    %vm2606 = vmor %vm2604, %vm2605
    %v2607 = vsel %vm2606, %v2599, %v2603
    %v2608 = vand.u32 2147483647, %v2331
    %vm2609 = vcmp.eq.f32.partialorder %v2608, 8.507059e+37
    %v2610 = vand.u32 %v2331, 2147483648
    %v2611 = vor.u32 1.1754944e-38, %v2610
    %v2612 = vsel %vm2609, %v2611, %v2607
    %v2613 = vmul.f32 %v1806, %v2612
    %v2614 = vrcp.pop %v2332
    %v2615 = vmul.f32 %v2332, %v2614
    %v2616 = vsub.f32 1.0, %v2615
    %v2617 = vmul.f32 %v2614, %v2616
    %v2618 = vadd.f32 %v2614, %v2617
    %vm2619 = vweird.f32 %v2332
    %vm2620 = vweird.f32 %v2614
    %vm2621 = vmor %vm2619, %vm2620
    %v2622 = vsel %vm2621, %v2614, %v2618
    %v2623 = vand.u32 2147483647, %v2332
    %vm2624 = vcmp.eq.f32.partialorder %v2623, 8.507059e+37
    %v2625 = vand.u32 %v2332, 2147483648
    %v2626 = vor.u32 1.1754944e-38, %v2625
    %v2627 = vsel %vm2624, %v2626, %v2622
    %v2628 = vmul.f32 %v1855, %v2627
    %v2629 = vrcp.pop %v2333
    %v2630 = vmul.f32 %v2333, %v2629
    %v2631 = vsub.f32 1.0, %v2630
    %v2632 = vmul.f32 %v2629, %v2631
    %v2633 = vadd.f32 %v2629, %v2632
    %vm2634 = vweird.f32 %v2333
    %vm2635 = vweird.f32 %v2629
    %vm2636 = vmor %vm2634, %vm2635
    %v2637 = vsel %vm2636, %v2629, %v2633
    %v2638 = vand.u32 2147483647, %v2333
    %vm2639 = vcmp.eq.f32.partialorder %v2638, 8.507059e+37
    %v2640 = vand.u32 %v2333, 2147483648
    %v2641 = vor.u32 1.1754944e-38, %v2640
    %v2642 = vsel %vm2639, %v2641, %v2637
    %v2643 = vmul.f32 %v1904, %v2642
    %v2644 = vrcp.pop %v2334
    %v2645 = vmul.f32 %v2334, %v2644
    %v2646 = vsub.f32 1.0, %v2645
    %v2647 = vmul.f32 %v2644, %v2646
    %v2648 = vadd.f32 %v2644, %v2647
    %vm2649 = vweird.f32 %v2334
    %vm2650 = vweird.f32 %v2644
    %vm2651 = vmor %vm2649, %vm2650
    %v2652 = vsel %vm2651, %v2644, %v2648
    %v2653 = vand.u32 2147483647, %v2334
    %vm2654 = vcmp.eq.f32.partialorder %v2653, 8.507059e+37
    %v2655 = vand.u32 %v2334, 2147483648
    %v2656 = vor.u32 1.1754944e-38, %v2655
    %v2657 = vsel %vm2654, %v2656, %v2652
    %v2658 = vmul.f32 %v1953, %v2657
    %v2659 = vrcp.pop %v2335
    %v2660 = vmul.f32 %v2335, %v2659
    %v2661 = vsub.f32 1.0, %v2660
    %v2662 = vmul.f32 %v2659, %v2661
    %v2663 = vadd.f32 %v2659, %v2662
    %vm2664 = vweird.f32 %v2335
    %vm2665 = vweird.f32 %v2659
    %vm2666 = vmor %vm2664, %vm2665
    %v2667 = vsel %vm2666, %v2659, %v2663
    %v2668 = vand.u32 2147483647, %v2335
    %vm2669 = vcmp.eq.f32.partialorder %v2668, 8.507059e+37
    %v2670 = vand.u32 %v2335, 2147483648
    %v2671 = vor.u32 1.1754944e-38, %v2670
    %v2672 = vsel %vm2669, %v2671, %v2667
    %v2673 = vmul.f32 %v2002, %v2672
    %v2674 = vrcp.pop %v2336
    %v2675 = vmul.f32 %v2336, %v2674
    %v2676 = vsub.f32 1.0, %v2675
    %v2677 = vmul.f32 %v2674, %v2676
    %v2678 = vadd.f32 %v2674, %v2677
    %vm2679 = vweird.f32 %v2336
    %vm2680 = vweird.f32 %v2674
    %vm2681 = vmor %vm2679, %vm2680
    %v2682 = vsel %vm2681, %v2674, %v2678
    %v2683 = vand.u32 2147483647, %v2336
    %vm2684 = vcmp.eq.f32.partialorder %v2683, 8.507059e+37
    %v2685 = vand.u32 %v2336, 2147483648
    %v2686 = vor.u32 1.1754944e-38, %v2685
    %v2687 = vsel %vm2684, %v2686, %v2682
    %v2688 = vmul.f32 %v2051, %v2687
    %v2689 = vrcp.pop %v2337
    %v2690 = vmul.f32 %v2337, %v2689
    %v2691 = vsub.f32 1.0, %v2690
    %v2692 = vmul.f32 %v2689, %v2691
    %v2693 = vadd.f32 %v2689, %v2692
    %vm2694 = vweird.f32 %v2337
    %vm2695 = vweird.f32 %v2689
    %vm2696 = vmor %vm2694, %vm2695
    %v2697 = vsel %vm2696, %v2689, %v2693
    %v2698 = vand.u32 2147483647, %v2337
    %vm2699 = vcmp.eq.f32.partialorder %v2698, 8.507059e+37
    %v2700 = vand.u32 %v2337, 2147483648
    %v2701 = vor.u32 1.1754944e-38, %v2700
    %v2702 = vsel %vm2699, %v2701, %v2697
    %v2703 = vmul.f32 %v1711, %v2702
    %v2704 = vrcp.pop %v2338
    %v2705 = vmul.f32 %v2338, %v2704
    %v2706 = vsub.f32 1.0, %v2705
    %v2707 = vmul.f32 %v2704, %v2706
    %v2708 = vadd.f32 %v2704, %v2707
    %vm2709 = vweird.f32 %v2338
    %vm2710 = vweird.f32 %v2704
    %vm2711 = vmor %vm2709, %vm2710
    %v2712 = vsel %vm2711, %v2704, %v2708
    %v2713 = vand.u32 2147483647, %v2338
    %vm2714 = vcmp.eq.f32.partialorder %v2713, 8.507059e+37
    %v2715 = vand.u32 %v2338, 2147483648
    %v2716 = vor.u32 1.1754944e-38, %v2715
    %v2717 = vsel %vm2714, %v2716, %v2712
    %v2718 = vmul.f32 %v1760, %v2717
    %v2719 = vrcp.pop %v2339
    %v2720 = vmul.f32 %v2339, %v2719
    %v2721 = vsub.f32 1.0, %v2720
    %v2722 = vmul.f32 %v2719, %v2721
    %v2723 = vadd.f32 %v2719, %v2722
    %vm2724 = vweird.f32 %v2339
    %vm2725 = vweird.f32 %v2719
    %vm2726 = vmor %vm2724, %vm2725
    %v2727 = vsel %vm2726, %v2719, %v2723
    %v2728 = vand.u32 2147483647, %v2339
    %vm2729 = vcmp.eq.f32.partialorder %v2728, 8.507059e+37
    %v2730 = vand.u32 %v2339, 2147483648
    %v2731 = vor.u32 1.1754944e-38, %v2730
    %v2732 = vsel %vm2729, %v2731, %v2727
    %v2733 = vmul.f32 %v1809, %v2732
    %v2734 = vrcp.pop %v2340
    %v2735 = vmul.f32 %v2340, %v2734
    %v2736 = vsub.f32 1.0, %v2735
    %v2737 = vmul.f32 %v2734, %v2736
    %v2738 = vadd.f32 %v2734, %v2737
    %vm2739 = vweird.f32 %v2340
    %vm2740 = vweird.f32 %v2734
    %vm2741 = vmor %vm2739, %vm2740
    %v2742 = vsel %vm2741, %v2734, %v2738
    %v2743 = vand.u32 2147483647, %v2340
    %vm2744 = vcmp.eq.f32.partialorder %v2743, 8.507059e+37
    %v2745 = vand.u32 %v2340, 2147483648
    %v2746 = vor.u32 1.1754944e-38, %v2745
    %v2747 = vsel %vm2744, %v2746, %v2742
    %v2748 = vmul.f32 %v1858, %v2747
    %v2749 = vrcp.pop %v2341
    %v2750 = vmul.f32 %v2341, %v2749
    %v2751 = vsub.f32 1.0, %v2750
    %v2752 = vmul.f32 %v2749, %v2751
    %v2753 = vadd.f32 %v2749, %v2752
    %vm2754 = vweird.f32 %v2341
    %vm2755 = vweird.f32 %v2749
    %vm2756 = vmor %vm2754, %vm2755
    %v2757 = vsel %vm2756, %v2749, %v2753
    %v2758 = vand.u32 2147483647, %v2341
    %vm2759 = vcmp.eq.f32.partialorder %v2758, 8.507059e+37
    %v2760 = vand.u32 %v2341, 2147483648
    %v2761 = vor.u32 1.1754944e-38, %v2760
    %v2762 = vsel %vm2759, %v2761, %v2757
    %v2763 = vmul.f32 %v1907, %v2762
    %v2764 = vrcp.pop %v2342
    %v2765 = vmul.f32 %v2342, %v2764
    %v2766 = vsub.f32 1.0, %v2765
    %v2767 = vmul.f32 %v2764, %v2766
    %v2768 = vadd.f32 %v2764, %v2767
    %vm2769 = vweird.f32 %v2342
    %vm2770 = vweird.f32 %v2764
    %vm2771 = vmor %vm2769, %vm2770
    %v2772 = vsel %vm2771, %v2764, %v2768
    %v2773 = vand.u32 2147483647, %v2342
    %vm2774 = vcmp.eq.f32.partialorder %v2773, 8.507059e+37
    %v2775 = vand.u32 %v2342, 2147483648
    %v2776 = vor.u32 1.1754944e-38, %v2775
    %v2777 = vsel %vm2774, %v2776, %v2772
    %v2778 = vmul.f32 %v1956, %v2777
    %v2779 = vrcp.pop %v2343
    %v2780 = vmul.f32 %v2343, %v2779
    %v2781 = vsub.f32 1.0, %v2780
    %v2782 = vmul.f32 %v2779, %v2781
    %v2783 = vadd.f32 %v2779, %v2782
    %vm2784 = vweird.f32 %v2343
    %vm2785 = vweird.f32 %v2779
    %vm2786 = vmor %vm2784, %vm2785
    %v2787 = vsel %vm2786, %v2779, %v2783
    %v2788 = vand.u32 2147483647, %v2343
    %vm2789 = vcmp.eq.f32.partialorder %v2788, 8.507059e+37
    %v2790 = vand.u32 %v2343, 2147483648
    %v2791 = vor.u32 1.1754944e-38, %v2790
    %v2792 = vsel %vm2789, %v2791, %v2787
    %v2793 = vmul.f32 %v2005, %v2792
    %v2794 = vrcp.pop %v2344
    %v2795 = vmul.f32 %v2344, %v2794
    %v2796 = vsub.f32 1.0, %v2795
    %v2797 = vmul.f32 %v2794, %v2796
    %v2798 = vadd.f32 %v2794, %v2797
    %vm2799 = vweird.f32 %v2344
    %vm2800 = vweird.f32 %v2794
    %vm2801 = vmor %vm2799, %vm2800
    %v2802 = vsel %vm2801, %v2794, %v2798
    %v2803 = vand.u32 2147483647, %v2344
    %vm2804 = vcmp.eq.f32.partialorder %v2803, 8.507059e+37
    %v2805 = vand.u32 %v2344, 2147483648
    %v2806 = vor.u32 1.1754944e-38, %v2805
    %v2807 = vsel %vm2804, %v2806, %v2802
    %v2808 = vmul.f32 %v2054, %v2807
    %v2809 = vrcp.pop %v2345
    %v2810 = vmul.f32 %v2345, %v2809
    %v2811 = vsub.f32 1.0, %v2810
    %v2812 = vmul.f32 %v2809, %v2811
    %v2813 = vadd.f32 %v2809, %v2812
    %vm2814 = vweird.f32 %v2345
    %vm2815 = vweird.f32 %v2809
    %vm2816 = vmor %vm2814, %vm2815
    %v2817 = vsel %vm2816, %v2809, %v2813
    %v2818 = vand.u32 2147483647, %v2345
    %vm2819 = vcmp.eq.f32.partialorder %v2818, 8.507059e+37
    %v2820 = vand.u32 %v2345, 2147483648
    %v2821 = vor.u32 1.1754944e-38, %v2820
    %v2822 = vsel %vm2819, %v2821, %v2817
    %v2823 = vmul.f32 %v1713, %v2822
    %v2824 = vrcp.pop %v2346
    %v2825 = vmul.f32 %v2346, %v2824
    %v2826 = vsub.f32 1.0, %v2825
    %v2827 = vmul.f32 %v2824, %v2826
    %v2828 = vadd.f32 %v2824, %v2827
    %vm2829 = vweird.f32 %v2346
    %vm2830 = vweird.f32 %v2824
    %vm2831 = vmor %vm2829, %vm2830
    %v2832 = vsel %vm2831, %v2824, %v2828
    %v2833 = vand.u32 2147483647, %v2346
    %vm2834 = vcmp.eq.f32.partialorder %v2833, 8.507059e+37
    %v2835 = vand.u32 %v2346, 2147483648
    %v2836 = vor.u32 1.1754944e-38, %v2835
    %v2837 = vsel %vm2834, %v2836, %v2832
    %v2838 = vmul.f32 %v1762, %v2837
    %v2839 = vrcp.pop %v2347
    %v2840 = vmul.f32 %v2347, %v2839
    %v2841 = vsub.f32 1.0, %v2840
    %v2842 = vmul.f32 %v2839, %v2841
    %v2843 = vadd.f32 %v2839, %v2842
    %vm2844 = vweird.f32 %v2347
    %vm2845 = vweird.f32 %v2839
    %vm2846 = vmor %vm2844, %vm2845
    %v2847 = vsel %vm2846, %v2839, %v2843
    %v2848 = vand.u32 2147483647, %v2347
    %vm2849 = vcmp.eq.f32.partialorder %v2848, 8.507059e+37
    %v2850 = vand.u32 %v2347, 2147483648
    %v2851 = vor.u32 1.1754944e-38, %v2850
    %v2852 = vsel %vm2849, %v2851, %v2847
    %v2853 = vmul.f32 %v1811, %v2852
    %v2854 = vrcp.pop %v2348
    %v2855 = vmul.f32 %v2348, %v2854
    %v2856 = vsub.f32 1.0, %v2855
    %v2857 = vmul.f32 %v2854, %v2856
    %v2858 = vadd.f32 %v2854, %v2857
    %vm2859 = vweird.f32 %v2348
    %vm2860 = vweird.f32 %v2854
    %vm2861 = vmor %vm2859, %vm2860
    %v2862 = vsel %vm2861, %v2854, %v2858
    %v2863 = vand.u32 2147483647, %v2348
    %vm2864 = vcmp.eq.f32.partialorder %v2863, 8.507059e+37
    %v2865 = vand.u32 %v2348, 2147483648
    %v2866 = vor.u32 1.1754944e-38, %v2865
    %v2867 = vsel %vm2864, %v2866, %v2862
    %v2868 = vmul.f32 %v1860, %v2867
    %v2869 = vrcp.pop %v2349
    %v2870 = vmul.f32 %v2349, %v2869
    %v2871 = vsub.f32 1.0, %v2870
    %v2872 = vmul.f32 %v2869, %v2871
    %v2873 = vadd.f32 %v2869, %v2872
    %vm2874 = vweird.f32 %v2349
    %vm2875 = vweird.f32 %v2869
    %vm2876 = vmor %vm2874, %vm2875
    %v2877 = vsel %vm2876, %v2869, %v2873
    %v2878 = vand.u32 2147483647, %v2349
    %vm2879 = vcmp.eq.f32.partialorder %v2878, 8.507059e+37
    %v2880 = vand.u32 %v2349, 2147483648
    %v2881 = vor.u32 1.1754944e-38, %v2880
    %v2882 = vsel %vm2879, %v2881, %v2877
    %v2883 = vmul.f32 %v1909, %v2882
    %v2884 = vrcp.pop %v2350
    %v2885 = vmul.f32 %v2350, %v2884
    %v2886 = vsub.f32 1.0, %v2885
    %v2887 = vmul.f32 %v2884, %v2886
    %v2888 = vadd.f32 %v2884, %v2887
    %vm2889 = vweird.f32 %v2350
    %vm2890 = vweird.f32 %v2884
    %vm2891 = vmor %vm2889, %vm2890
    %v2892 = vsel %vm2891, %v2884, %v2888
    %v2893 = vand.u32 2147483647, %v2350
    %vm2894 = vcmp.eq.f32.partialorder %v2893, 8.507059e+37
    %v2895 = vand.u32 %v2350, 2147483648
    %v2896 = vor.u32 1.1754944e-38, %v2895
    %v2897 = vsel %vm2894, %v2896, %v2892
    %v2898 = vmul.f32 %v1958, %v2897
    %v2899 = vrcp.pop %v2351
    %v2900 = vmul.f32 %v2351, %v2899
    %v2901 = vsub.f32 1.0, %v2900
    %v2902 = vmul.f32 %v2899, %v2901
    %v2903 = vadd.f32 %v2899, %v2902
    %vm2904 = vweird.f32 %v2351
    %vm2905 = vweird.f32 %v2899
    %vm2906 = vmor %vm2904, %vm2905
    %v2907 = vsel %vm2906, %v2899, %v2903
    %v2908 = vand.u32 2147483647, %v2351
    %vm2909 = vcmp.eq.f32.partialorder %v2908, 8.507059e+37
    %v2910 = vand.u32 %v2351, 2147483648
    %v2911 = vor.u32 1.1754944e-38, %v2910
    %v2912 = vsel %vm2909, %v2911, %v2907
    %v2913 = vmul.f32 %v2007, %v2912
    %v2914 = vrcp.pop %v2352
    %v2915 = vmul.f32 %v2352, %v2914
    %v2916 = vsub.f32 1.0, %v2915
    %v2917 = vmul.f32 %v2914, %v2916
    %v2918 = vadd.f32 %v2914, %v2917
    %vm2919 = vweird.f32 %v2352
    %vm2920 = vweird.f32 %v2914
    %vm2921 = vmor %vm2919, %vm2920
    %v2922 = vsel %vm2921, %v2914, %v2918
    %v2923 = vand.u32 2147483647, %v2352
    %vm2924 = vcmp.eq.f32.partialorder %v2923, 8.507059e+37
    %v2925 = vand.u32 %v2352, 2147483648
    %v2926 = vor.u32 1.1754944e-38, %v2925
    %v2927 = vsel %vm2924, %v2926, %v2922
    %v2928 = vmul.f32 %v2056, %v2927
    %v2929 = vrcp.pop %v2353
    %v2930 = vmul.f32 %v2353, %v2929
    %v2931 = vsub.f32 1.0, %v2930
    %v2932 = vmul.f32 %v2929, %v2931
    %v2933 = vadd.f32 %v2929, %v2932
    %vm2934 = vweird.f32 %v2353
    %vm2935 = vweird.f32 %v2929
    %vm2936 = vmor %vm2934, %vm2935
    %v2937 = vsel %vm2936, %v2929, %v2933
    %v2938 = vand.u32 2147483647, %v2353
    %vm2939 = vcmp.eq.f32.partialorder %v2938, 8.507059e+37
    %v2940 = vand.u32 %v2353, 2147483648
    %v2941 = vor.u32 1.1754944e-38, %v2940
    %v2942 = vsel %vm2939, %v2941, %v2937
    %v2943 = vmul.f32 %v1716, %v2942
    %v2944 = vrcp.pop %v2354
    %v2945 = vmul.f32 %v2354, %v2944
    %v2946 = vsub.f32 1.0, %v2945
    %v2947 = vmul.f32 %v2944, %v2946
    %v2948 = vadd.f32 %v2944, %v2947
    %vm2949 = vweird.f32 %v2354
    %vm2950 = vweird.f32 %v2944
    %vm2951 = vmor %vm2949, %vm2950
    %v2952 = vsel %vm2951, %v2944, %v2948
    %v2953 = vand.u32 2147483647, %v2354
    %vm2954 = vcmp.eq.f32.partialorder %v2953, 8.507059e+37
    %v2955 = vand.u32 %v2354, 2147483648
    %v2956 = vor.u32 1.1754944e-38, %v2955
    %v2957 = vsel %vm2954, %v2956, %v2952
    %v2958 = vmul.f32 %v1765, %v2957
    %v2959 = vrcp.pop %v2355
    %v2960 = vmul.f32 %v2355, %v2959
    %v2961 = vsub.f32 1.0, %v2960
    %v2962 = vmul.f32 %v2959, %v2961
    %v2963 = vadd.f32 %v2959, %v2962
    %vm2964 = vweird.f32 %v2355
    %vm2965 = vweird.f32 %v2959
    %vm2966 = vmor %vm2964, %vm2965
    %v2967 = vsel %vm2966, %v2959, %v2963
    %v2968 = vand.u32 2147483647, %v2355
    %vm2969 = vcmp.eq.f32.partialorder %v2968, 8.507059e+37
    %v2970 = vand.u32 %v2355, 2147483648
    %v2971 = vor.u32 1.1754944e-38, %v2970
    %v2972 = vsel %vm2969, %v2971, %v2967
    %v2973 = vmul.f32 %v1814, %v2972
    %v2974 = vrcp.pop %v2356
    %v2975 = vmul.f32 %v2356, %v2974
    %v2976 = vsub.f32 1.0, %v2975
    %v2977 = vmul.f32 %v2974, %v2976
    %v2978 = vadd.f32 %v2974, %v2977
    %vm2979 = vweird.f32 %v2356
    %vm2980 = vweird.f32 %v2974
    %vm2981 = vmor %vm2979, %vm2980
    %v2982 = vsel %vm2981, %v2974, %v2978
    %v2983 = vand.u32 2147483647, %v2356
    %vm2984 = vcmp.eq.f32.partialorder %v2983, 8.507059e+37
    %v2985 = vand.u32 %v2356, 2147483648
    %v2986 = vor.u32 1.1754944e-38, %v2985
    %v2987 = vsel %vm2984, %v2986, %v2982
    %v2988 = vmul.f32 %v1863, %v2987
    %v2989 = vrcp.pop %v2357
    %v2990 = vmul.f32 %v2357, %v2989
    %v2991 = vsub.f32 1.0, %v2990
    %v2992 = vmul.f32 %v2989, %v2991
    %v2993 = vadd.f32 %v2989, %v2992
    %vm2994 = vweird.f32 %v2357
    %vm2995 = vweird.f32 %v2989
    %vm2996 = vmor %vm2994, %vm2995
    %v2997 = vsel %vm2996, %v2989, %v2993
    %v2998 = vand.u32 2147483647, %v2357
    %vm2999 = vcmp.eq.f32.partialorder %v2998, 8.507059e+37
    %v3000 = vand.u32 %v2357, 2147483648
    %v3001 = vor.u32 1.1754944e-38, %v3000
    %v3002 = vsel %vm2999, %v3001, %v2997
    %v3003 = vmul.f32 %v1912, %v3002
    %v3004 = vrcp.pop %v2358
    %v3005 = vmul.f32 %v2358, %v3004
    %v3006 = vsub.f32 1.0, %v3005
    %v3007 = vmul.f32 %v3004, %v3006
    %v3008 = vadd.f32 %v3004, %v3007
    %vm3009 = vweird.f32 %v2358
    %vm3010 = vweird.f32 %v3004
    %vm3011 = vmor %vm3009, %vm3010
    %v3012 = vsel %vm3011, %v3004, %v3008
    %v3013 = vand.u32 2147483647, %v2358
    %vm3014 = vcmp.eq.f32.partialorder %v3013, 8.507059e+37
    %v3015 = vand.u32 %v2358, 2147483648
    %v3016 = vor.u32 1.1754944e-38, %v3015
    %v3017 = vsel %vm3014, %v3016, %v3012
    %v3018 = vmul.f32 %v1961, %v3017
    %v3019 = vrcp.pop %v2359
    %v3020 = vmul.f32 %v2359, %v3019
    %v3021 = vsub.f32 1.0, %v3020
    %v3022 = vmul.f32 %v3019, %v3021
    %v3023 = vadd.f32 %v3019, %v3022
    %vm3024 = vweird.f32 %v2359
    %vm3025 = vweird.f32 %v3019
    %vm3026 = vmor %vm3024, %vm3025
    %v3027 = vsel %vm3026, %v3019, %v3023
    %v3028 = vand.u32 2147483647, %v2359
    %vm3029 = vcmp.eq.f32.partialorder %v3028, 8.507059e+37
    %v3030 = vand.u32 %v2359, 2147483648
    %v3031 = vor.u32 1.1754944e-38, %v3030
    %v3032 = vsel %vm3029, %v3031, %v3027
    %v3033 = vmul.f32 %v2010, %v3032
    %v3034 = vrcp.pop %v2360
    %v3035 = vmul.f32 %v2360, %v3034
    %v3036 = vsub.f32 1.0, %v3035
    %v3037 = vmul.f32 %v3034, %v3036
    %v3038 = vadd.f32 %v3034, %v3037
    %vm3039 = vweird.f32 %v2360
    %vm3040 = vweird.f32 %v3034
    %vm3041 = vmor %vm3039, %vm3040
    %v3042 = vsel %vm3041, %v3034, %v3038
    %v3043 = vand.u32 2147483647, %v2360
    %vm3044 = vcmp.eq.f32.partialorder %v3043, 8.507059e+37
    %v3045 = vand.u32 %v2360, 2147483648
    %v3046 = vor.u32 1.1754944e-38, %v3045
    %v3047 = vsel %vm3044, %v3046, %v3042
    %v3048 = vmul.f32 %v2059, %v3047
    %v3049 = vrcp.pop %v2361
    %v3050 = vmul.f32 %v2361, %v3049
    %v3051 = vsub.f32 1.0, %v3050
    %v3052 = vmul.f32 %v3049, %v3051
    %v3053 = vadd.f32 %v3049, %v3052
    %vm3054 = vweird.f32 %v2361
    %vm3055 = vweird.f32 %v3049
    %vm3056 = vmor %vm3054, %vm3055
    %v3057 = vsel %vm3056, %v3049, %v3053
    %v3058 = vand.u32 2147483647, %v2361
    %vm3059 = vcmp.eq.f32.partialorder %v3058, 8.507059e+37
    %v3060 = vand.u32 %v2361, 2147483648
    %v3061 = vor.u32 1.1754944e-38, %v3060
    %v3062 = vsel %vm3059, %v3061, %v3057
    %v3063 = vmul.f32 %v1718, %v3062
    %v3064 = vrcp.pop %v2362
    %v3065 = vmul.f32 %v2362, %v3064
    %v3066 = vsub.f32 1.0, %v3065
    %v3067 = vmul.f32 %v3064, %v3066
    %v3068 = vadd.f32 %v3064, %v3067
    %vm3069 = vweird.f32 %v2362
    %vm3070 = vweird.f32 %v3064
    %vm3071 = vmor %vm3069, %vm3070
    %v3072 = vsel %vm3071, %v3064, %v3068
    %v3073 = vand.u32 2147483647, %v2362
    %vm3074 = vcmp.eq.f32.partialorder %v3073, 8.507059e+37
    %v3075 = vand.u32 %v2362, 2147483648
    %v3076 = vor.u32 1.1754944e-38, %v3075
    %v3077 = vsel %vm3074, %v3076, %v3072
    %v3078 = vmul.f32 %v1767, %v3077
    %v3079 = vrcp.pop %v2363
    %v3080 = vmul.f32 %v2363, %v3079
    %v3081 = vsub.f32 1.0, %v3080
    %v3082 = vmul.f32 %v3079, %v3081
    %v3083 = vadd.f32 %v3079, %v3082
    %vm3084 = vweird.f32 %v2363
    %vm3085 = vweird.f32 %v3079
    %vm3086 = vmor %vm3084, %vm3085
    %v3087 = vsel %vm3086, %v3079, %v3083
    %v3088 = vand.u32 2147483647, %v2363
    %vm3089 = vcmp.eq.f32.partialorder %v3088, 8.507059e+37
    %v3090 = vand.u32 %v2363, 2147483648
    %v3091 = vor.u32 1.1754944e-38, %v3090
    %v3092 = vsel %vm3089, %v3091, %v3087
    %v3093 = vmul.f32 %v1816, %v3092
    %v3094 = vrcp.pop %v2364
    %v3095 = vmul.f32 %v2364, %v3094
    %v3096 = vsub.f32 1.0, %v3095
    %v3097 = vmul.f32 %v3094, %v3096
    %v3098 = vadd.f32 %v3094, %v3097
    %vm3099 = vweird.f32 %v2364
    %vm3100 = vweird.f32 %v3094
    %vm3101 = vmor %vm3099, %vm3100
    %v3102 = vsel %vm3101, %v3094, %v3098
    %v3103 = vand.u32 2147483647, %v2364
    %vm3104 = vcmp.eq.f32.partialorder %v3103, 8.507059e+37
    %v3105 = vand.u32 %v2364, 2147483648
    %v3106 = vor.u32 1.1754944e-38, %v3105
    %v3107 = vsel %vm3104, %v3106, %v3102
    %v3108 = vmul.f32 %v1865, %v3107
    %v3109 = vrcp.pop %v2365
    %v3110 = vmul.f32 %v2365, %v3109
    %v3111 = vsub.f32 1.0, %v3110
    %v3112 = vmul.f32 %v3109, %v3111
    %v3113 = vadd.f32 %v3109, %v3112
    %vm3114 = vweird.f32 %v2365
    %vm3115 = vweird.f32 %v3109
    %vm3116 = vmor %vm3114, %vm3115
    %v3117 = vsel %vm3116, %v3109, %v3113
    %v3118 = vand.u32 2147483647, %v2365
    %vm3119 = vcmp.eq.f32.partialorder %v3118, 8.507059e+37
    %v3120 = vand.u32 %v2365, 2147483648
    %v3121 = vor.u32 1.1754944e-38, %v3120
    %v3122 = vsel %vm3119, %v3121, %v3117
    %v3123 = vmul.f32 %v1914, %v3122
    %v3124 = vrcp.pop %v2366
    %v3125 = vmul.f32 %v2366, %v3124
    %v3126 = vsub.f32 1.0, %v3125
    %v3127 = vmul.f32 %v3124, %v3126
    %v3128 = vadd.f32 %v3124, %v3127
    %vm3129 = vweird.f32 %v2366
    %vm3130 = vweird.f32 %v3124
    %vm3131 = vmor %vm3129, %vm3130
    %v3132 = vsel %vm3131, %v3124, %v3128
    %v3133 = vand.u32 2147483647, %v2366
    %vm3134 = vcmp.eq.f32.partialorder %v3133, 8.507059e+37
    %v3135 = vand.u32 %v2366, 2147483648
    %v3136 = vor.u32 1.1754944e-38, %v3135
    %v3137 = vsel %vm3134, %v3136, %v3132
    %v3138 = vmul.f32 %v1963, %v3137
    %v3139 = vrcp.pop %v2367
    %v3140 = vmul.f32 %v2367, %v3139
    %v3141 = vsub.f32 1.0, %v3140
    %v3142 = vmul.f32 %v3139, %v3141
    %v3143 = vadd.f32 %v3139, %v3142
    %vm3144 = vweird.f32 %v2367
    %vm3145 = vweird.f32 %v3139
    %vm3146 = vmor %vm3144, %vm3145
    %v3147 = vsel %vm3146, %v3139, %v3143
    %v3148 = vand.u32 2147483647, %v2367
    %vm3149 = vcmp.eq.f32.partialorder %v3148, 8.507059e+37
    %v3150 = vand.u32 %v2367, 2147483648
    %v3151 = vor.u32 1.1754944e-38, %v3150
    %v3152 = vsel %vm3149, %v3151, %v3147
    %v3153 = vmul.f32 %v2012, %v3152
    %v3154 = vrcp.pop %v2368
    %v3155 = vmul.f32 %v2368, %v3154
    %v3156 = vsub.f32 1.0, %v3155
    %v3157 = vmul.f32 %v3154, %v3156
    %v3158 = vadd.f32 %v3154, %v3157
    %vm3159 = vweird.f32 %v2368
    %vm3160 = vweird.f32 %v3154
    %vm3161 = vmor %vm3159, %vm3160
    %v3162 = vsel %vm3161, %v3154, %v3158
    %v3163 = vand.u32 2147483647, %v2368
    %vm3164 = vcmp.eq.f32.partialorder %v3163, 8.507059e+37
    %v3165 = vand.u32 %v2368, 2147483648
    %v3166 = vor.u32 1.1754944e-38, %v3165
    %v3167 = vsel %vm3164, %v3166, %v3162
    %v3168 = vmul.f32 %v2061, %v3167
    %v3169 = vrcp.pop %v2369
    %v3170 = vmul.f32 %v2369, %v3169
    %v3171 = vsub.f32 1.0, %v3170
    %v3172 = vmul.f32 %v3169, %v3171
    %v3173 = vadd.f32 %v3169, %v3172
    %vm3174 = vweird.f32 %v2369
    %vm3175 = vweird.f32 %v3169
    %vm3176 = vmor %vm3174, %vm3175
    %v3177 = vsel %vm3176, %v3169, %v3173
    %v3178 = vand.u32 2147483647, %v2369
    %vm3179 = vcmp.eq.f32.partialorder %v3178, 8.507059e+37
    %v3180 = vand.u32 %v2369, 2147483648
    %v3181 = vor.u32 1.1754944e-38, %v3180
    %v3182 = vsel %vm3179, %v3181, %v3177
    %v3183 = vmul.f32 %v1721, %v3182
    %v3184 = vrcp.pop %v2370
    %v3185 = vmul.f32 %v2370, %v3184
    %v3186 = vsub.f32 1.0, %v3185
    %v3187 = vmul.f32 %v3184, %v3186
    %v3188 = vadd.f32 %v3184, %v3187
    %vm3189 = vweird.f32 %v2370
    %vm3190 = vweird.f32 %v3184
    %vm3191 = vmor %vm3189, %vm3190
    %v3192 = vsel %vm3191, %v3184, %v3188
    %v3193 = vand.u32 2147483647, %v2370
    %vm3194 = vcmp.eq.f32.partialorder %v3193, 8.507059e+37
    %v3195 = vand.u32 %v2370, 2147483648
    %v3196 = vor.u32 1.1754944e-38, %v3195
    %v3197 = vsel %vm3194, %v3196, %v3192
    %v3198 = vmul.f32 %v1770, %v3197
    %v3199 = vrcp.pop %v2371
    %v3200 = vmul.f32 %v2371, %v3199
    %v3201 = vsub.f32 1.0, %v3200
    %v3202 = vmul.f32 %v3199, %v3201
    %v3203 = vadd.f32 %v3199, %v3202
    %vm3204 = vweird.f32 %v2371
    %vm3205 = vweird.f32 %v3199
    %vm3206 = vmor %vm3204, %vm3205
    %v3207 = vsel %vm3206, %v3199, %v3203
    %v3208 = vand.u32 2147483647, %v2371
    %vm3209 = vcmp.eq.f32.partialorder %v3208, 8.507059e+37
    %v3210 = vand.u32 %v2371, 2147483648
    %v3211 = vor.u32 1.1754944e-38, %v3210
    %v3212 = vsel %vm3209, %v3211, %v3207
    %v3213 = vmul.f32 %v1819, %v3212
    %v3214 = vrcp.pop %v2372
    %v3215 = vmul.f32 %v2372, %v3214
    %v3216 = vsub.f32 1.0, %v3215
    %v3217 = vmul.f32 %v3214, %v3216
    %v3218 = vadd.f32 %v3214, %v3217
    %vm3219 = vweird.f32 %v2372
    %vm3220 = vweird.f32 %v3214
    %vm3221 = vmor %vm3219, %vm3220
    %v3222 = vsel %vm3221, %v3214, %v3218
    %v3223 = vand.u32 2147483647, %v2372
    %vm3224 = vcmp.eq.f32.partialorder %v3223, 8.507059e+37
    %v3225 = vand.u32 %v2372, 2147483648
    %v3226 = vor.u32 1.1754944e-38, %v3225
    %v3227 = vsel %vm3224, %v3226, %v3222
    %v3228 = vmul.f32 %v1868, %v3227
    %v3229 = vrcp.pop %v2373
    %v3230 = vmul.f32 %v2373, %v3229
    %v3231 = vsub.f32 1.0, %v3230
    %v3232 = vmul.f32 %v3229, %v3231
    %v3233 = vadd.f32 %v3229, %v3232
    %vm3234 = vweird.f32 %v2373
    %vm3235 = vweird.f32 %v3229
    %vm3236 = vmor %vm3234, %vm3235
    %v3237 = vsel %vm3236, %v3229, %v3233
    %v3238 = vand.u32 2147483647, %v2373
    %vm3239 = vcmp.eq.f32.partialorder %v3238, 8.507059e+37
    %v3240 = vand.u32 %v2373, 2147483648
    %v3241 = vor.u32 1.1754944e-38, %v3240
    %v3242 = vsel %vm3239, %v3241, %v3237
    %v3243 = vmul.f32 %v1917, %v3242
    %v3244 = vrcp.pop %v2374
    %v3245 = vmul.f32 %v2374, %v3244
    %v3246 = vsub.f32 1.0, %v3245
    %v3247 = vmul.f32 %v3244, %v3246
    %v3248 = vadd.f32 %v3244, %v3247
    %vm3249 = vweird.f32 %v2374
    %vm3250 = vweird.f32 %v3244
    %vm3251 = vmor %vm3249, %vm3250
    %v3252 = vsel %vm3251, %v3244, %v3248
    %v3253 = vand.u32 2147483647, %v2374
    %vm3254 = vcmp.eq.f32.partialorder %v3253, 8.507059e+37
    %v3255 = vand.u32 %v2374, 2147483648
    %v3256 = vor.u32 1.1754944e-38, %v3255
    %v3257 = vsel %vm3254, %v3256, %v3252
    %v3258 = vmul.f32 %v1966, %v3257
    %v3259 = vrcp.pop %v2375
    %v3260 = vmul.f32 %v2375, %v3259
    %v3261 = vsub.f32 1.0, %v3260
    %v3262 = vmul.f32 %v3259, %v3261
    %v3263 = vadd.f32 %v3259, %v3262
    %vm3264 = vweird.f32 %v2375
    %vm3265 = vweird.f32 %v3259
    %vm3266 = vmor %vm3264, %vm3265
    %v3267 = vsel %vm3266, %v3259, %v3263
    %v3268 = vand.u32 2147483647, %v2375
    %vm3269 = vcmp.eq.f32.partialorder %v3268, 8.507059e+37
    %v3270 = vand.u32 %v2375, 2147483648
    %v3271 = vor.u32 1.1754944e-38, %v3270
    %v3272 = vsel %vm3269, %v3271, %v3267
    %v3273 = vmul.f32 %v2015, %v3272
    %v3274 = vrcp.pop %v2376
    %v3275 = vmul.f32 %v2376, %v3274
    %v3276 = vsub.f32 1.0, %v3275
    %v3277 = vmul.f32 %v3274, %v3276
    %v3278 = vadd.f32 %v3274, %v3277
    %vm3279 = vweird.f32 %v2376
    %vm3280 = vweird.f32 %v3274
    %vm3281 = vmor %vm3279, %vm3280
    %v3282 = vsel %vm3281, %v3274, %v3278
    %v3283 = vand.u32 2147483647, %v2376
    %vm3284 = vcmp.eq.f32.partialorder %v3283, 8.507059e+37
    %v3285 = vand.u32 %v2376, 2147483648
    %v3286 = vor.u32 1.1754944e-38, %v3285
    %v3287 = vsel %vm3284, %v3286, %v3282
    %v3288 = vmul.f32 %v2064, %v3287
    %v3289 = vrcp.pop %v2377
    %v3290 = vmul.f32 %v2377, %v3289
    %v3291 = vsub.f32 1.0, %v3290
    %v3292 = vmul.f32 %v3289, %v3291
    %v3293 = vadd.f32 %v3289, %v3292
    %vm3294 = vweird.f32 %v2377
    %vm3295 = vweird.f32 %v3289
    %vm3296 = vmor %vm3294, %vm3295
    %v3297 = vsel %vm3296, %v3289, %v3293
    %v3298 = vand.u32 2147483647, %v2377
    %vm3299 = vcmp.eq.f32.partialorder %v3298, 8.507059e+37
    %v3300 = vand.u32 %v2377, 2147483648
    %v3301 = vor.u32 1.1754944e-38, %v3300
    %v3302 = vsel %vm3299, %v3301, %v3297
    %v3303 = vmul.f32 %v1723, %v3302
    %v3304 = vrcp.pop %v2378
    %v3305 = vmul.f32 %v2378, %v3304
    %v3306 = vsub.f32 1.0, %v3305
    %v3307 = vmul.f32 %v3304, %v3306
    %v3308 = vadd.f32 %v3304, %v3307
    %vm3309 = vweird.f32 %v2378
    %vm3310 = vweird.f32 %v3304
    %vm3311 = vmor %vm3309, %vm3310
    %v3312 = vsel %vm3311, %v3304, %v3308
    %v3313 = vand.u32 2147483647, %v2378
    %vm3314 = vcmp.eq.f32.partialorder %v3313, 8.507059e+37
    %v3315 = vand.u32 %v2378, 2147483648
    %v3316 = vor.u32 1.1754944e-38, %v3315
    %v3317 = vsel %vm3314, %v3316, %v3312
    %v3318 = vmul.f32 %v1772, %v3317
    %v3319 = vrcp.pop %v2379
    %v3320 = vmul.f32 %v2379, %v3319
    %v3321 = vsub.f32 1.0, %v3320
    %v3322 = vmul.f32 %v3319, %v3321
    %v3323 = vadd.f32 %v3319, %v3322
    %vm3324 = vweird.f32 %v2379
    %vm3325 = vweird.f32 %v3319
    %vm3326 = vmor %vm3324, %vm3325
    %v3327 = vsel %vm3326, %v3319, %v3323
    %v3328 = vand.u32 2147483647, %v2379
    %vm3329 = vcmp.eq.f32.partialorder %v3328, 8.507059e+37
    %v3330 = vand.u32 %v2379, 2147483648
    %v3331 = vor.u32 1.1754944e-38, %v3330
    %v3332 = vsel %vm3329, %v3331, %v3327
    %v3333 = vmul.f32 %v1821, %v3332
    %v3334 = vrcp.pop %v2380
    %v3335 = vmul.f32 %v2380, %v3334
    %v3336 = vsub.f32 1.0, %v3335
    %v3337 = vmul.f32 %v3334, %v3336
    %v3338 = vadd.f32 %v3334, %v3337
    %vm3339 = vweird.f32 %v2380
    %vm3340 = vweird.f32 %v3334
    %vm3341 = vmor %vm3339, %vm3340
    %v3342 = vsel %vm3341, %v3334, %v3338
    %v3343 = vand.u32 2147483647, %v2380
    %vm3344 = vcmp.eq.f32.partialorder %v3343, 8.507059e+37
    %v3345 = vand.u32 %v2380, 2147483648
    %v3346 = vor.u32 1.1754944e-38, %v3345
    %v3347 = vsel %vm3344, %v3346, %v3342
    %v3348 = vmul.f32 %v1870, %v3347
    %v3349 = vrcp.pop %v2381
    %v3350 = vmul.f32 %v2381, %v3349
    %v3351 = vsub.f32 1.0, %v3350
    %v3352 = vmul.f32 %v3349, %v3351
    %v3353 = vadd.f32 %v3349, %v3352
    %vm3354 = vweird.f32 %v2381
    %vm3355 = vweird.f32 %v3349
    %vm3356 = vmor %vm3354, %vm3355
    %v3357 = vsel %vm3356, %v3349, %v3353
    %v3358 = vand.u32 2147483647, %v2381
    %vm3359 = vcmp.eq.f32.partialorder %v3358, 8.507059e+37
    %v3360 = vand.u32 %v2381, 2147483648
    %v3361 = vor.u32 1.1754944e-38, %v3360
    %v3362 = vsel %vm3359, %v3361, %v3357
    %v3363 = vmul.f32 %v1919, %v3362
    %v3364 = vrcp.pop %v2382
    %v3365 = vmul.f32 %v2382, %v3364
    %v3366 = vsub.f32 1.0, %v3365
    %v3367 = vmul.f32 %v3364, %v3366
    %v3368 = vadd.f32 %v3364, %v3367
    %vm3369 = vweird.f32 %v2382
    %vm3370 = vweird.f32 %v3364
    %vm3371 = vmor %vm3369, %vm3370
    %v3372 = vsel %vm3371, %v3364, %v3368
    %v3373 = vand.u32 2147483647, %v2382
    %vm3374 = vcmp.eq.f32.partialorder %v3373, 8.507059e+37
    %v3375 = vand.u32 %v2382, 2147483648
    %v3376 = vor.u32 1.1754944e-38, %v3375
    %v3377 = vsel %vm3374, %v3376, %v3372
    %v3378 = vmul.f32 %v1968, %v3377
    %v3379 = vrcp.pop %v2383
    %v3380 = vmul.f32 %v2383, %v3379
    %v3381 = vsub.f32 1.0, %v3380
    %v3382 = vmul.f32 %v3379, %v3381
    %v3383 = vadd.f32 %v3379, %v3382
    %vm3384 = vweird.f32 %v2383
    %vm3385 = vweird.f32 %v3379
    %vm3386 = vmor %vm3384, %vm3385
    %v3387 = vsel %vm3386, %v3379, %v3383
    %v3388 = vand.u32 2147483647, %v2383
    %vm3389 = vcmp.eq.f32.partialorder %v3388, 8.507059e+37
    %v3390 = vand.u32 %v2383, 2147483648
    %v3391 = vor.u32 1.1754944e-38, %v3390
    %v3392 = vsel %vm3389, %v3391, %v3387
    %v3393 = vmul.f32 %v2017, %v3392
    %v3394 = vrcp.pop %v2384
    %v3395 = vmul.f32 %v2384, %v3394
    %v3396 = vsub.f32 1.0, %v3395
    %v3397 = vmul.f32 %v3394, %v3396
    %v3398 = vadd.f32 %v3394, %v3397
    %vm3399 = vweird.f32 %v2384
    %vm3400 = vweird.f32 %v3394
    %vm3401 = vmor %vm3399, %vm3400
    %v3402 = vsel %vm3401, %v3394, %v3398
    %v3403 = vand.u32 2147483647, %v2384
    %vm3404 = vcmp.eq.f32.partialorder %v3403, 8.507059e+37
    %v3405 = vand.u32 %v2384, 2147483648
    %v3406 = vor.u32 1.1754944e-38, %v3405
    %v3407 = vsel %vm3404, %v3406, %v3402
    %v3408 = vmul.f32 %v2066, %v3407
    %v3409 = vrcp.pop %v2385
    %v3410 = vmul.f32 %v2385, %v3409
    %v3411 = vsub.f32 1.0, %v3410
    %v3412 = vmul.f32 %v3409, %v3411
    %v3413 = vadd.f32 %v3409, %v3412
    %vm3414 = vweird.f32 %v2385
    %vm3415 = vweird.f32 %v3409
    %vm3416 = vmor %vm3414, %vm3415
    %v3417 = vsel %vm3416, %v3409, %v3413
    %v3418 = vand.u32 2147483647, %v2385
    %vm3419 = vcmp.eq.f32.partialorder %v3418, 8.507059e+37
    %v3420 = vand.u32 %v2385, 2147483648
    %v3421 = vor.u32 1.1754944e-38, %v3420
    %v3422 = vsel %vm3419, %v3421, %v3417
    %v3423 = vmul.f32 %v1726, %v3422
    %v3424 = vrcp.pop %v2386
    %v3425 = vmul.f32 %v2386, %v3424
    %v3426 = vsub.f32 1.0, %v3425
    %v3427 = vmul.f32 %v3424, %v3426
    %v3428 = vadd.f32 %v3424, %v3427
    %vm3429 = vweird.f32 %v2386
    %vm3430 = vweird.f32 %v3424
    %vm3431 = vmor %vm3429, %vm3430
    %v3432 = vsel %vm3431, %v3424, %v3428
    %v3433 = vand.u32 2147483647, %v2386
    %vm3434 = vcmp.eq.f32.partialorder %v3433, 8.507059e+37
    %v3435 = vand.u32 %v2386, 2147483648
    %v3436 = vor.u32 1.1754944e-38, %v3435
    %v3437 = vsel %vm3434, %v3436, %v3432
    %v3438 = vmul.f32 %v1775, %v3437
    %v3439 = vrcp.pop %v2387
    %v3440 = vmul.f32 %v2387, %v3439
    %v3441 = vsub.f32 1.0, %v3440
    %v3442 = vmul.f32 %v3439, %v3441
    %v3443 = vadd.f32 %v3439, %v3442
    %vm3444 = vweird.f32 %v2387
    %vm3445 = vweird.f32 %v3439
    %vm3446 = vmor %vm3444, %vm3445
    %v3447 = vsel %vm3446, %v3439, %v3443
    %v3448 = vand.u32 2147483647, %v2387
    %vm3449 = vcmp.eq.f32.partialorder %v3448, 8.507059e+37
    %v3450 = vand.u32 %v2387, 2147483648
    %v3451 = vor.u32 1.1754944e-38, %v3450
    %v3452 = vsel %vm3449, %v3451, %v3447
    %v3453 = vmul.f32 %v1824, %v3452
    %v3454 = vrcp.pop %v2388
    %v3455 = vmul.f32 %v2388, %v3454
    %v3456 = vsub.f32 1.0, %v3455
    %v3457 = vmul.f32 %v3454, %v3456
    %v3458 = vadd.f32 %v3454, %v3457
    %vm3459 = vweird.f32 %v2388
    %vm3460 = vweird.f32 %v3454
    %vm3461 = vmor %vm3459, %vm3460
    %v3462 = vsel %vm3461, %v3454, %v3458
    %v3463 = vand.u32 2147483647, %v2388
    %vm3464 = vcmp.eq.f32.partialorder %v3463, 8.507059e+37
    %v3465 = vand.u32 %v2388, 2147483648
    %v3466 = vor.u32 1.1754944e-38, %v3465
    %v3467 = vsel %vm3464, %v3466, %v3462
    %v3468 = vmul.f32 %v1873, %v3467
    %v3469 = vrcp.pop %v2389
    %v3470 = vmul.f32 %v2389, %v3469
    %v3471 = vsub.f32 1.0, %v3470
    %v3472 = vmul.f32 %v3469, %v3471
    %v3473 = vadd.f32 %v3469, %v3472
    %vm3474 = vweird.f32 %v2389
    %vm3475 = vweird.f32 %v3469
    %vm3476 = vmor %vm3474, %vm3475
    %v3477 = vsel %vm3476, %v3469, %v3473
    %v3478 = vand.u32 2147483647, %v2389
    %vm3479 = vcmp.eq.f32.partialorder %v3478, 8.507059e+37
    %v3480 = vand.u32 %v2389, 2147483648
    %v3481 = vor.u32 1.1754944e-38, %v3480
    %v3482 = vsel %vm3479, %v3481, %v3477
    %v3483 = vmul.f32 %v1922, %v3482
    %v3484 = vrcp.pop %v2390
    %v3485 = vmul.f32 %v2390, %v3484
    %v3486 = vsub.f32 1.0, %v3485
    %v3487 = vmul.f32 %v3484, %v3486
    %v3488 = vadd.f32 %v3484, %v3487
    %vm3489 = vweird.f32 %v2390
    %vm3490 = vweird.f32 %v3484
    %vm3491 = vmor %vm3489, %vm3490
    %v3492 = vsel %vm3491, %v3484, %v3488
    %v3493 = vand.u32 2147483647, %v2390
    %vm3494 = vcmp.eq.f32.partialorder %v3493, 8.507059e+37
    %v3495 = vand.u32 %v2390, 2147483648
    %v3496 = vor.u32 1.1754944e-38, %v3495
    %v3497 = vsel %vm3494, %v3496, %v3492
    %v3498 = vmul.f32 %v1971, %v3497
    %v3499 = vrcp.pop %v2391
    %v3500 = vmul.f32 %v2391, %v3499
    %v3501 = vsub.f32 1.0, %v3500
    %v3502 = vmul.f32 %v3499, %v3501
    %v3503 = vadd.f32 %v3499, %v3502
    %vm3504 = vweird.f32 %v2391
    %vm3505 = vweird.f32 %v3499
    %vm3506 = vmor %vm3504, %vm3505
    %v3507 = vsel %vm3506, %v3499, %v3503
    %v3508 = vand.u32 2147483647, %v2391
    %vm3509 = vcmp.eq.f32.partialorder %v3508, 8.507059e+37
    %v3510 = vand.u32 %v2391, 2147483648
    %v3511 = vor.u32 1.1754944e-38, %v3510
    %v3512 = vsel %vm3509, %v3511, %v3507
    %v3513 = vmul.f32 %v2020, %v3512
    %v3514 = vrcp.pop %v2392
    %v3515 = vmul.f32 %v2392, %v3514
    %v3516 = vsub.f32 1.0, %v3515
    %v3517 = vmul.f32 %v3514, %v3516
    %v3518 = vadd.f32 %v3514, %v3517
    %vm3519 = vweird.f32 %v2392
    %vm3520 = vweird.f32 %v3514
    %vm3521 = vmor %vm3519, %vm3520
    %v3522 = vsel %vm3521, %v3514, %v3518
    %v3523 = vand.u32 2147483647, %v2392
    %vm3524 = vcmp.eq.f32.partialorder %v3523, 8.507059e+37
    %v3525 = vand.u32 %v2392, 2147483648
    %v3526 = vor.u32 1.1754944e-38, %v3525
    %v3527 = vsel %vm3524, %v3526, %v3522
    %v3528 = vmul.f32 %v2069, %v3527
    %v3529 = vrcp.pop %v2393
    %v3530 = vmul.f32 %v2393, %v3529
    %v3531 = vsub.f32 1.0, %v3530
    %v3532 = vmul.f32 %v3529, %v3531
    %v3533 = vadd.f32 %v3529, %v3532
    %vm3534 = vweird.f32 %v2393
    %vm3535 = vweird.f32 %v3529
    %vm3536 = vmor %vm3534, %vm3535
    %v3537 = vsel %vm3536, %v3529, %v3533
    %v3538 = vand.u32 2147483647, %v2393
    %vm3539 = vcmp.eq.f32.partialorder %v3538, 8.507059e+37
    %v3540 = vand.u32 %v2393, 2147483648
    %v3541 = vor.u32 1.1754944e-38, %v3540
    %v3542 = vsel %vm3539, %v3541, %v3537
    %v3543 = vmul.f32 %v1728, %v3542
    %v3544 = vrcp.pop %v2394
    %v3545 = vmul.f32 %v2394, %v3544
    %v3546 = vsub.f32 1.0, %v3545
    %v3547 = vmul.f32 %v3544, %v3546
    %v3548 = vadd.f32 %v3544, %v3547
    %vm3549 = vweird.f32 %v2394
    %vm3550 = vweird.f32 %v3544
    %vm3551 = vmor %vm3549, %vm3550
    %v3552 = vsel %vm3551, %v3544, %v3548
    %v3553 = vand.u32 2147483647, %v2394
    %vm3554 = vcmp.eq.f32.partialorder %v3553, 8.507059e+37
    %v3555 = vand.u32 %v2394, 2147483648
    %v3556 = vor.u32 1.1754944e-38, %v3555
    %v3557 = vsel %vm3554, %v3556, %v3552
    %v3558 = vmul.f32 %v1777, %v3557
    %v3559 = vrcp.pop %v2395
    %v3560 = vmul.f32 %v2395, %v3559
    %v3561 = vsub.f32 1.0, %v3560
    %v3562 = vmul.f32 %v3559, %v3561
    %v3563 = vadd.f32 %v3559, %v3562
    %vm3564 = vweird.f32 %v2395
    %vm3565 = vweird.f32 %v3559
    %vm3566 = vmor %vm3564, %vm3565
    %v3567 = vsel %vm3566, %v3559, %v3563
    %v3568 = vand.u32 2147483647, %v2395
    %vm3569 = vcmp.eq.f32.partialorder %v3568, 8.507059e+37
    %v3570 = vand.u32 %v2395, 2147483648
    %v3571 = vor.u32 1.1754944e-38, %v3570
    %v3572 = vsel %vm3569, %v3571, %v3567
    %v3573 = vmul.f32 %v1826, %v3572
    %v3574 = vrcp.pop %v2396
    %v3575 = vmul.f32 %v2396, %v3574
    %v3576 = vsub.f32 1.0, %v3575
    %v3577 = vmul.f32 %v3574, %v3576
    %v3578 = vadd.f32 %v3574, %v3577
    %vm3579 = vweird.f32 %v2396
    %vm3580 = vweird.f32 %v3574
    %vm3581 = vmor %vm3579, %vm3580
    %v3582 = vsel %vm3581, %v3574, %v3578
    %v3583 = vand.u32 2147483647, %v2396
    %vm3584 = vcmp.eq.f32.partialorder %v3583, 8.507059e+37
    %v3585 = vand.u32 %v2396, 2147483648
    %v3586 = vor.u32 1.1754944e-38, %v3585
    %v3587 = vsel %vm3584, %v3586, %v3582
    %v3588 = vmul.f32 %v1875, %v3587
    %v3589 = vrcp.pop %v2397
    %v3590 = vmul.f32 %v2397, %v3589
    %v3591 = vsub.f32 1.0, %v3590
    %v3592 = vmul.f32 %v3589, %v3591
    %v3593 = vadd.f32 %v3589, %v3592
    %vm3594 = vweird.f32 %v2397
    %vm3595 = vweird.f32 %v3589
    %vm3596 = vmor %vm3594, %vm3595
    %v3597 = vsel %vm3596, %v3589, %v3593
    %v3598 = vand.u32 2147483647, %v2397
    %vm3599 = vcmp.eq.f32.partialorder %v3598, 8.507059e+37
    %v3600 = vand.u32 %v2397, 2147483648
    %v3601 = vor.u32 1.1754944e-38, %v3600
    %v3602 = vsel %vm3599, %v3601, %v3597
    %v3603 = vmul.f32 %v1924, %v3602
    %v3604 = vrcp.pop %v2398
    %v3605 = vmul.f32 %v2398, %v3604
    %v3606 = vsub.f32 1.0, %v3605
    %v3607 = vmul.f32 %v3604, %v3606
    %v3608 = vadd.f32 %v3604, %v3607
    %vm3609 = vweird.f32 %v2398
    %vm3610 = vweird.f32 %v3604
    %vm3611 = vmor %vm3609, %vm3610
    %v3612 = vsel %vm3611, %v3604, %v3608
    %v3613 = vand.u32 2147483647, %v2398
    %vm3614 = vcmp.eq.f32.partialorder %v3613, 8.507059e+37
    %v3615 = vand.u32 %v2398, 2147483648
    %v3616 = vor.u32 1.1754944e-38, %v3615
    %v3617 = vsel %vm3614, %v3616, %v3612
    %v3618 = vmul.f32 %v1973, %v3617
    %v3619 = vrcp.pop %v2399
    %v3620 = vmul.f32 %v2399, %v3619
    %v3621 = vsub.f32 1.0, %v3620
    %v3622 = vmul.f32 %v3619, %v3621
    %v3623 = vadd.f32 %v3619, %v3622
    %vm3624 = vweird.f32 %v2399
    %vm3625 = vweird.f32 %v3619
    %vm3626 = vmor %vm3624, %vm3625
    %v3627 = vsel %vm3626, %v3619, %v3623
    %v3628 = vand.u32 2147483647, %v2399
    %vm3629 = vcmp.eq.f32.partialorder %v3628, 8.507059e+37
    %v3630 = vand.u32 %v2399, 2147483648
    %v3631 = vor.u32 1.1754944e-38, %v3630
    %v3632 = vsel %vm3629, %v3631, %v3627
    %v3633 = vmul.f32 %v2022, %v3632
    %v3634 = vrcp.pop %v2400
    %v3635 = vmul.f32 %v2400, %v3634
    %v3636 = vsub.f32 1.0, %v3635
    %v3637 = vmul.f32 %v3634, %v3636
    %v3638 = vadd.f32 %v3634, %v3637
    %vm3639 = vweird.f32 %v2400
    %vm3640 = vweird.f32 %v3634
    %vm3641 = vmor %vm3639, %vm3640
    %v3642 = vsel %vm3641, %v3634, %v3638
    %v3643 = vand.u32 2147483647, %v2400
    %vm3644 = vcmp.eq.f32.partialorder %v3643, 8.507059e+37
    %v3645 = vand.u32 %v2400, 2147483648
    %v3646 = vor.u32 1.1754944e-38, %v3645
    %v3647 = vsel %vm3644, %v3646, %v3642
    %v3648 = vmul.f32 %v2071, %v3647
    %v3649 = vrcp.pop %v2401
    %v3650 = vmul.f32 %v2401, %v3649
    %v3651 = vsub.f32 1.0, %v3650
    %v3652 = vmul.f32 %v3649, %v3651
    %v3653 = vadd.f32 %v3649, %v3652
    %vm3654 = vweird.f32 %v2401
    %vm3655 = vweird.f32 %v3649
    %vm3656 = vmor %vm3654, %vm3655
    %v3657 = vsel %vm3656, %v3649, %v3653
    %v3658 = vand.u32 2147483647, %v2401
    %vm3659 = vcmp.eq.f32.partialorder %v3658, 8.507059e+37
    %v3660 = vand.u32 %v2401, 2147483648
    %v3661 = vor.u32 1.1754944e-38, %v3660
    %v3662 = vsel %vm3659, %v3661, %v3657
    %v3663 = vmul.f32 %v1731, %v3662
    %v3664 = vrcp.pop %v2402
    %v3665 = vmul.f32 %v2402, %v3664
    %v3666 = vsub.f32 1.0, %v3665
    %v3667 = vmul.f32 %v3664, %v3666
    %v3668 = vadd.f32 %v3664, %v3667
    %vm3669 = vweird.f32 %v2402
    %vm3670 = vweird.f32 %v3664
    %vm3671 = vmor %vm3669, %vm3670
    %v3672 = vsel %vm3671, %v3664, %v3668
    %v3673 = vand.u32 2147483647, %v2402
    %vm3674 = vcmp.eq.f32.partialorder %v3673, 8.507059e+37
    %v3675 = vand.u32 %v2402, 2147483648
    %v3676 = vor.u32 1.1754944e-38, %v3675
    %v3677 = vsel %vm3674, %v3676, %v3672
    %v3678 = vmul.f32 %v1780, %v3677
    %v3679 = vrcp.pop %v2403
    %v3680 = vmul.f32 %v2403, %v3679
    %v3681 = vsub.f32 1.0, %v3680
    %v3682 = vmul.f32 %v3679, %v3681
    %v3683 = vadd.f32 %v3679, %v3682
    %vm3684 = vweird.f32 %v2403
    %vm3685 = vweird.f32 %v3679
    %vm3686 = vmor %vm3684, %vm3685
    %v3687 = vsel %vm3686, %v3679, %v3683
    %v3688 = vand.u32 2147483647, %v2403
    %vm3689 = vcmp.eq.f32.partialorder %v3688, 8.507059e+37
    %v3690 = vand.u32 %v2403, 2147483648
    %v3691 = vor.u32 1.1754944e-38, %v3690
    %v3692 = vsel %vm3689, %v3691, %v3687
    %v3693 = vmul.f32 %v1829, %v3692
    %v3694 = vrcp.pop %v2404
    %v3695 = vmul.f32 %v2404, %v3694
    %v3696 = vsub.f32 1.0, %v3695
    %v3697 = vmul.f32 %v3694, %v3696
    %v3698 = vadd.f32 %v3694, %v3697
    %vm3699 = vweird.f32 %v2404
    %vm3700 = vweird.f32 %v3694
    %vm3701 = vmor %vm3699, %vm3700
    %v3702 = vsel %vm3701, %v3694, %v3698
    %v3703 = vand.u32 2147483647, %v2404
    %vm3704 = vcmp.eq.f32.partialorder %v3703, 8.507059e+37
    %v3705 = vand.u32 %v2404, 2147483648
    %v3706 = vor.u32 1.1754944e-38, %v3705
    %v3707 = vsel %vm3704, %v3706, %v3702
    %v3708 = vmul.f32 %v1878, %v3707
    %v3709 = vrcp.pop %v2405
    %v3710 = vmul.f32 %v2405, %v3709
    %v3711 = vsub.f32 1.0, %v3710
    %v3712 = vmul.f32 %v3709, %v3711
    %v3713 = vadd.f32 %v3709, %v3712
    %vm3714 = vweird.f32 %v2405
    %vm3715 = vweird.f32 %v3709
    %vm3716 = vmor %vm3714, %vm3715
    %v3717 = vsel %vm3716, %v3709, %v3713
    %v3718 = vand.u32 2147483647, %v2405
    %vm3719 = vcmp.eq.f32.partialorder %v3718, 8.507059e+37
    %v3720 = vand.u32 %v2405, 2147483648
    %v3721 = vor.u32 1.1754944e-38, %v3720
    %v3722 = vsel %vm3719, %v3721, %v3717
    %v3723 = vmul.f32 %v1927, %v3722
    %v3724 = vrcp.pop %v2406
    %v3725 = vmul.f32 %v2406, %v3724
    %v3726 = vsub.f32 1.0, %v3725
    %v3727 = vmul.f32 %v3724, %v3726
    %v3728 = vadd.f32 %v3724, %v3727
    %vm3729 = vweird.f32 %v2406
    %vm3730 = vweird.f32 %v3724
    %vm3731 = vmor %vm3729, %vm3730
    %v3732 = vsel %vm3731, %v3724, %v3728
    %v3733 = vand.u32 2147483647, %v2406
    %vm3734 = vcmp.eq.f32.partialorder %v3733, 8.507059e+37
    %v3735 = vand.u32 %v2406, 2147483648
    %v3736 = vor.u32 1.1754944e-38, %v3735
    %v3737 = vsel %vm3734, %v3736, %v3732
    %v3738 = vmul.f32 %v1976, %v3737
    %v3739 = vrcp.pop %v2407
    %v3740 = vmul.f32 %v2407, %v3739
    %v3741 = vsub.f32 1.0, %v3740
    %v3742 = vmul.f32 %v3739, %v3741
    %v3743 = vadd.f32 %v3739, %v3742
    %vm3744 = vweird.f32 %v2407
    %vm3745 = vweird.f32 %v3739
    %vm3746 = vmor %vm3744, %vm3745
    %v3747 = vsel %vm3746, %v3739, %v3743
    %v3748 = vand.u32 2147483647, %v2407
    %vm3749 = vcmp.eq.f32.partialorder %v3748, 8.507059e+37
    %v3750 = vand.u32 %v2407, 2147483648
    %v3751 = vor.u32 1.1754944e-38, %v3750
    %v3752 = vsel %vm3749, %v3751, %v3747
    %v3753 = vmul.f32 %v2025, %v3752
    %v3754 = vrcp.pop %v2408
    %v3755 = vmul.f32 %v2408, %v3754
    %v3756 = vsub.f32 1.0, %v3755
    %v3757 = vmul.f32 %v3754, %v3756
    %v3758 = vadd.f32 %v3754, %v3757
    %vm3759 = vweird.f32 %v2408
    %vm3760 = vweird.f32 %v3754
    %vm3761 = vmor %vm3759, %vm3760
    %v3762 = vsel %vm3761, %v3754, %v3758
    %v3763 = vand.u32 2147483647, %v2408
    %vm3764 = vcmp.eq.f32.partialorder %v3763, 8.507059e+37
    %v3765 = vand.u32 %v2408, 2147483648
    %v3766 = vor.u32 1.1754944e-38, %v3765
    %v3767 = vsel %vm3764, %v3766, %v3762
    %v3768 = vmul.f32 %v2074, %v3767
    %v3769 = vrcp.pop %v2409
    %v3770 = vmul.f32 %v2409, %v3769
    %v3771 = vsub.f32 1.0, %v3770
    %v3772 = vmul.f32 %v3769, %v3771
    %v3773 = vadd.f32 %v3769, %v3772
    %vm3774 = vweird.f32 %v2409
    %vm3775 = vweird.f32 %v3769
    %vm3776 = vmor %vm3774, %vm3775
    %v3777 = vsel %vm3776, %v3769, %v3773
    %v3778 = vand.u32 2147483647, %v2409
    %vm3779 = vcmp.eq.f32.partialorder %v3778, 8.507059e+37
    %v3780 = vand.u32 %v2409, 2147483648
    %v3781 = vor.u32 1.1754944e-38, %v3780
    %v3782 = vsel %vm3779, %v3781, %v3777
    %v3783 = vmul.f32 %v1733, %v3782
    %v3784 = vrcp.pop %v2410
    %v3785 = vmul.f32 %v2410, %v3784
    %v3786 = vsub.f32 1.0, %v3785
    %v3787 = vmul.f32 %v3784, %v3786
    %v3788 = vadd.f32 %v3784, %v3787
    %vm3789 = vweird.f32 %v2410
    %vm3790 = vweird.f32 %v3784
    %vm3791 = vmor %vm3789, %vm3790
    %v3792 = vsel %vm3791, %v3784, %v3788
    %v3793 = vand.u32 2147483647, %v2410
    %vm3794 = vcmp.eq.f32.partialorder %v3793, 8.507059e+37
    %v3795 = vand.u32 %v2410, 2147483648
    %v3796 = vor.u32 1.1754944e-38, %v3795
    %v3797 = vsel %vm3794, %v3796, %v3792
    %v3798 = vmul.f32 %v1782, %v3797
    %v3799 = vrcp.pop %v2411
    %v3800 = vmul.f32 %v2411, %v3799
    %v3801 = vsub.f32 1.0, %v3800
    %v3802 = vmul.f32 %v3799, %v3801
    %v3803 = vadd.f32 %v3799, %v3802
    %vm3804 = vweird.f32 %v2411
    %vm3805 = vweird.f32 %v3799
    %vm3806 = vmor %vm3804, %vm3805
    %v3807 = vsel %vm3806, %v3799, %v3803
    %v3808 = vand.u32 2147483647, %v2411
    %vm3809 = vcmp.eq.f32.partialorder %v3808, 8.507059e+37
    %v3810 = vand.u32 %v2411, 2147483648
    %v3811 = vor.u32 1.1754944e-38, %v3810
    %v3812 = vsel %vm3809, %v3811, %v3807
    %v3813 = vmul.f32 %v1831, %v3812
    %v3814 = vrcp.pop %v2412
    %v3815 = vmul.f32 %v2412, %v3814
    %v3816 = vsub.f32 1.0, %v3815
    %v3817 = vmul.f32 %v3814, %v3816
    %v3818 = vadd.f32 %v3814, %v3817
    %vm3819 = vweird.f32 %v2412
    %vm3820 = vweird.f32 %v3814
    %vm3821 = vmor %vm3819, %vm3820
    %v3822 = vsel %vm3821, %v3814, %v3818
    %v3823 = vand.u32 2147483647, %v2412
    %vm3824 = vcmp.eq.f32.partialorder %v3823, 8.507059e+37
    %v3825 = vand.u32 %v2412, 2147483648
    %v3826 = vor.u32 1.1754944e-38, %v3825
    %v3827 = vsel %vm3824, %v3826, %v3822
    %v3828 = vmul.f32 %v1880, %v3827
    %v3829 = vrcp.pop %v2413
    %v3830 = vmul.f32 %v2413, %v3829
    %v3831 = vsub.f32 1.0, %v3830
    %v3832 = vmul.f32 %v3829, %v3831
    %v3833 = vadd.f32 %v3829, %v3832
    %vm3834 = vweird.f32 %v2413
    %vm3835 = vweird.f32 %v3829
    %vm3836 = vmor %vm3834, %vm3835
    %v3837 = vsel %vm3836, %v3829, %v3833
    %v3838 = vand.u32 2147483647, %v2413
    %vm3839 = vcmp.eq.f32.partialorder %v3838, 8.507059e+37
    %v3840 = vand.u32 %v2413, 2147483648
    %v3841 = vor.u32 1.1754944e-38, %v3840
    %v3842 = vsel %vm3839, %v3841, %v3837
    %v3843 = vmul.f32 %v1929, %v3842
    %v3844 = vrcp.pop %v2414
    %v3845 = vmul.f32 %v2414, %v3844
    %v3846 = vsub.f32 1.0, %v3845
    %v3847 = vmul.f32 %v3844, %v3846
    %v3848 = vadd.f32 %v3844, %v3847
    %vm3849 = vweird.f32 %v2414
    %vm3850 = vweird.f32 %v3844
    %vm3851 = vmor %vm3849, %vm3850
    %v3852 = vsel %vm3851, %v3844, %v3848
    %v3853 = vand.u32 2147483647, %v2414
    %vm3854 = vcmp.eq.f32.partialorder %v3853, 8.507059e+37
    %v3855 = vand.u32 %v2414, 2147483648
    %v3856 = vor.u32 1.1754944e-38, %v3855
    %v3857 = vsel %vm3854, %v3856, %v3852
    %v3858 = vmul.f32 %v1978, %v3857
    %v3859 = vrcp.pop %v2415
    %v3860 = vmul.f32 %v2415, %v3859
    %v3861 = vsub.f32 1.0, %v3860
    %v3862 = vmul.f32 %v3859, %v3861
    %v3863 = vadd.f32 %v3859, %v3862
    %vm3864 = vweird.f32 %v2415
    %vm3865 = vweird.f32 %v3859
    %vm3866 = vmor %vm3864, %vm3865
    %v3867 = vsel %vm3866, %v3859, %v3863
    %v3868 = vand.u32 2147483647, %v2415
    %vm3869 = vcmp.eq.f32.partialorder %v3868, 8.507059e+37
    %v3870 = vand.u32 %v2415, 2147483648
    %v3871 = vor.u32 1.1754944e-38, %v3870
    %v3872 = vsel %vm3869, %v3871, %v3867
    %v3873 = vmul.f32 %v2027, %v3872
    %v3874 = vrcp.pop %v2416
    %v3875 = vmul.f32 %v2416, %v3874
    %v3876 = vsub.f32 1.0, %v3875
    %v3877 = vmul.f32 %v3874, %v3876
    %v3878 = vadd.f32 %v3874, %v3877
    %vm3879 = vweird.f32 %v2416
    %vm3880 = vweird.f32 %v3874
    %vm3881 = vmor %vm3879, %vm3880
    %v3882 = vsel %vm3881, %v3874, %v3878
    %v3883 = vand.u32 2147483647, %v2416
    %vm3884 = vcmp.eq.f32.partialorder %v3883, 8.507059e+37
    %v3885 = vand.u32 %v2416, 2147483648
    %v3886 = vor.u32 1.1754944e-38, %v3885
    %v3887 = vsel %vm3884, %v3886, %v3882
    %v3888 = vmul.f32 %v2076, %v3887
    %v3889 = vrcp.pop %v2417
    %v3890 = vmul.f32 %v2417, %v3889
    %v3891 = vsub.f32 1.0, %v3890
    %v3892 = vmul.f32 %v3889, %v3891
    %v3893 = vadd.f32 %v3889, %v3892
    %vm3894 = vweird.f32 %v2417
    %vm3895 = vweird.f32 %v3889
    %vm3896 = vmor %vm3894, %vm3895
    %v3897 = vsel %vm3896, %v3889, %v3893
    %v3898 = vand.u32 2147483647, %v2417
    %vm3899 = vcmp.eq.f32.partialorder %v3898, 8.507059e+37
    %v3900 = vand.u32 %v2417, 2147483648
    %v3901 = vor.u32 1.1754944e-38, %v3900
    %v3902 = vsel %vm3899, %v3901, %v3897
    %v3903 = vmul.f32 %v1736, %v3902
    %v3904 = vrcp.pop %v2418
    %v3905 = vmul.f32 %v2418, %v3904
    %v3906 = vsub.f32 1.0, %v3905
    %v3907 = vmul.f32 %v3904, %v3906
    %v3908 = vadd.f32 %v3904, %v3907
    %vm3909 = vweird.f32 %v2418
    %vm3910 = vweird.f32 %v3904
    %vm3911 = vmor %vm3909, %vm3910
    %v3912 = vsel %vm3911, %v3904, %v3908
    %v3913 = vand.u32 2147483647, %v2418
    %vm3914 = vcmp.eq.f32.partialorder %v3913, 8.507059e+37
    %v3915 = vand.u32 %v2418, 2147483648
    %v3916 = vor.u32 1.1754944e-38, %v3915
    %v3917 = vsel %vm3914, %v3916, %v3912
    %v3918 = vmul.f32 %v1785, %v3917
    %v3919 = vrcp.pop %v2419
    %v3920 = vmul.f32 %v2419, %v3919
    %v3921 = vsub.f32 1.0, %v3920
    %v3922 = vmul.f32 %v3919, %v3921
    %v3923 = vadd.f32 %v3919, %v3922
    %vm3924 = vweird.f32 %v2419
    %vm3925 = vweird.f32 %v3919
    %vm3926 = vmor %vm3924, %vm3925
    %v3927 = vsel %vm3926, %v3919, %v3923
    %v3928 = vand.u32 2147483647, %v2419
    %vm3929 = vcmp.eq.f32.partialorder %v3928, 8.507059e+37
    %v3930 = vand.u32 %v2419, 2147483648
    %v3931 = vor.u32 1.1754944e-38, %v3930
    %v3932 = vsel %vm3929, %v3931, %v3927
    %v3933 = vmul.f32 %v1834, %v3932
    %v3934 = vrcp.pop %v2420
    %v3935 = vmul.f32 %v2420, %v3934
    %v3936 = vsub.f32 1.0, %v3935
    %v3937 = vmul.f32 %v3934, %v3936
    %v3938 = vadd.f32 %v3934, %v3937
    %vm3939 = vweird.f32 %v2420
    %vm3940 = vweird.f32 %v3934
    %vm3941 = vmor %vm3939, %vm3940
    %v3942 = vsel %vm3941, %v3934, %v3938
    %v3943 = vand.u32 2147483647, %v2420
    %vm3944 = vcmp.eq.f32.partialorder %v3943, 8.507059e+37
    %v3945 = vand.u32 %v2420, 2147483648
    %v3946 = vor.u32 1.1754944e-38, %v3945
    %v3947 = vsel %vm3944, %v3946, %v3942
    %v3948 = vmul.f32 %v1883, %v3947
    %v3949 = vrcp.pop %v2421
    %v3950 = vmul.f32 %v2421, %v3949
    %v3951 = vsub.f32 1.0, %v3950
    %v3952 = vmul.f32 %v3949, %v3951
    %v3953 = vadd.f32 %v3949, %v3952
    %vm3954 = vweird.f32 %v2421
    %vm3955 = vweird.f32 %v3949
    %vm3956 = vmor %vm3954, %vm3955
    %v3957 = vsel %vm3956, %v3949, %v3953
    %v3958 = vand.u32 2147483647, %v2421
    %vm3959 = vcmp.eq.f32.partialorder %v3958, 8.507059e+37
    %v3960 = vand.u32 %v2421, 2147483648
    %v3961 = vor.u32 1.1754944e-38, %v3960
    %v3962 = vsel %vm3959, %v3961, %v3957
    %v3963 = vmul.f32 %v1932, %v3962
    %v3964 = vrcp.pop %v2422
    %v3965 = vmul.f32 %v2422, %v3964
    %v3966 = vsub.f32 1.0, %v3965
    %v3967 = vmul.f32 %v3964, %v3966
    %v3968 = vadd.f32 %v3964, %v3967
    %vm3969 = vweird.f32 %v2422
    %vm3970 = vweird.f32 %v3964
    %vm3971 = vmor %vm3969, %vm3970
    %v3972 = vsel %vm3971, %v3964, %v3968
    %v3973 = vand.u32 2147483647, %v2422
    %vm3974 = vcmp.eq.f32.partialorder %v3973, 8.507059e+37
    %v3975 = vand.u32 %v2422, 2147483648
    %v3976 = vor.u32 1.1754944e-38, %v3975
    %v3977 = vsel %vm3974, %v3976, %v3972
    %v3978 = vmul.f32 %v1981, %v3977
    %v3979 = vrcp.pop %v2423
    %v3980 = vmul.f32 %v2423, %v3979
    %v3981 = vsub.f32 1.0, %v3980
    %v3982 = vmul.f32 %v3979, %v3981
    %v3983 = vadd.f32 %v3979, %v3982
    %vm3984 = vweird.f32 %v2423
    %vm3985 = vweird.f32 %v3979
    %vm3986 = vmor %vm3984, %vm3985
    %v3987 = vsel %vm3986, %v3979, %v3983
    %v3988 = vand.u32 2147483647, %v2423
    %vm3989 = vcmp.eq.f32.partialorder %v3988, 8.507059e+37
    %v3990 = vand.u32 %v2423, 2147483648
    %v3991 = vor.u32 1.1754944e-38, %v3990
    %v3992 = vsel %vm3989, %v3991, %v3987
    %v3993 = vmul.f32 %v2030, %v3992
    %v3994 = vrcp.pop %v2424
    %v3995 = vmul.f32 %v2424, %v3994
    %v3996 = vsub.f32 1.0, %v3995
    %v3997 = vmul.f32 %v3994, %v3996
    %v3998 = vadd.f32 %v3994, %v3997
    %vm3999 = vweird.f32 %v2424
    %vm4000 = vweird.f32 %v3994
    %vm4001 = vmor %vm3999, %vm4000
    %v4002 = vsel %vm4001, %v3994, %v3998
    %v4003 = vand.u32 2147483647, %v2424
    %vm4004 = vcmp.eq.f32.partialorder %v4003, 8.507059e+37
    %v4005 = vand.u32 %v2424, 2147483648
    %v4006 = vor.u32 1.1754944e-38, %v4005
    %v4007 = vsel %vm4004, %v4006, %v4002
    %v4008 = vmul.f32 %v2079, %v4007
    %v4009 = vrcp.pop %v2425
    %v4010 = vmul.f32 %v2425, %v4009
    %v4011 = vsub.f32 1.0, %v4010
    %v4012 = vmul.f32 %v4009, %v4011
    %v4013 = vadd.f32 %v4009, %v4012
    %vm4014 = vweird.f32 %v2425
    %vm4015 = vweird.f32 %v4009
    %vm4016 = vmor %vm4014, %vm4015
    %v4017 = vsel %vm4016, %v4009, %v4013
    %v4018 = vand.u32 2147483647, %v2425
    %vm4019 = vcmp.eq.f32.partialorder %v4018, 8.507059e+37
    %v4020 = vand.u32 %v2425, 2147483648
    %v4021 = vor.u32 1.1754944e-38, %v4020
    %v4022 = vsel %vm4019, %v4021, %v4017
    %v4023 = vmul.f32 %v1738, %v4022
    %v4024 = vrcp.pop %v2426
    %v4025 = vmul.f32 %v2426, %v4024
    %v4026 = vsub.f32 1.0, %v4025
    %v4027 = vmul.f32 %v4024, %v4026
    %v4028 = vadd.f32 %v4024, %v4027
    %vm4029 = vweird.f32 %v2426
    %vm4030 = vweird.f32 %v4024
    %vm4031 = vmor %vm4029, %vm4030
    %v4032 = vsel %vm4031, %v4024, %v4028
    %v4033 = vand.u32 2147483647, %v2426
    %vm4034 = vcmp.eq.f32.partialorder %v4033, 8.507059e+37
    %v4035 = vand.u32 %v2426, 2147483648
    %v4036 = vor.u32 1.1754944e-38, %v4035
    %v4037 = vsel %vm4034, %v4036, %v4032
    %v4038 = vmul.f32 %v1787, %v4037
    %v4039 = vrcp.pop %v2427
    %v4040 = vmul.f32 %v2427, %v4039
    %v4041 = vsub.f32 1.0, %v4040
    %v4042 = vmul.f32 %v4039, %v4041
    %v4043 = vadd.f32 %v4039, %v4042
    %vm4044 = vweird.f32 %v2427
    %vm4045 = vweird.f32 %v4039
    %vm4046 = vmor %vm4044, %vm4045
    %v4047 = vsel %vm4046, %v4039, %v4043
    %v4048 = vand.u32 2147483647, %v2427
    %vm4049 = vcmp.eq.f32.partialorder %v4048, 8.507059e+37
    %v4050 = vand.u32 %v2427, 2147483648
    %v4051 = vor.u32 1.1754944e-38, %v4050
    %v4052 = vsel %vm4049, %v4051, %v4047
    %v4053 = vmul.f32 %v1836, %v4052
    %v4054 = vrcp.pop %v2428
    %v4055 = vmul.f32 %v2428, %v4054
    %v4056 = vsub.f32 1.0, %v4055
    %v4057 = vmul.f32 %v4054, %v4056
    %v4058 = vadd.f32 %v4054, %v4057
    %vm4059 = vweird.f32 %v2428
    %vm4060 = vweird.f32 %v4054
    %vm4061 = vmor %vm4059, %vm4060
    %v4062 = vsel %vm4061, %v4054, %v4058
    %v4063 = vand.u32 2147483647, %v2428
    %vm4064 = vcmp.eq.f32.partialorder %v4063, 8.507059e+37
    %v4065 = vand.u32 %v2428, 2147483648
    %v4066 = vor.u32 1.1754944e-38, %v4065
    %v4067 = vsel %vm4064, %v4066, %v4062
    %v4068 = vmul.f32 %v1885, %v4067
    %v4069 = vrcp.pop %v2429
    %v4070 = vmul.f32 %v2429, %v4069
    %v4071 = vsub.f32 1.0, %v4070
    %v4072 = vmul.f32 %v4069, %v4071
    %v4073 = vadd.f32 %v4069, %v4072
    %vm4074 = vweird.f32 %v2429
    %vm4075 = vweird.f32 %v4069
    %vm4076 = vmor %vm4074, %vm4075
    %v4077 = vsel %vm4076, %v4069, %v4073
    %v4078 = vand.u32 2147483647, %v2429
    %vm4079 = vcmp.eq.f32.partialorder %v4078, 8.507059e+37
    %v4080 = vand.u32 %v2429, 2147483648
    %v4081 = vor.u32 1.1754944e-38, %v4080
    %v4082 = vsel %vm4079, %v4081, %v4077
    %v4083 = vmul.f32 %v1934, %v4082
    %v4084 = vrcp.pop %v2430
    %v4085 = vmul.f32 %v2430, %v4084
    %v4086 = vsub.f32 1.0, %v4085
    %v4087 = vmul.f32 %v4084, %v4086
    %v4088 = vadd.f32 %v4084, %v4087
    %vm4089 = vweird.f32 %v2430
    %vm4090 = vweird.f32 %v4084
    %vm4091 = vmor %vm4089, %vm4090
    %v4092 = vsel %vm4091, %v4084, %v4088
    %v4093 = vand.u32 2147483647, %v2430
    %vm4094 = vcmp.eq.f32.partialorder %v4093, 8.507059e+37
    %v4095 = vand.u32 %v2430, 2147483648
    %v4096 = vor.u32 1.1754944e-38, %v4095
    %v4097 = vsel %vm4094, %v4096, %v4092
    %v4098 = vmul.f32 %v1983, %v4097
    %v4099 = vrcp.pop %v2431
    %v4100 = vmul.f32 %v2431, %v4099
    %v4101 = vsub.f32 1.0, %v4100
    %v4102 = vmul.f32 %v4099, %v4101
    %v4103 = vadd.f32 %v4099, %v4102
    %vm4104 = vweird.f32 %v2431
    %vm4105 = vweird.f32 %v4099
    %vm4106 = vmor %vm4104, %vm4105
    %v4107 = vsel %vm4106, %v4099, %v4103
    %v4108 = vand.u32 2147483647, %v2431
    %vm4109 = vcmp.eq.f32.partialorder %v4108, 8.507059e+37
    %v4110 = vand.u32 %v2431, 2147483648
    %v4111 = vor.u32 1.1754944e-38, %v4110
    %v4112 = vsel %vm4109, %v4111, %v4107
    %v4113 = vmul.f32 %v2032, %v4112
    %v4114 = vrcp.pop %v2432
    %v4115 = vmul.f32 %v2432, %v4114
    %v4116 = vsub.f32 1.0, %v4115
    %v4117 = vmul.f32 %v4114, %v4116
    %v4118 = vadd.f32 %v4114, %v4117
    %vm4119 = vweird.f32 %v2432
    %vm4120 = vweird.f32 %v4114
    %vm4121 = vmor %vm4119, %vm4120
    %v4122 = vsel %vm4121, %v4114, %v4118
    %v4123 = vand.u32 2147483647, %v2432
    %vm4124 = vcmp.eq.f32.partialorder %v4123, 8.507059e+37
    %v4125 = vand.u32 %v2432, 2147483648
    %v4126 = vor.u32 1.1754944e-38, %v4125
    %v4127 = vsel %vm4124, %v4126, %v4122
    %v4128 = vmul.f32 %v2081, %v4127
    %v4129 = vrcp.pop %v2433
    %v4130 = vmul.f32 %v2433, %v4129
    %v4131 = vsub.f32 1.0, %v4130
    %v4132 = vmul.f32 %v4129, %v4131
    %v4133 = vadd.f32 %v4129, %v4132
    %vm4134 = vweird.f32 %v2433
    %vm4135 = vweird.f32 %v4129
    %vm4136 = vmor %vm4134, %vm4135
    %v4137 = vsel %vm4136, %v4129, %v4133
    %v4138 = vand.u32 2147483647, %v2433
    %vm4139 = vcmp.eq.f32.partialorder %v4138, 8.507059e+37
    %v4140 = vand.u32 %v2433, 2147483648
    %v4141 = vor.u32 1.1754944e-38, %v4140
    %v4142 = vsel %vm4139, %v4141, %v4137
    %v4143 = vmul.f32 %v1741, %v4142
    %v4144 = vrcp.pop %v2434
    %v4145 = vmul.f32 %v2434, %v4144
    %v4146 = vsub.f32 1.0, %v4145
    %v4147 = vmul.f32 %v4144, %v4146
    %v4148 = vadd.f32 %v4144, %v4147
    %vm4149 = vweird.f32 %v2434
    %vm4150 = vweird.f32 %v4144
    %vm4151 = vmor %vm4149, %vm4150
    %v4152 = vsel %vm4151, %v4144, %v4148
    %v4153 = vand.u32 2147483647, %v2434
    %vm4154 = vcmp.eq.f32.partialorder %v4153, 8.507059e+37
    %v4155 = vand.u32 %v2434, 2147483648
    %v4156 = vor.u32 1.1754944e-38, %v4155
    %v4157 = vsel %vm4154, %v4156, %v4152
    %v4158 = vmul.f32 %v1790, %v4157
    %v4159 = vrcp.pop %v2435
    %v4160 = vmul.f32 %v2435, %v4159
    %v4161 = vsub.f32 1.0, %v4160
    %v4162 = vmul.f32 %v4159, %v4161
    %v4163 = vadd.f32 %v4159, %v4162
    %vm4164 = vweird.f32 %v2435
    %vm4165 = vweird.f32 %v4159
    %vm4166 = vmor %vm4164, %vm4165
    %v4167 = vsel %vm4166, %v4159, %v4163
    %v4168 = vand.u32 2147483647, %v2435
    %vm4169 = vcmp.eq.f32.partialorder %v4168, 8.507059e+37
    %v4170 = vand.u32 %v2435, 2147483648
    %v4171 = vor.u32 1.1754944e-38, %v4170
    %v4172 = vsel %vm4169, %v4171, %v4167
    %v4173 = vmul.f32 %v1839, %v4172
    %v4174 = vrcp.pop %v2436
    %v4175 = vmul.f32 %v2436, %v4174
    %v4176 = vsub.f32 1.0, %v4175
    %v4177 = vmul.f32 %v4174, %v4176
    %v4178 = vadd.f32 %v4174, %v4177
    %vm4179 = vweird.f32 %v2436
    %vm4180 = vweird.f32 %v4174
    %vm4181 = vmor %vm4179, %vm4180
    %v4182 = vsel %vm4181, %v4174, %v4178
    %v4183 = vand.u32 2147483647, %v2436
    %vm4184 = vcmp.eq.f32.partialorder %v4183, 8.507059e+37
    %v4185 = vand.u32 %v2436, 2147483648
    %v4186 = vor.u32 1.1754944e-38, %v4185
    %v4187 = vsel %vm4184, %v4186, %v4182
    %v4188 = vmul.f32 %v1888, %v4187
    %v4189 = vrcp.pop %v2437
    %v4190 = vmul.f32 %v2437, %v4189
    %v4191 = vsub.f32 1.0, %v4190
    %v4192 = vmul.f32 %v4189, %v4191
    %v4193 = vadd.f32 %v4189, %v4192
    %vm4194 = vweird.f32 %v2437
    %vm4195 = vweird.f32 %v4189
    %vm4196 = vmor %vm4194, %vm4195
    %v4197 = vsel %vm4196, %v4189, %v4193
    %v4198 = vand.u32 2147483647, %v2437
    %vm4199 = vcmp.eq.f32.partialorder %v4198, 8.507059e+37
    %v4200 = vand.u32 %v2437, 2147483648
    %v4201 = vor.u32 1.1754944e-38, %v4200
    %v4202 = vsel %vm4199, %v4201, %v4197
    %v4203 = vmul.f32 %v1937, %v4202
    %v4204 = vrcp.pop %v2438
    %v4205 = vmul.f32 %v2438, %v4204
    %v4206 = vsub.f32 1.0, %v4205
    %v4207 = vmul.f32 %v4204, %v4206
    %v4208 = vadd.f32 %v4204, %v4207
    %vm4209 = vweird.f32 %v2438
    %vm4210 = vweird.f32 %v4204
    %vm4211 = vmor %vm4209, %vm4210
    %v4212 = vsel %vm4211, %v4204, %v4208
    %v4213 = vand.u32 2147483647, %v2438
    %vm4214 = vcmp.eq.f32.partialorder %v4213, 8.507059e+37
    %v4215 = vand.u32 %v2438, 2147483648
    %v4216 = vor.u32 1.1754944e-38, %v4215
    %v4217 = vsel %vm4214, %v4216, %v4212
    %v4218 = vmul.f32 %v1986, %v4217
    %v4219 = vrcp.pop %v2439
    %v4220 = vmul.f32 %v2439, %v4219
    %v4221 = vsub.f32 1.0, %v4220
    %v4222 = vmul.f32 %v4219, %v4221
    %v4223 = vadd.f32 %v4219, %v4222
    %vm4224 = vweird.f32 %v2439
    %vm4225 = vweird.f32 %v4219
    %vm4226 = vmor %vm4224, %vm4225
    %v4227 = vsel %vm4226, %v4219, %v4223
    %v4228 = vand.u32 2147483647, %v2439
    %vm4229 = vcmp.eq.f32.partialorder %v4228, 8.507059e+37
    %v4230 = vand.u32 %v2439, 2147483648
    %v4231 = vor.u32 1.1754944e-38, %v4230
    %v4232 = vsel %vm4229, %v4231, %v4227
    %v4233 = vmul.f32 %v2035, %v4232
    %v4234 = vrcp.pop %v2440
    %v4235 = vmul.f32 %v2440, %v4234
    %v4236 = vsub.f32 1.0, %v4235
    %v4237 = vmul.f32 %v4234, %v4236
    %v4238 = vadd.f32 %v4234, %v4237
    %vm4239 = vweird.f32 %v2440
    %vm4240 = vweird.f32 %v4234
    %vm4241 = vmor %vm4239, %vm4240
    %v4242 = vsel %vm4241, %v4234, %v4238
    %v4243 = vand.u32 2147483647, %v2440
    %vm4244 = vcmp.eq.f32.partialorder %v4243, 8.507059e+37
    %v4245 = vand.u32 %v2440, 2147483648
    %v4246 = vor.u32 1.1754944e-38, %v4245
    %v4247 = vsel %vm4244, %v4246, %v4242
    %v4248 = vmul.f32 %v2084, %v4247
    %v4249 = vrcp.pop %v2441
    %v4250 = vmul.f32 %v2441, %v4249
    %v4251 = vsub.f32 1.0, %v4250
    %v4252 = vmul.f32 %v4249, %v4251
    %v4253 = vadd.f32 %v4249, %v4252
    %vm4254 = vweird.f32 %v2441
    %vm4255 = vweird.f32 %v4249
    %vm4256 = vmor %vm4254, %vm4255
    %v4257 = vsel %vm4256, %v4249, %v4253
    %v4258 = vand.u32 2147483647, %v2441
    %vm4259 = vcmp.eq.f32.partialorder %v4258, 8.507059e+37
    %v4260 = vand.u32 %v2441, 2147483648
    %v4261 = vor.u32 1.1754944e-38, %v4260
    %v4262 = vsel %vm4259, %v4261, %v4257
    %v4263 = vmul.f32 %v1743, %v4262
    %v4264 = vrcp.pop %v2442
    %v4265 = vmul.f32 %v2442, %v4264
    %v4266 = vsub.f32 1.0, %v4265
    %v4267 = vmul.f32 %v4264, %v4266
    %v4268 = vadd.f32 %v4264, %v4267
    %vm4269 = vweird.f32 %v2442
    %vm4270 = vweird.f32 %v4264
    %vm4271 = vmor %vm4269, %vm4270
    %v4272 = vsel %vm4271, %v4264, %v4268
    %v4273 = vand.u32 2147483647, %v2442
    %vm4274 = vcmp.eq.f32.partialorder %v4273, 8.507059e+37
    %v4275 = vand.u32 %v2442, 2147483648
    %v4276 = vor.u32 1.1754944e-38, %v4275
    %v4277 = vsel %vm4274, %v4276, %v4272
    %v4278 = vmul.f32 %v1792, %v4277
    %v4279 = vrcp.pop %v2443
    %v4280 = vmul.f32 %v2443, %v4279
    %v4281 = vsub.f32 1.0, %v4280
    %v4282 = vmul.f32 %v4279, %v4281
    %v4283 = vadd.f32 %v4279, %v4282
    %vm4284 = vweird.f32 %v2443
    %vm4285 = vweird.f32 %v4279
    %vm4286 = vmor %vm4284, %vm4285
    %v4287 = vsel %vm4286, %v4279, %v4283
    %v4288 = vand.u32 2147483647, %v2443
    %vm4289 = vcmp.eq.f32.partialorder %v4288, 8.507059e+37
    %v4290 = vand.u32 %v2443, 2147483648
    %v4291 = vor.u32 1.1754944e-38, %v4290
    %v4292 = vsel %vm4289, %v4291, %v4287
    %v4293 = vmul.f32 %v1841, %v4292
    %v4294 = vrcp.pop %v2444
    %v4295 = vmul.f32 %v2444, %v4294
    %v4296 = vsub.f32 1.0, %v4295
    %v4297 = vmul.f32 %v4294, %v4296
    %v4298 = vadd.f32 %v4294, %v4297
    %vm4299 = vweird.f32 %v2444
    %vm4300 = vweird.f32 %v4294
    %vm4301 = vmor %vm4299, %vm4300
    %v4302 = vsel %vm4301, %v4294, %v4298
    %v4303 = vand.u32 2147483647, %v2444
    %vm4304 = vcmp.eq.f32.partialorder %v4303, 8.507059e+37
    %v4305 = vand.u32 %v2444, 2147483648
    %v4306 = vor.u32 1.1754944e-38, %v4305
    %v4307 = vsel %vm4304, %v4306, %v4302
    %v4308 = vmul.f32 %v1890, %v4307
    %v4309 = vrcp.pop %v2445
    %v4310 = vmul.f32 %v2445, %v4309
    %v4311 = vsub.f32 1.0, %v4310
    %v4312 = vmul.f32 %v4309, %v4311
    %v4313 = vadd.f32 %v4309, %v4312
    %vm4314 = vweird.f32 %v2445
    %vm4315 = vweird.f32 %v4309
    %vm4316 = vmor %vm4314, %vm4315
    %v4317 = vsel %vm4316, %v4309, %v4313
    %v4318 = vand.u32 2147483647, %v2445
    %vm4319 = vcmp.eq.f32.partialorder %v4318, 8.507059e+37
    %v4320 = vand.u32 %v2445, 2147483648
    %v4321 = vor.u32 1.1754944e-38, %v4320
    %v4322 = vsel %vm4319, %v4321, %v4317
    %v4323 = vmul.f32 %v1939, %v4322
    %v4324 = vrcp.pop %v2446
    %v4325 = vmul.f32 %v2446, %v4324
    %v4326 = vsub.f32 1.0, %v4325
    %v4327 = vmul.f32 %v4324, %v4326
    %v4328 = vadd.f32 %v4324, %v4327
    %vm4329 = vweird.f32 %v2446
    %vm4330 = vweird.f32 %v4324
    %vm4331 = vmor %vm4329, %vm4330
    %v4332 = vsel %vm4331, %v4324, %v4328
    %v4333 = vand.u32 2147483647, %v2446
    %vm4334 = vcmp.eq.f32.partialorder %v4333, 8.507059e+37
    %v4335 = vand.u32 %v2446, 2147483648
    %v4336 = vor.u32 1.1754944e-38, %v4335
    %v4337 = vsel %vm4334, %v4336, %v4332
    %v4338 = vmul.f32 %v1988, %v4337
    %v4339 = vrcp.pop %v2447
    %v4340 = vmul.f32 %v2447, %v4339
    %v4341 = vsub.f32 1.0, %v4340
    %v4342 = vmul.f32 %v4339, %v4341
    %v4343 = vadd.f32 %v4339, %v4342
    %vm4344 = vweird.f32 %v2447
    %vm4345 = vweird.f32 %v4339
    %vm4346 = vmor %vm4344, %vm4345
    %v4347 = vsel %vm4346, %v4339, %v4343
    %v4348 = vand.u32 2147483647, %v2447
    %vm4349 = vcmp.eq.f32.partialorder %v4348, 8.507059e+37
    %v4350 = vand.u32 %v2447, 2147483648
    %v4351 = vor.u32 1.1754944e-38, %v4350
    %v4352 = vsel %vm4349, %v4351, %v4347
    %v4353 = vmul.f32 %v2037, %v4352
    %v4354 = vrcp.pop %v2448
    %v4355 = vmul.f32 %v2448, %v4354
    %v4356 = vsub.f32 1.0, %v4355
    %v4357 = vmul.f32 %v4354, %v4356
    %v4358 = vadd.f32 %v4354, %v4357
    %vm4359 = vweird.f32 %v2448
    %vm4360 = vweird.f32 %v4354
    %vm4361 = vmor %vm4359, %vm4360
    %v4362 = vsel %vm4361, %v4354, %v4358
    %v4363 = vand.u32 2147483647, %v2448
    %vm4364 = vcmp.eq.f32.partialorder %v4363, 8.507059e+37
    %v4365 = vand.u32 %v2448, 2147483648
    %v4366 = vor.u32 1.1754944e-38, %v4365
    %v4367 = vsel %vm4364, %v4366, %v4362
    %v4368 = vmul.f32 %v2086, %v4367
    %v4370 = vperm.slane %v2191, 0
    %4371 = vset.pattern.permute.xlu0 0
    %4372 = vperm.xlu0 %4371, %v4370
    %v4373 = vpop.permute.xlu0 %4372
    %v4375 = vmul.f32 %v4373, %v2463
    %v4376 = vmul.f32 %v4373, %v2478
    %v4377 = vmul.f32 %v4373, %v2493
    %v4378 = vmul.f32 %v4373, %v2508
    %v4379 = vmul.f32 %v4373, %v2523
    %v4380 = vmul.f32 %v4373, %v2538
    %v4381 = vmul.f32 %v4373, %v2553
    %v4382 = vmul.f32 %v4373, %v2568
    %v4383 = vmul.f32 %v4373, %v2583
    %v4384 = vmul.f32 %v4373, %v2598
    %v4385 = vmul.f32 %v4373, %v2613
    %v4386 = vmul.f32 %v4373, %v2628
    %v4387 = vmul.f32 %v4373, %v2643
    %v4388 = vmul.f32 %v4373, %v2658
    %v4389 = vmul.f32 %v4373, %v2673
    %v4390 = vmul.f32 %v4373, %v2688
    %v4391 = vmul.f32 %v4373, %v2703
    %v4392 = vmul.f32 %v4373, %v2718
    %v4393 = vmul.f32 %v4373, %v2733
    %v4394 = vmul.f32 %v4373, %v2748
    %v4395 = vmul.f32 %v4373, %v2763
    %v4396 = vmul.f32 %v4373, %v2778
    %v4397 = vmul.f32 %v4373, %v2793
    %v4398 = vmul.f32 %v4373, %v2808
    %v4399 = vmul.f32 %v4373, %v2823
    %v4400 = vmul.f32 %v4373, %v2838
    %v4401 = vmul.f32 %v4373, %v2853
    %v4402 = vmul.f32 %v4373, %v2868
    %v4403 = vmul.f32 %v4373, %v2883
    %v4404 = vmul.f32 %v4373, %v2898
    %v4405 = vmul.f32 %v4373, %v2913
    %v4406 = vmul.f32 %v4373, %v2928
    %v4407 = vmul.f32 %v4373, %v2943
    %v4408 = vmul.f32 %v4373, %v2958
    %v4409 = vmul.f32 %v4373, %v2973
    %v4410 = vmul.f32 %v4373, %v2988
    %v4411 = vmul.f32 %v4373, %v3003
    %v4412 = vmul.f32 %v4373, %v3018
    %v4413 = vmul.f32 %v4373, %v3033
    %v4414 = vmul.f32 %v4373, %v3048
    %v4415 = vmul.f32 %v4373, %v3063
    %v4416 = vmul.f32 %v4373, %v3078
    %v4417 = vmul.f32 %v4373, %v3093
    %v4418 = vmul.f32 %v4373, %v3108
    %v4419 = vmul.f32 %v4373, %v3123
    %v4420 = vmul.f32 %v4373, %v3138
    %v4421 = vmul.f32 %v4373, %v3153
    %v4422 = vmul.f32 %v4373, %v3168
    %v4423 = vmul.f32 %v4373, %v3183
    %v4424 = vmul.f32 %v4373, %v3198
    %v4425 = vmul.f32 %v4373, %v3213
    %v4426 = vmul.f32 %v4373, %v3228
    %v4427 = vmul.f32 %v4373, %v3243
    %v4428 = vmul.f32 %v4373, %v3258
    %v4429 = vmul.f32 %v4373, %v3273
    %v4430 = vmul.f32 %v4373, %v3288
    %v4431 = vmul.f32 %v4373, %v3303
    %v4432 = vmul.f32 %v4373, %v3318
    %v4433 = vmul.f32 %v4373, %v3333
    %v4434 = vmul.f32 %v4373, %v3348
    %v4435 = vmul.f32 %v4373, %v3363
    %v4436 = vmul.f32 %v4373, %v3378
    %v4437 = vmul.f32 %v4373, %v3393
    %v4438 = vmul.f32 %v4373, %v3408
    %v4439 = vmul.f32 %v4373, %v3423
    %v4440 = vmul.f32 %v4373, %v3438
    %v4441 = vmul.f32 %v4373, %v3453
    %v4442 = vmul.f32 %v4373, %v3468
    %v4443 = vmul.f32 %v4373, %v3483
    %v4444 = vmul.f32 %v4373, %v3498
    %v4445 = vmul.f32 %v4373, %v3513
    %v4446 = vmul.f32 %v4373, %v3528
    %v4447 = vmul.f32 %v4373, %v3543
    %v4448 = vmul.f32 %v4373, %v3558
    %v4449 = vmul.f32 %v4373, %v3573
    %v4450 = vmul.f32 %v4373, %v3588
    %v4451 = vmul.f32 %v4373, %v3603
    %v4452 = vmul.f32 %v4373, %v3618
    %v4453 = vmul.f32 %v4373, %v3633
    %v4454 = vmul.f32 %v4373, %v3648
    %v4455 = vmul.f32 %v4373, %v3663
    %v4456 = vmul.f32 %v4373, %v3678
    %v4457 = vmul.f32 %v4373, %v3693
    %v4458 = vmul.f32 %v4373, %v3708
    %v4459 = vmul.f32 %v4373, %v3723
    %v4460 = vmul.f32 %v4373, %v3738
    %v4461 = vmul.f32 %v4373, %v3753
    %v4462 = vmul.f32 %v4373, %v3768
    %v4463 = vmul.f32 %v4373, %v3783
    %v4464 = vmul.f32 %v4373, %v3798
    %v4465 = vmul.f32 %v4373, %v3813
    %v4466 = vmul.f32 %v4373, %v3828
    %v4467 = vmul.f32 %v4373, %v3843
    %v4468 = vmul.f32 %v4373, %v3858
    %v4469 = vmul.f32 %v4373, %v3873
    %v4470 = vmul.f32 %v4373, %v3888
    %v4471 = vmul.f32 %v4373, %v3903
    %v4472 = vmul.f32 %v4373, %v3918
    %v4473 = vmul.f32 %v4373, %v3933
    %v4474 = vmul.f32 %v4373, %v3948
    %v4475 = vmul.f32 %v4373, %v3963
    %v4476 = vmul.f32 %v4373, %v3978
    %v4477 = vmul.f32 %v4373, %v3993
    %v4478 = vmul.f32 %v4373, %v4008
    %v4479 = vmul.f32 %v4373, %v4023
    %v4480 = vmul.f32 %v4373, %v4038
    %v4481 = vmul.f32 %v4373, %v4053
    %v4482 = vmul.f32 %v4373, %v4068
    %v4483 = vmul.f32 %v4373, %v4083
    %v4484 = vmul.f32 %v4373, %v4098
    %v4485 = vmul.f32 %v4373, %v4113
    %v4486 = vmul.f32 %v4373, %v4128
    %v4487 = vmul.f32 %v4373, %v4143
    %v4488 = vmul.f32 %v4373, %v4158
    %v4489 = vmul.f32 %v4373, %v4173
    %v4490 = vmul.f32 %v4373, %v4188
    %v4491 = vmul.f32 %v4373, %v4203
    %v4492 = vmul.f32 %v4373, %v4218
    %v4493 = vmul.f32 %v4373, %v4233
    %v4494 = vmul.f32 %v4373, %v4248
    %v4495 = vmul.f32 %v4373, %v4263
    %v4496 = vmul.f32 %v4373, %v4278
    %v4497 = vmul.f32 %v4373, %v4293
    %v4498 = vmul.f32 %v4373, %v4308
    %v4499 = vmul.f32 %v4373, %v4323
    %v4500 = vmul.f32 %v4373, %v4338
    %v4501 = vmul.f32 %v4373, %v4353
    %v4502 = vmul.f32 %v4373, %v4368
    %v4503 = vsub.f32 %v40, %v4375
    %v4504 = vsub.f32 %v41, %v4376
    %v4505 = vsub.f32 %v42, %v4377
    %v4506 = vsub.f32 %v43, %v4378
    %v4507 = vsub.f32 %v44, %v4379
    %v4508 = vsub.f32 %v45, %v4380
    %v4509 = vsub.f32 %v46, %v4381
    %v4510 = vsub.f32 %v47, %v4382
    %v4511 = vsub.f32 %v48, %v4383
    %v4512 = vsub.f32 %v49, %v4384
    %v4513 = vsub.f32 %v50, %v4385
    %v4514 = vsub.f32 %v51, %v4386
    %v4515 = vsub.f32 %v52, %v4387
    %v4516 = vsub.f32 %v53, %v4388
    %v4517 = vsub.f32 %v54, %v4389
    %v4518 = vsub.f32 %v55, %v4390
    %v4519 = vsub.f32 %v56, %v4391
    %v4520 = vsub.f32 %v57, %v4392
    %v4521 = vsub.f32 %v58, %v4393
    %v4522 = vsub.f32 %v59, %v4394
    %v4523 = vsub.f32 %v60, %v4395
    %v4524 = vsub.f32 %v61, %v4396
    %v4525 = vsub.f32 %v62, %v4397
    %v4526 = vsub.f32 %v63, %v4398
    %v4527 = vsub.f32 %v64, %v4399
    %v4528 = vsub.f32 %v65, %v4400
    %v4529 = vsub.f32 %v66, %v4401
    %v4530 = vsub.f32 %v67, %v4402
    %v4531 = vsub.f32 %v68, %v4403
    %v4532 = vsub.f32 %v69, %v4404
    %v4533 = vsub.f32 %v70, %v4405
    %v4534 = vsub.f32 %v71, %v4406
    %v4535 = vsub.f32 %v72, %v4407
    %v4536 = vsub.f32 %v73, %v4408
    %v4537 = vsub.f32 %v74, %v4409
    %v4538 = vsub.f32 %v75, %v4410
    %v4539 = vsub.f32 %v76, %v4411
    %v4540 = vsub.f32 %v77, %v4412
    %v4541 = vsub.f32 %v78, %v4413
    %v4542 = vsub.f32 %v79, %v4414
    %v4543 = vsub.f32 %v80, %v4415
    %v4544 = vsub.f32 %v81, %v4416
    %v4545 = vsub.f32 %v82, %v4417
    %v4546 = vsub.f32 %v83, %v4418
    %v4547 = vsub.f32 %v84, %v4419
    %v4548 = vsub.f32 %v85, %v4420
    %v4549 = vsub.f32 %v86, %v4421
    %v4550 = vsub.f32 %v87, %v4422
    %v4551 = vsub.f32 %v88, %v4423
    %v4552 = vsub.f32 %v89, %v4424
    %v4553 = vsub.f32 %v90, %v4425
    %v4554 = vsub.f32 %v91, %v4426
    %v4555 = vsub.f32 %v92, %v4427
    %v4556 = vsub.f32 %v93, %v4428
    %v4557 = vsub.f32 %v94, %v4429
    %v4558 = vsub.f32 %v95, %v4430
    %v4559 = vsub.f32 %v96, %v4431
    %v4560 = vsub.f32 %v97, %v4432
    %v4561 = vsub.f32 %v98, %v4433
    %v4562 = vsub.f32 %v99, %v4434
    %v4563 = vsub.f32 %v100, %v4435
    %v4564 = vsub.f32 %v101, %v4436
    %v4565 = vsub.f32 %v102, %v4437
    %v4566 = vsub.f32 %v103, %v4438
    %v4567 = vsub.f32 %v104, %v4439
    %v4568 = vsub.f32 %v105, %v4440
    %v4569 = vsub.f32 %v106, %v4441
    %v4570 = vsub.f32 %v107, %v4442
    %v4571 = vsub.f32 %v108, %v4443
    %v4572 = vsub.f32 %v109, %v4444
    %v4573 = vsub.f32 %v110, %v4445
    %v4574 = vsub.f32 %v111, %v4446
    %v4575 = vsub.f32 %v112, %v4447
    %v4576 = vsub.f32 %v113, %v4448
    %v4577 = vsub.f32 %v114, %v4449
    %v4578 = vsub.f32 %v115, %v4450
    %v4579 = vsub.f32 %v116, %v4451
    %v4580 = vsub.f32 %v117, %v4452
    %v4581 = vsub.f32 %v118, %v4453
    %v4582 = vsub.f32 %v119, %v4454
    %v4583 = vsub.f32 %v120, %v4455
    %v4584 = vsub.f32 %v121, %v4456
    %v4585 = vsub.f32 %v122, %v4457
    %v4586 = vsub.f32 %v123, %v4458
    %v4587 = vsub.f32 %v124, %v4459
    %v4588 = vsub.f32 %v125, %v4460
    %v4589 = vsub.f32 %v126, %v4461
    %v4590 = vsub.f32 %v127, %v4462
    %v4591 = vsub.f32 %v128, %v4463
    %v4592 = vsub.f32 %v129, %v4464
    %v4593 = vsub.f32 %v130, %v4465
    %v4594 = vsub.f32 %v131, %v4466
    %v4595 = vsub.f32 %v132, %v4467
    %v4596 = vsub.f32 %v133, %v4468
    %v4597 = vsub.f32 %v134, %v4469
    %v4598 = vsub.f32 %v135, %v4470
    %v4599 = vsub.f32 %v136, %v4471
    %v4600 = vsub.f32 %v137, %v4472
    %v4601 = vsub.f32 %v138, %v4473
    %v4602 = vsub.f32 %v139, %v4474
    %v4603 = vsub.f32 %v140, %v4475
    %v4604 = vsub.f32 %v141, %v4476
    %v4605 = vsub.f32 %v142, %v4477
    %v4606 = vsub.f32 %v143, %v4478
    %v4607 = vsub.f32 %v144, %v4479
    %v4608 = vsub.f32 %v145, %v4480
    %v4609 = vsub.f32 %v146, %v4481
    %v4610 = vsub.f32 %v147, %v4482
    %v4611 = vsub.f32 %v148, %v4483
    %v4612 = vsub.f32 %v149, %v4484
    %v4613 = vsub.f32 %v150, %v4485
    %v4614 = vsub.f32 %v151, %v4486
    %v4615 = vsub.f32 %v152, %v4487
    %v4616 = vsub.f32 %v153, %v4488
    %v4617 = vsub.f32 %v154, %v4489
    %v4618 = vsub.f32 %v155, %v4490
    %v4619 = vsub.f32 %v156, %v4491
    %v4620 = vsub.f32 %v157, %v4492
    %v4621 = vsub.f32 %v158, %v4493
    %v4622 = vsub.f32 %v159, %v4494
    %v4623 = vsub.f32 %v160, %v4495
    %v4624 = vsub.f32 %v161, %v4496
    %v4625 = vsub.f32 %v162, %v4497
    %v4626 = vsub.f32 %v163, %v4498
    %v4627 = vsub.f32 %v164, %v4499
    %v4628 = vsub.f32 %v165, %v4500
    %v4629 = vsub.f32 %v166, %v4501
    %v4630 = vsub.f32 %v167, %v4502
    %4631 = vst [vmem:[%s5] sm:$0xff] %v4503
    %4632 = vst [vmem:[%s5 + $0x8] sm:$0xff] %v4504
    %4633 = vst [vmem:[%s5 + $0x10] sm:$0xff] %v4505
    %4634 = vst [vmem:[%s5 + $0x18] sm:$0xff] %v4506
    %4635 = vst [vmem:[%s5 + $0x20] sm:$0xff] %v4507
    %4636 = vst [vmem:[%s5 + $0x28] sm:$0xff] %v4508
    %4637 = vst [vmem:[%s5 + $0x30] sm:$0xff] %v4509
    %4638 = vst [vmem:[%s5 + $0x38] sm:$0xff] %v4510
    %4639 = vst [vmem:[%s5 + $0x40] sm:$0xff] %v4511
    %4640 = vst [vmem:[%s5 + $0x48] sm:$0xff] %v4512
    %4641 = vst [vmem:[%s5 + $0x50] sm:$0xff] %v4513
    %4642 = vst [vmem:[%s5 + $0x58] sm:$0xff] %v4514
    %4643 = vst [vmem:[%s5 + $0x60] sm:$0xff] %v4515
    %4644 = vst [vmem:[%s5 + $0x68] sm:$0xff] %v4516
    %4645 = vst [vmem:[%s5 + $0x70] sm:$0xff] %v4517
    %4646 = vst [vmem:[%s5 + $0x78] sm:$0xff] %v4518
    %4647 = vst [vmem:[%s5 + $0x80] sm:$0xff] %v4519
    %4648 = vst [vmem:[%s5 + $0x88] sm:$0xff] %v4520
    %4649 = vst [vmem:[%s5 + $0x90] sm:$0xff] %v4521
    %4650 = vst [vmem:[%s5 + $0x98] sm:$0xff] %v4522
    %4651 = vst [vmem:[%s5 + $0xa0] sm:$0xff] %v4523
    %4652 = vst [vmem:[%s5 + $0xa8] sm:$0xff] %v4524
    %4653 = vst [vmem:[%s5 + $0xb0] sm:$0xff] %v4525
    %4654 = vst [vmem:[%s5 + $0xb8] sm:$0xff] %v4526
    %4655 = vst [vmem:[%s5 + $0xc0] sm:$0xff] %v4527
    %4656 = vst [vmem:[%s5 + $0xc8] sm:$0xff] %v4528
    %4657 = vst [vmem:[%s5 + $0xd0] sm:$0xff] %v4529
    %4658 = vst [vmem:[%s5 + $0xd8] sm:$0xff] %v4530
    %4659 = vst [vmem:[%s5 + $0xe0] sm:$0xff] %v4531
    %4660 = vst [vmem:[%s5 + $0xe8] sm:$0xff] %v4532
    %4661 = vst [vmem:[%s5 + $0xf0] sm:$0xff] %v4533
    %4662 = vst [vmem:[%s5 + $0xf8] sm:$0xff] %v4534
    %4663 = vst [vmem:[%s5 + $0x100] sm:$0xff] %v4535
    %4664 = vst [vmem:[%s5 + $0x108] sm:$0xff] %v4536
    %4665 = vst [vmem:[%s5 + $0x110] sm:$0xff] %v4537
    %4666 = vst [vmem:[%s5 + $0x118] sm:$0xff] %v4538
    %4667 = vst [vmem:[%s5 + $0x120] sm:$0xff] %v4539
    %4668 = vst [vmem:[%s5 + $0x128] sm:$0xff] %v4540
    %4669 = vst [vmem:[%s5 + $0x130] sm:$0xff] %v4541
    %4670 = vst [vmem:[%s5 + $0x138] sm:$0xff] %v4542
    %4671 = vst [vmem:[%s5 + $0x140] sm:$0xff] %v4543
    %4672 = vst [vmem:[%s5 + $0x148] sm:$0xff] %v4544
    %4673 = vst [vmem:[%s5 + $0x150] sm:$0xff] %v4545
    %4674 = vst [vmem:[%s5 + $0x158] sm:$0xff] %v4546
    %4675 = vst [vmem:[%s5 + $0x160] sm:$0xff] %v4547
    %4676 = vst [vmem:[%s5 + $0x168] sm:$0xff] %v4548
    %4677 = vst [vmem:[%s5 + $0x170] sm:$0xff] %v4549
    %4678 = vst [vmem:[%s5 + $0x178] sm:$0xff] %v4550
    %4679 = vst [vmem:[%s5 + $0x180] sm:$0xff] %v4551
    %4680 = vst [vmem:[%s5 + $0x188] sm:$0xff] %v4552
    %4681 = vst [vmem:[%s5 + $0x190] sm:$0xff] %v4553
    %4682 = vst [vmem:[%s5 + $0x198] sm:$0xff] %v4554
    %4683 = vst [vmem:[%s5 + $0x1a0] sm:$0xff] %v4555
    %4684 = vst [vmem:[%s5 + $0x1a8] sm:$0xff] %v4556
    %4685 = vst [vmem:[%s5 + $0x1b0] sm:$0xff] %v4557
    %4686 = vst [vmem:[%s5 + $0x1b8] sm:$0xff] %v4558
    %4687 = vst [vmem:[%s5 + $0x1c0] sm:$0xff] %v4559
    %4688 = vst [vmem:[%s5 + $0x1c8] sm:$0xff] %v4560
    %4689 = vst [vmem:[%s5 + $0x1d0] sm:$0xff] %v4561
    %4690 = vst [vmem:[%s5 + $0x1d8] sm:$0xff] %v4562
    %4691 = vst [vmem:[%s5 + $0x1e0] sm:$0xff] %v4563
    %4692 = vst [vmem:[%s5 + $0x1e8] sm:$0xff] %v4564
    %4693 = vst [vmem:[%s5 + $0x1f0] sm:$0xff] %v4565
    %4694 = vst [vmem:[%s5 + $0x1f8] sm:$0xff] %v4566
    %4695 = vst [vmem:[%s5 + $0x200] sm:$0xff] %v4567
    %4696 = vst [vmem:[%s5 + $0x208] sm:$0xff] %v4568
    %4697 = vst [vmem:[%s5 + $0x210] sm:$0xff] %v4569
    %4698 = vst [vmem:[%s5 + $0x218] sm:$0xff] %v4570
    %4699 = vst [vmem:[%s5 + $0x220] sm:$0xff] %v4571
    %4700 = vst [vmem:[%s5 + $0x228] sm:$0xff] %v4572
    %4701 = vst [vmem:[%s5 + $0x230] sm:$0xff] %v4573
    %4702 = vst [vmem:[%s5 + $0x238] sm:$0xff] %v4574
    %4703 = vst [vmem:[%s5 + $0x240] sm:$0xff] %v4575
    %4704 = vst [vmem:[%s5 + $0x248] sm:$0xff] %v4576
    %4705 = vst [vmem:[%s5 + $0x250] sm:$0xff] %v4577
    %4706 = vst [vmem:[%s5 + $0x258] sm:$0xff] %v4578
    %4707 = vst [vmem:[%s5 + $0x260] sm:$0xff] %v4579
    %4708 = vst [vmem:[%s5 + $0x268] sm:$0xff] %v4580
    %4709 = vst [vmem:[%s5 + $0x270] sm:$0xff] %v4581
    %4710 = vst [vmem:[%s5 + $0x278] sm:$0xff] %v4582
    %4711 = vst [vmem:[%s5 + $0x280] sm:$0xff] %v4583
    %4712 = vst [vmem:[%s5 + $0x288] sm:$0xff] %v4584
    %4713 = vst [vmem:[%s5 + $0x290] sm:$0xff] %v4585
    %4714 = vst [vmem:[%s5 + $0x298] sm:$0xff] %v4586
    %4715 = vst [vmem:[%s5 + $0x2a0] sm:$0xff] %v4587
    %4716 = vst [vmem:[%s5 + $0x2a8] sm:$0xff] %v4588
    %4717 = vst [vmem:[%s5 + $0x2b0] sm:$0xff] %v4589
    %4718 = vst [vmem:[%s5 + $0x2b8] sm:$0xff] %v4590
    %4719 = vst [vmem:[%s5 + $0x2c0] sm:$0xff] %v4591
    %4720 = vst [vmem:[%s5 + $0x2c8] sm:$0xff] %v4592
    %4721 = vst [vmem:[%s5 + $0x2d0] sm:$0xff] %v4593
    %4722 = vst [vmem:[%s5 + $0x2d8] sm:$0xff] %v4594
    %4723 = vst [vmem:[%s5 + $0x2e0] sm:$0xff] %v4595
    %4724 = vst [vmem:[%s5 + $0x2e8] sm:$0xff] %v4596
    %4725 = vst [vmem:[%s5 + $0x2f0] sm:$0xff] %v4597
    %4726 = vst [vmem:[%s5 + $0x2f8] sm:$0xff] %v4598
    %4727 = vst [vmem:[%s5 + $0x300] sm:$0xff] %v4599
    %4728 = vst [vmem:[%s5 + $0x308] sm:$0xff] %v4600
    %4729 = vst [vmem:[%s5 + $0x310] sm:$0xff] %v4601
    %4730 = vst [vmem:[%s5 + $0x318] sm:$0xff] %v4602
    %4731 = vst [vmem:[%s5 + $0x320] sm:$0xff] %v4603
    %4732 = vst [vmem:[%s5 + $0x328] sm:$0xff] %v4604
    %4733 = vst [vmem:[%s5 + $0x330] sm:$0xff] %v4605
    %4734 = vst [vmem:[%s5 + $0x338] sm:$0xff] %v4606
    %4735 = vst [vmem:[%s5 + $0x340] sm:$0xff] %v4607
    %4736 = vst [vmem:[%s5 + $0x348] sm:$0xff] %v4608
    %4737 = vst [vmem:[%s5 + $0x350] sm:$0xff] %v4609
    %4738 = vst [vmem:[%s5 + $0x358] sm:$0xff] %v4610
    %4739 = vst [vmem:[%s5 + $0x360] sm:$0xff] %v4611
    %4740 = vst [vmem:[%s5 + $0x368] sm:$0xff] %v4612
    %4741 = vst [vmem:[%s5 + $0x370] sm:$0xff] %v4613
    %4742 = vst [vmem:[%s5 + $0x378] sm:$0xff] %v4614
    %4743 = vst [vmem:[%s5 + $0x380] sm:$0xff] %v4615
    %4744 = vst [vmem:[%s5 + $0x388] sm:$0xff] %v4616
    %4745 = vst [vmem:[%s5 + $0x390] sm:$0xff] %v4617
    %4746 = vst [vmem:[%s5 + $0x398] sm:$0xff] %v4618
    %4747 = vst [vmem:[%s5 + $0x3a0] sm:$0xff] %v4619
    %4748 = vst [vmem:[%s5 + $0x3a8] sm:$0xff] %v4620
    %4749 = vst [vmem:[%s5 + $0x3b0] sm:$0xff] %v4621
    %4750 = vst [vmem:[%s5 + $0x3b8] sm:$0xff] %v4622
    %4751 = vst [vmem:[%s5 + $0x3c0] sm:$0xff] %v4623
    %4752 = vst [vmem:[%s5 + $0x3c8] sm:$0xff] %v4624
    %4753 = vst [vmem:[%s5 + $0x3d0] sm:$0xff] %v4625
    %4754 = vst [vmem:[%s5 + $0x3d8] sm:$0xff] %v4626
    %4755 = vst [vmem:[%s5 + $0x3e0] sm:$0xff] %v4627
    %4756 = vst [vmem:[%s5 + $0x3e8] sm:$0xff] %v4628
    %4757 = vst [vmem:[%s5 + $0x3f0] sm:$0xff] %v4629
    %4758 = vst [vmem:[%s5 + $0x3f8] sm:$0xff] %v4630
    %v4759 = vand.u32 2147483647, %v2100
    %v4760 = vadd.f32 %v4759, 1e-08
    %v4761 = vrcp.pop %v4760
    %v4762 = vmul.f32 %v4760, %v4761
    %v4763 = vsub.f32 1.0, %v4762
    %v4764 = vmul.f32 %v4761, %v4763
    %v4765 = vadd.f32 %v4761, %v4764
    %vm4766 = vweird.f32 %v4760
    %vm4767 = vweird.f32 %v4761
    %vm4768 = vmor %vm4766, %vm4767
    %v4769 = vsel %vm4768, %v4761, %v4765
    %v4770 = vand.u32 2147483647, %v4760
    %vm4771 = vcmp.eq.f32.partialorder %v4770, 8.507059e+37
    %v4772 = vand.u32 %v4760, 2147483648
    %v4773 = vor.u32 1.1754944e-38, %v4772
    %v4774 = vsel %vm4771, %v4773, %v4769
    %v4775 = vmul.f32 %v2100, %v4774
    %4777 = vset.pattern.permute.xlu0 1
    %4778 = vperm.xlu0 %4777, %v2192
    %v4779 = vpop.permute.xlu0 %4778
    %v4781 = vperm.slane %v4779, 0
    %v4782 = vmul.f32 %v4781, %v4775
    %v4783 = vsub.f32 %v168, %v4782
    %4784 = vst [vmem:[%s6] sm:$0x1] %v4783
    %4785 = vst [vmem:[#allocation2] sm:$0xff] %v353
    %vm4786 = vcmp.eq.s32.totalorder %v382, 0
    %vm4787 = vcmp.eq.s32.totalorder %v382, 1
    %vm4788 = vcmp.eq.s32.totalorder %v382, 2
    %vm4789 = vcmp.eq.s32.totalorder %v382, 3
    %v4790 = vsel %vm4789, %v4781, 0.0
    %4791 = vset.pattern.permute.xlu0 0
    %4792 = vperm.xlu0 %4791, %v2191
    %v4793 = vpop.permute.xlu0 %4792
    %v4795 = vperm.slane %v4793, 0
    %v4796 = vsel %vm4788, %v4795, %v4790
    %4798 = vset.pattern.permute.xlu0 1
    %4799 = vperm.xlu0 %4798, %v2102
    %v4800 = vpop.permute.xlu0 %4799
    %v4802 = vperm.slane %v4800, 0
    %v4803 = vsel %vm4787, %v4802, %v4796
    %4805 = vset.pattern.permute.xlu0 0
    %4806 = vperm.xlu0 %4805, %v2101
    %v4807 = vpop.permute.xlu0 %4806
    %v4809 = vperm.slane %v4807, 0
    %v4810 = vsel %vm4786, %v4809, %v4803
    %4811 = vst [vmem:[#allocation4] sm:$0x1] %v4810
    // Predicated region
    $region18: #{_law_forward_impl.1} parent=1 // pred_check
      _
    $region19: #{_law_forward_impl.1} parent=1 // pred_check_branch
      %4813 = sbr.rel (0) target = $region21
    $region20: #{_law_forward_impl.1} parent=1 // pred_region
      %4815 = vsyncadd [#allocation3], 0
      %s4817 = sshll.u32 [#allocation2], 4
      %s4818 = int_to_ptr.vmem [resolvable:$true] %s4817
      %s4819 = sshll.u32 %s4, 4
      %s4820 = int_to_ptr.hbm [resolvable:$true] %s4819
      %4822 = dma.vmem_to_hbm [thread:$0]  %s4818, 128, %s4820, [#allocation3]
    $region21: #{_law_forward_impl.1} parent=1 // pred_fallthru
      _
    // Predicated region
    $region22: #{_law_forward_impl.1} parent=1 // pred_check
      _
    $region23: #{_law_forward_impl.1} parent=1 // pred_check_branch
      %4824 = sbr.rel (0) target = $region25
    $region24: #{_law_forward_impl.1} parent=1 // pred_region
      _
    $region25: #{_law_forward_impl.1} parent=1 // pred_fallthru
      _
    // Predicated region
    $region26: #{_law_forward_impl.1} parent=1 // pred_check
      _
    $region27: #{_law_forward_impl.1} parent=1 // pred_check_branch
      %4826 = sbr.rel (0) target = $region29
    $region28: #{_law_forward_impl.1} parent=1 // pred_region
      _
    $region29: #{_law_forward_impl.1} parent=1 // pred_fallthru
      _
    // Predicated region
    $region30: #{_law_forward_impl.1} parent=1 // pred_check
      _
    $region31: #{_law_forward_impl.1} parent=1 // pred_check_branch
      %4828 = sbr.rel (0) target = $region33
    $region32: #{_law_forward_impl.1} parent=1 // pred_region
      %4830 = vsyncadd [#allocation5], 0
      %s4832 = sshll.u32 [#allocation4], 4
      %s4833 = int_to_ptr.vmem [resolvable:$true] %s4832
      %s4834 = sshll.u32 %s7, 4
      %s4835 = int_to_ptr.hbm [resolvable:$true] %s4834
      %4837 = dma.vmem_to_hbm [thread:$0]  %s4833, 16, %s4835, [#allocation5]
    $region33: #{_law_forward_impl.1} parent=1 // pred_fallthru
      _
    // Predicated region
    $region34: #{_law_forward_impl.1} parent=1 // pred_check
      _
    $region35: #{_law_forward_impl.1} parent=1 // pred_check_branch
      %4839 = sbr.rel (0) target = $region37
    $region36: #{_law_forward_impl.1} parent=1 // pred_region
      %4841 = dma.done [#allocation3], 128
    $region37: #{_law_forward_impl.1} parent=1 // pred_fallthru
      _
    // Predicated region
    $region38: #{_law_forward_impl.1} parent=1 // pred_check
      _
    $region39: #{_law_forward_impl.1} parent=1 // pred_check_branch
      %4843 = sbr.rel (0) target = $region41
    $region40: #{_law_forward_impl.1} parent=1 // pred_region
      _
    $region41: #{_law_forward_impl.1} parent=1 // pred_fallthru
      _
    // Predicated region
    $region42: #{_law_forward_impl.1} parent=1 // pred_check
      _
    $region43: #{_law_forward_impl.1} parent=1 // pred_check_branch
      %4845 = sbr.rel (0) target = $region45
    $region44: #{_law_forward_impl.1} parent=1 // pred_region
      _
    $region45: #{_law_forward_impl.1} parent=1 // pred_fallthru
      _
    // Predicated region
    $region46: #{_law_forward_impl.1} parent=1 // pred_check
      _
    $region47: #{_law_forward_impl.1} parent=1 // pred_check_branch
      %4847 = sbr.rel (0) target = $region49
    $region48: #{_law_forward_impl.1} parent=1 // pred_region
      %4849 = dma.done [#allocation5], 16
    $region49: #{_law_forward_impl.1} parent=1 // pred_fallthru
      _
    %4850 = vsyncpa [#allocation3], 1
    %4851 = vsyncpa [#allocation5], 1

</llo_original>
